<compile_context>
chip_gen: v6e
topology: v6e:2x2x1
jax: 0.10.0
libtpu: 0.0.40
codegen_flags: <defaults>
</compile_context>

<pallas_src>
import functools

import jax
import jax.numpy as jnp
from jax.experimental import pallas as pl
from jax.experimental.pallas import tpu as pltpu

EPS = 1e-5                       # nn.BatchNorm2d default eps
LANE = 128                       # TPU lane width
SUBPACK = 16                     # bf16 sublane packing; min pad for VMEM-only dims
MXU_DTYPE = jnp.bfloat16         # MXU operand dtype (set jnp.float32 for exact parity)
Y2_DTYPE = MXU_DTYPE             # dtype of the stored conv2 pre-BN intermediate


def _rup(v, m):
    return (v + m - 1) // m * m


def _pad_lane(c):
    """HBM-resident lane dims: full 128-lane density -> unmasked vst."""
    return _rup(c, LANE)


def _pad_k(c):
    """Contraction / VMEM-only dims: light padding, no wasted MXU/DMA on zeros."""
    return _rup(c, SUBPACK)


def _hw_budget():
    """Generation-aware scoped-VMEM budget and row-tile target."""
    try:
        cap = int(pltpu.get_tpu_info().vmem_capacity_bytes)
    except Exception:
        cap = 128 * 1024 * 1024
    vmem_limit = int(min(cap * 3 // 4, 96 * 1024 * 1024))
    target_rows = 2048 if cap >= 128 * 1024 * 1024 else 1024
    return vmem_limit, target_rows


def _pick_th(ho, wo, target_rows):
    """Largest divisor of Ho so a (TH, Wo) tile stays <= target rows."""
    # TODO(synk): replace divisor-only tiling with pl.cdiv + masked last block so
    # awkward Ho values (7, 14, primes) don't force tiny tiles.
    best = 1
    for d in range(1, ho + 1):
        if ho % d == 0 and d * wo <= target_rows:
            best = d
    return best


def _ce(flops, *arrays):
    nbytes = sum(int(a.size) * a.dtype.itemsize for a in arrays)
    return pl.CostEstimate(flops=int(flops), transcendentals=0, bytes_accessed=nbytes)


def _sum_sq(y):
    return jnp.concatenate(
        [jnp.sum(y, axis=0, keepdims=True),
         jnp.sum(y * y, axis=0, keepdims=True)], axis=0)


# ------------------------- Pallas kernels -------------------------

def _stats14_kernel(xs_ref, w14_ref, s_ref):
    # Per-batch partial sum / sumsq of conv1|conv4 outputs (one fused matmul).
    # Output block is resident only across the row-block axis -> batch axis is
    # "parallel" (megacore), row-block axis "arbitrary".
    @pl.when(pl.program_id(1) == 0)
    def _():
        s_ref[...] = jnp.zeros_like(s_ref)

    th, wo, cp = xs_ref.shape
    x2d = xs_ref[...].reshape(th * wo, cp)
    y = jnp.dot(x2d, w14_ref[...], preferred_element_type=jnp.float32)
    s_ref[...] += _sum_sq(y)


def _conv12_kernel(xs_ref, w1_ref, b1_ref, w2_ref, y2_ref, s2_ref,
                   ap_ref, acc_ref, *, k, p):
    # conv1 (1x1, stride folded in wrapper) + folded BN1 + ReLU, then conv2 as
    # shifted matmuls against a zero-padded VMEM halo buffer (no HBM im2col).
    ho, wo, cp = xs_ref.shape
    f1p = w1_ref.shape[1]

    x2d = xs_ref[...].reshape(ho * wo, cp)
    a1 = jnp.dot(x2d, w1_ref[...], preferred_element_type=jnp.float32) + b1_ref[...]
    a1 = jnp.maximum(a1, 0.0)

    # Refresh interior; zero only the p-wide border each step (cheap, and stays
    # correct under megacore where program_id(0)==0 never runs on core 1).
    ap_ref[p:p + ho, p:p + wo, :] = a1.reshape(ho, wo, f1p)
    if p > 0:
        zrow = jnp.zeros((p, wo + 2 * p, f1p), jnp.float32)
        zcol = jnp.zeros((ho, p, f1p), jnp.float32)
        ap_ref[0:p, :, :] = zrow
        ap_ref[p + ho:p + ho + p, :, :] = zrow
        ap_ref[p:p + ho, 0:p, :] = zcol
        ap_ref[p:p + ho, p + wo:p + wo + p, :] = zcol

    # conv2: per dh, load one full-width slab (cheap leading-axis slice), slice
    # the dw shifts in registers, accumulate into an explicit VMEM f32 scratch.
    # TODO(synk): concatenate the dw shifts along lanes for one K=k*f1p matmul
    # per dh (3 MXU calls instead of 9) once minor-dim concat is verified.
    for dh in range(k):
        slab = ap_ref[dh:dh + ho, :, :]                      # (ho, wo+2p, f1p)
        part = None
        for dw in range(k):
            tap = dh * k + dw
            patch = slab[:, dw:dw + wo, :].reshape(ho * wo, f1p).astype(w2_ref.dtype)
            c = jnp.dot(patch, w2_ref[tap * f1p:(tap + 1) * f1p, :],
                        preferred_element_type=jnp.float32)
            part = c if part is None else part + c
        if dh == 0:
            acc_ref[...] = part
        else:
            acc_ref[...] += part

    acc = acc_ref[...]
    s2_ref[...] = _sum_sq(acc)                               # per-batch partial
    y2_ref[...] = acc.reshape(ho, wo, y2_ref.shape[-1]).astype(y2_ref.dtype)


def _stats3_kernel(y2_ref, sc2_ref, sh2_ref, w3_ref, s3_ref):
    # BN2 (folded scale/shift) + ReLU, then conv3 statistics (per-batch partial).
    @pl.when(pl.program_id(1) == 0)
    def _():
        s3_ref[...] = jnp.zeros_like(s3_ref)

    th, wo, f2p = y2_ref.shape
    y2 = y2_ref[...].astype(jnp.float32).reshape(th * wo, f2p)
    a2 = jnp.maximum(y2 * sc2_ref[...] + sh2_ref[...], 0.0)
    y3 = jnp.dot(a2.astype(w3_ref.dtype), w3_ref[...],
                 preferred_element_type=jnp.float32)
    s3_ref[...] += _sum_sq(y3)


def _final_kernel(y2_ref, xs_ref, sc2_ref, sh2_ref,
                  w3_ref, b3_ref, w4_ref, b4_ref, o_ref):
    # BN2+ReLU -> conv3+BN3 (folded), conv4+BN4 (folded), residual add, ReLU.
    th, wo, f2p = y2_ref.shape
    cp = xs_ref.shape[-1]
    f3p = w3_ref.shape[1]

    y2 = y2_ref[...].astype(jnp.float32).reshape(th * wo, f2p)
    a2 = jnp.maximum(y2 * sc2_ref[...] + sh2_ref[...], 0.0).astype(w3_ref.dtype)
    y3 = jnp.dot(a2, w3_ref[...], preferred_element_type=jnp.float32) + b3_ref[...]

    # TODO(synk): for wide-cin stages write the pre-BN shortcut out of pass 1
    # (bf16) and apply folded BN4 elementwise here instead of recomputing the
    # cp x f3p matmul (HBM-vs-FLOP break-even on v7x).
    x2d = xs_ref[...].reshape(th * wo, cp)
    y4 = jnp.dot(x2d, w4_ref[...], preferred_element_type=jnp.float32) + b4_ref[...]

    o_ref[...] = jnp.maximum(y3 + y4, 0.0).reshape(th, wo, f3p).astype(o_ref.dtype)


# ------------------------- pallas_call wrappers -------------------------

def _run_stats14(xs_p, w14, th, vmem_limit):
    n, ho, wo, cp = xs_p.shape
    c14 = w14.shape[1]
    hb = ho // th
    partials = pl.pallas_call(
        _stats14_kernel,
        out_shape=jax.ShapeDtypeStruct((n, 2, c14), jnp.float32),
        grid=(n, hb),
        in_specs=[pl.BlockSpec((None, th, wo, cp), lambda i, h: (i, h, 0, 0)),
                  pl.BlockSpec((cp, c14), lambda i, h: (0, 0))],
        out_specs=pl.BlockSpec((None, 2, c14), lambda i, h: (i, 0, 0)),
        compiler_params=pltpu.CompilerParams(
            dimension_semantics=("parallel", "arbitrary"),
            vmem_limit_bytes=vmem_limit),
        cost_estimate=_ce(2 * n * ho * wo * cp * c14, xs_p, w14),
    )(xs_p, w14)
    return jnp.sum(partials, axis=0)                        # (2, c14)


def _run_conv12(xs_p, w1f, b1f, w2p, k, p, vmem_limit):
    n, ho, wo, cp = xs_p.shape
    f1p = w1f.shape[1]
    f2p = w2p.shape[1]
    kernel = functools.partial(_conv12_kernel, k=k, p=p)
    flops = 2 * n * ho * wo * (cp * f1p + k * k * f1p * f2p)
    # TODO(synk): for very large images, row-block this pass with explicit halo
    # DMA (pl.ANY input + pltpu.make_async_copy) so halo/acc VMEM stays bounded.
    y2, s2p = pl.pallas_call(
        kernel,
        out_shape=(jax.ShapeDtypeStruct((n, ho, wo, f2p), Y2_DTYPE),
                   jax.ShapeDtypeStruct((n, 2, f2p), jnp.float32)),
        grid=(n,),
        in_specs=[pl.BlockSpec((None, ho, wo, cp), lambda i: (i, 0, 0, 0)),
                  pl.BlockSpec((cp, f1p), lambda i: (0, 0)),
                  pl.BlockSpec((1, f1p), lambda i: (0, 0)),
                  pl.BlockSpec((k * k * f1p, f2p), lambda i: (0, 0))],
        out_specs=(pl.BlockSpec((None, ho, wo, f2p), lambda i: (i, 0, 0, 0)),
                   pl.BlockSpec((None, 2, f2p), lambda i: (i, 0, 0))),
        scratch_shapes=[pltpu.VMEM((ho + 2 * p, wo + 2 * p, f1p), jnp.float32),
                        pltpu.VMEM((ho * wo, f2p), jnp.float32)],
        compiler_params=pltpu.CompilerParams(
            dimension_semantics=("parallel",),              # megacore over batch
            vmem_limit_bytes=vmem_limit),
        cost_estimate=_ce(flops, xs_p, w1f, w2p),
    )(xs_p, w1f, b1f, w2p)
    return y2, jnp.sum(s2p, axis=0)


def _run_stats3(y2, sc2, sh2, w3p, th, vmem_limit):
    n, ho, wo, f2p = y2.shape
    f3p = w3p.shape[1]
    hb = ho // th
    partials = pl.pallas_call(
        _stats3_kernel,
        out_shape=jax.ShapeDtypeStruct((n, 2, f3p), jnp.float32),
        grid=(n, hb),
        in_specs=[pl.BlockSpec((None, th, wo, f2p), lambda i, h: (i, h, 0, 0)),
                  pl.BlockSpec((1, f2p), lambda i, h: (0, 0)),
                  pl.BlockSpec((1, f2p), lambda i, h: (0, 0)),
                  pl.BlockSpec((f2p, f3p), lambda i, h: (0, 0))],
        out_specs=pl.BlockSpec((None, 2, f3p), lambda i, h: (i, 0, 0)),
        compiler_params=pltpu.CompilerParams(
            dimension_semantics=("parallel", "arbitrary"),
            vmem_limit_bytes=vmem_limit),
        cost_estimate=_ce(2 * n * ho * wo * f2p * f3p, y2, w3p),
    )(y2, sc2, sh2, w3p)
    return jnp.sum(partials, axis=0)


def _run_final(y2, xs_p, sc2, sh2, w3f, b3f, w4f, b4f, th, vmem_limit):
    n, ho, wo, f2p = y2.shape
    cp = xs_p.shape[-1]
    f3p = w3f.shape[1]
    hb = ho // th
    flops = 2 * n * ho * wo * (f2p * f3p + cp * f3p)
    return pl.pallas_call(
        _final_kernel,
        out_shape=jax.ShapeDtypeStruct((n, ho, wo, f3p), jnp.float32),
        grid=(n, hb),
        in_specs=[pl.BlockSpec((None, th, wo, f2p), lambda i, h: (i, h, 0, 0)),
                  pl.BlockSpec((None, th, wo, cp), lambda i, h: (i, h, 0, 0)),
                  pl.BlockSpec((1, f2p), lambda i, h: (0, 0)),
                  pl.BlockSpec((1, f2p), lambda i, h: (0, 0)),
                  pl.BlockSpec((f2p, f3p), lambda i, h: (0, 0)),
                  pl.BlockSpec((1, f3p), lambda i, h: (0, 0)),
                  pl.BlockSpec((cp, f3p), lambda i, h: (0, 0)),
                  pl.BlockSpec((1, f3p), lambda i, h: (0, 0))],
        out_specs=pl.BlockSpec((None, th, wo, f3p), lambda i, h: (i, h, 0, 0)),
        compiler_params=pltpu.CompilerParams(
            dimension_semantics=("parallel", "parallel"),   # megacore on v7x
            vmem_limit_bytes=vmem_limit),
        cost_estimate=_ce(flops, y2, xs_p, w3f, w4f),
    )(y2, xs_p, sc2, sh2, w3f, b3f, w4f, b4f)


# ------------------------- BN folding & padding helpers -------------------------

def _bn_fold(stats, gamma_p, beta_p, count):
    mean = stats[0] / count
    var = jnp.maximum(stats[1] / count - mean * mean, 0.0)   # biased var (torch)
    scale = gamma_p * jax.lax.rsqrt(var + EPS)
    shift = beta_p - mean * scale
    return scale, shift


def _pad_vec(v, n):
    return jnp.pad(v.astype(jnp.float32), (0, n - v.shape[0]))


def _pad_mat(w, r, c):
    w = w.astype(jnp.float32)
    return jnp.pad(w, ((0, r - w.shape[0]), (0, c - w.shape[1])))


# ------------------------- forward wrapper -------------------------

def conv_block_forward(x_nchw, params, kernel_size, stride):
    """Forward pass of ConvBlock (training-mode BN). NCHW in / NCHW out."""
    k = kernel_size
    p = k // 2
    n, cin, _, _ = x_nchw.shape

    f1 = params["w1"].shape[0]
    f2 = params["w2"].shape[0]
    f3 = params["w3"].shape[0]
    cp = _pad_k(cin)             # contraction dims: light padding only
    f1p = _pad_k(f1)
    f2p = _pad_lane(f2)          # HBM-resident lane dims: 128-lane dense
    f3p = _pad_lane(f3)

    # 1x1/stride conv == strided spatial sampling: slice first (NCHW), then one
    # fused transpose+pad+cast copy.
    # TODO(synk): fold the stride into the pass-1/2 index_maps + pl.ds(stride=)
    # to avoid materializing xs_p in HBM at all.
    xs = jnp.transpose(x_nchw[:, :, ::stride, ::stride].astype(jnp.float32),
                       (0, 2, 3, 1))                                  # NHWC
    _, ho, wo, _ = xs.shape
    count = n * ho * wo
    xs_p = jnp.pad(xs, ((0, 0), (0, 0), (0, 0), (0, cp - cin))).astype(MXU_DTYPE)

    w1p = _pad_mat(params["w1"].reshape(f1, cin).T, cp, f1p)
    w3p = _pad_mat(params["w3"].reshape(f3, f2).T, f2p, f3p)
    w4p = _pad_mat(params["w4"].reshape(f3, cin).T, cp, f3p)
    w2khw = jnp.transpose(params["w2"], (2, 3, 1, 0)).astype(jnp.float32)  # (k,k,f1,f2)
    w2p = jnp.pad(w2khw, ((0, 0), (0, 0), (0, f1p - f1), (0, f2p - f2))
                  ).reshape(k * k * f1p, f2p).astype(MXU_DTYPE)

    g1, b1 = _pad_vec(params["g1"], f1p), _pad_vec(params["b1"], f1p)
    g2, b2 = _pad_vec(params["g2"], f2p), _pad_vec(params["b2"], f2p)
    g3, b3 = _pad_vec(params["g3"], f3p), _pad_vec(params["b3"], f3p)
    g4, b4 = _pad_vec(params["g4"], f3p), _pad_vec(params["b4"], f3p)

    vmem_limit, target_rows = _hw_budget()
    th = _pick_th(ho, wo, target_rows)

    # pass 1: fused conv1|conv4 batch statistics (shared strided input)
    w14 = jnp.concatenate([w1p, w4p], axis=1).astype(MXU_DTYPE)
    st14 = _run_stats14(xs_p, w14, th, vmem_limit)
    sc1, sh1 = _bn_fold(st14[:, :f1p], g1, b1, count)
    sc4, sh4 = _bn_fold(st14[:, f1p:], g4, b4, count)
    w1f = (w1p * sc1[None, :]).astype(MXU_DTYPE)
    w4f = (w4p * sc4[None, :]).astype(MXU_DTYPE)

    # pass 2: conv1+BN1+ReLU fused with conv2 (halo taps); conv2 statistics
    y2, st2 = _run_conv12(xs_p, w1f, sh1.reshape(1, f1p), w2p, k, p, vmem_limit)
    sc2, sh2 = _bn_fold(st2, g2, b2, count)
    sc2, sh2 = sc2.reshape(1, f2p), sh2.reshape(1, f2p)

    # pass 3: conv3 statistics
    st3 = _run_stats3(y2, sc2, sh2, w3p.astype(MXU_DTYPE), th, vmem_limit)
    sc3, sh3 = _bn_fold(st3, g3, b3, count)
    w3f = (w3p * sc3[None, :]).astype(MXU_DTYPE)

    # pass 4: BN2+ReLU -> conv3+BN3, conv4+BN4, residual add, ReLU
    outp = _run_final(y2, xs_p, sc2, sh2, w3f, sh3.reshape(1, f3p),
                      w4f, sh4.reshape(1, f3p), th, vmem_limit)

    out = outp[..., :f3]                                     # strip channel pad
    return jnp.transpose(out, (0, 3, 1, 2))                  # back to NCHW


def init_params(key, in_channel, kernel_size, filters):
    f1, f2, f3 = filters
    keys = jax.random.split(key, 4)

    def conv_w(kk, shape):  # Kaiming-uniform-like init (no bias)
        fan_in = shape[1] * shape[2] * shape[3]
        bound = 1.0 / (fan_in ** 0.5)
        return jax.random.uniform(kk, shape, jnp.float32, -bound, bound)

    return dict(
        w1=conv_w(keys[0], (f1, in_channel, 1, 1)),
        w2=conv_w(keys[1], (f2, f1, kernel_size, kernel_size)),
        w3=conv_w(keys[2], (f3, f2, 1, 1)),
        w4=conv_w(keys[3], (f3, in_channel, 1, 1)),
        g1=jnp.ones((f1,), jnp.float32), b1=jnp.zeros((f1,), jnp.float32),
        g2=jnp.ones((f2,), jnp.float32), b2=jnp.zeros((f2,), jnp.float32),
        g3=jnp.ones((f3,), jnp.float32), b3=jnp.zeros((f3,), jnp.float32),
        g4=jnp.ones((f3,), jnp.float32), b4=jnp.zeros((f3,), jnp.float32),
    )


# ------------------------- pure-JAX reference -------------------------

def ref_forward(x, params, kernel_size, stride):
    def conv(x, w, s=1, pad=0):
        return jax.lax.conv_general_dilated(
            x, w, (s, s), [(pad, pad), (pad, pad)],
            dimension_numbers=("NCHW", "OIHW", "NCHW"))

    def bn(y, g, b):
        m = jnp.mean(y, axis=(0, 2, 3), keepdims=True)
        v = jnp.mean((y - m) ** 2, axis=(0, 2, 3), keepdims=True)
        return (y - m) * jax.lax.rsqrt(v + EPS) * g.reshape(1, -1, 1, 1) \
            + b.reshape(1, -1, 1, 1)

    y = jax.nn.relu(bn(conv(x, params["w1"], stride), params["g1"], params["b1"]))
    y = jax.nn.relu(bn(conv(y, params["w2"], 1, kernel_size // 2),
                       params["g2"], params["b2"]))
    y = bn(conv(y, params["w3"]), params["g3"], params["b3"])
    s = bn(conv(x, params["w4"], stride), params["g4"], params["b4"])
    return jax.nn.relu(y + s)


if __name__ == "__main__":
    key = jax.random.PRNGKey(0)
    kx, kp = jax.random.split(key)

    N, Cin, H, W = 2, 4, 16, 16
    kernel_size, filters, stride = 3, (8, 8, 16), 2

    x = jax.random.normal(kx, (N, Cin, H, W), jnp.float32)
    params = init_params(kp, Cin, kernel_size, filters)

    fwd = jax.jit(functools.partial(conv_block_forward,
                                    kernel_size=kernel_size, stride=stride))
    out = jax.block_until_ready(fwd(x, params))

    ref = ref_forward(x, params, kernel_size, stride)
    assert out.shape == ref.shape == (N, filters[2], H // stride, W // stride)
    # bf16 MXU operands (f32 accumulation): tolerance relaxed accordingly.
    # Set MXU_DTYPE = jnp.float32 above for ~1e-4 parity.
    assert jnp.allclose(out, ref, atol=5e-2, rtol=5e-2), \
        float(jnp.max(jnp.abs(out - ref)))

    print("KERNEL_OK")
</pallas_src>

<mosaic_0001>
module attributes {stable_mosaic.version = 11 : i64} {
  func.func @_stats14_kernel(%arg0: i32, %arg1: i32, %arg2: memref<1x8x8x16xbf16, #tpu.memory_space<vmem>>, %arg3: memref<16x144xbf16, #tpu.memory_space<vmem>>, %arg4: memref<1x2x144xf32, #tpu.memory_space<vmem>>) attributes {dimension_semantics = [#tpu.dimension_semantics<parallel>, #tpu.dimension_semantics<arbitrary>], iteration_bounds = array<i64: 2, 1>, scalar_prefetch = 0 : i64, scratch_operands = 0 : i64, tpu.core_type = #tpu.core_type<tc>, window_params = [{transform_indices = @transform_0, window_bounds = array<i64: 1, 8, 8, 16>}, {pipeline_mode = #tpu.pipeline_mode<synchronous>, transform_indices = @transform_1, window_bounds = array<i64: 16, 144>}, {transform_indices = @transform_2, window_bounds = array<i64: 1, 2, 144>}]} {
    %c0_i32 = arith.constant 0 : i32
    %0 = arith.cmpi eq, %arg1, %c0_i32 : i32
    %1 = arith.extui %0 : i1 to i32
    %c0_i32_0 = arith.constant 0 : i32
    %2 = arith.cmpi ne, %1, %c0_i32_0 : i32
    scf.if %2 {
      %cst_14 = arith.constant 0.000000e+00 : f32
      %20 = vector.broadcast %cst_14 : f32 to vector<2x144xf32>
      %c0_15 = arith.constant 0 : index
      %c0_16 = arith.constant 0 : index
      %c0_17 = arith.constant 0 : index
      %21 = vector.load %arg4[%c0_15, %c0_16, %c0_17] : memref<1x2x144xf32, #tpu.memory_space<vmem>>, vector<1x2x144xf32>
      %22 = vector.shape_cast %21 : vector<1x2x144xf32> to vector<2x144xf32>
      %23 = vector.shape_cast %20 : vector<2x144xf32> to vector<1x2x144xf32>
      tpu.vector_store %arg4[%c0_15, %c0_16, %c0_17], %23 {strides = array<i32>} : memref<1x2x144xf32, #tpu.memory_space<vmem>>, vector<1x2x144xf32>,
    } else {
    }
    %c0 = arith.constant 0 : index
    %c0_1 = arith.constant 0 : index
    %c0_2 = arith.constant 0 : index
    %c0_3 = arith.constant 0 : index
    %3 = vector.load %arg2[%c0, %c0_1, %c0_2, %c0_3] : memref<1x8x8x16xbf16, #tpu.memory_space<vmem>>, vector<1x8x8x16xbf16>
    %4 = vector.shape_cast %3 : vector<1x8x8x16xbf16> to vector<8x8x16xbf16>
    %5 = vector.shape_cast %4 : vector<8x8x16xbf16> to vector<64x16xbf16>
    %c0_4 = arith.constant 0 : index
    %c0_5 = arith.constant 0 : index
    %6 = vector.load %arg3[%c0_4, %c0_5] : memref<16x144xbf16, #tpu.memory_space<vmem>>, vector<16x144xbf16>
    %cst = arith.constant dense<0.000000e+00> : vector<64x144xf32>
    %7 = tpu.matmul %5, %6, %cst {dimension_numbers = #tpu.dot_dimension_numbers<[1], [0], [0], [1], [0, 0, 1, 1], [], []>} : vector<64x16xbf16>, vector<16x144xbf16>, vector<64x144xf32> -> vector<64x144xf32>
    %c0_6 = arith.constant 0 : index
    %c0_7 = arith.constant 0 : index
    %c0_8 = arith.constant 0 : index
    %8 = vector.load %arg4[%c0_6, %c0_7, %c0_8] : memref<1x2x144xf32, #tpu.memory_space<vmem>>, vector<1x2x144xf32>
    %9 = vector.shape_cast %8 : vector<1x2x144xf32> to vector<2x144xf32>
    %cst_9 = arith.constant dense<0.000000e+00> : vector<144xf32>
    %10 = vector.multi_reduction <add>, %7, %cst_9 [0] : vector<64x144xf32> to vector<144xf32>
    %11 = vector.shape_cast %10 : vector<144xf32> to vector<1x144xf32>
    %12 = arith.mulf %7, %7 : vector<64x144xf32>
    %cst_10 = arith.constant dense<0.000000e+00> : vector<144xf32>
    %13 = vector.multi_reduction <add>, %12, %cst_10 [0] : vector<64x144xf32> to vector<144xf32>
    %14 = vector.shape_cast %13 : vector<144xf32> to vector<1x144xf32>
    %15 = tpu.concatenate %11, %14 in 0 : vector<1x144xf32>, vector<1x144xf32> -> vector<2x144xf32>
    %16 = arith.addf %9, %15 : vector<2x144xf32>
    %c0_11 = arith.constant 0 : index
    %c0_12 = arith.constant 0 : index
    %c0_13 = arith.constant 0 : index
    %17 = vector.load %arg4[%c0_11, %c0_12, %c0_13] : memref<1x2x144xf32, #tpu.memory_space<vmem>>, vector<1x2x144xf32>
    %18 = vector.shape_cast %17 : vector<1x2x144xf32> to vector<2x144xf32>
    %19 = vector.shape_cast %16 : vector<2x144xf32> to vector<1x2x144xf32>
    tpu.vector_store %arg4[%c0_11, %c0_12, %c0_13], %19 {strides = array<i32>} : memref<1x2x144xf32, #tpu.memory_space<vmem>>, vector<1x2x144xf32>,
    return
  }
  func.func @transform_0(%arg0: i32, %arg1: i32) -> (i32, i32, i32, i32) {
    %c0_i32 = arith.constant 0 : i32
    %c0_i32_0 = arith.constant 0 : i32
    %c0_i32_1 = arith.constant 0 : i32
    return %arg0, %arg1, %c0_i32, %c0_i32_0 : i32, i32, i32, i32
  }
  func.func @transform_1(%arg0: i32, %arg1: i32) -> (i32, i32) {
    %c0_i32 = arith.constant 0 : i32
    %c0_i32_0 = arith.constant 0 : i32
    %c0_i32_1 = arith.constant 0 : i32
    return %c0_i32, %c0_i32_0 : i32, i32
  }
  func.func @transform_2(%arg0: i32, %arg1: i32) -> (i32, i32, i32) {
    %c0_i32 = arith.constant 0 : i32
    %c0_i32_0 = arith.constant 0 : i32
    %c0_i32_1 = arith.constant 0 : i32
    return %arg0, %c0_i32, %c0_i32_0 : i32, i32, i32
  }
}

module attributes {stable_mosaic.version = 11 : i64} {
  func.func @_conv12_kernel(%arg0: i32, %arg1: memref<1x8x8x16xbf16, #tpu.memory_space<vmem>>, %arg2: memref<16x16xbf16, #tpu.memory_space<vmem>>, %arg3: memref<1x16xf32, #tpu.memory_space<vmem>>, %arg4: memref<144x128xbf16, #tpu.memory_space<vmem>>, %arg5: memref<1x8x8x128xbf16, #tpu.memory_space<vmem>>, %arg6: memref<1x2x128xf32, #tpu.memory_space<vmem>>, %arg7: memref<10x10x16xf32, #tpu.memory_space<vmem>>, %arg8: memref<64x128xf32, #tpu.memory_space<vmem>>) attributes {dimension_semantics = [#tpu.dimension_semantics<parallel>], iteration_bounds = array<i64: 2>, scalar_prefetch = 0 : i64, scratch_operands = 2 : i64, tpu.core_type = #tpu.core_type<tc>, window_params = [{transform_indices = @transform_0, window_bounds = array<i64: 1, 8, 8, 16>}, {pipeline_mode = #tpu.pipeline_mode<synchronous>, transform_indices = @transform_1, window_bounds = array<i64: 16, 16>}, {pipeline_mode = #tpu.pipeline_mode<synchronous>, transform_indices = @transform_2, window_bounds = array<i64: 1, 16>}, {pipeline_mode = #tpu.pipeline_mode<synchronous>, transform_indices = @transform_3, window_bounds = array<i64: 144, 128>}, {transform_indices = @transform_4, window_bounds = array<i64: 1, 8, 8, 128>}, {transform_indices = @transform_5, window_bounds = array<i64: 1, 2, 128>}]} {
    %c0 = arith.constant 0 : index
    %c0_0 = arith.constant 0 : index
    %c0_1 = arith.constant 0 : index
    %c0_2 = arith.constant 0 : index
    %0 = vector.load %arg1[%c0, %c0_0, %c0_1, %c0_2] : memref<1x8x8x16xbf16, #tpu.memory_space<vmem>>, vector<1x8x8x16xbf16>
    %1 = vector.shape_cast %0 : vector<1x8x8x16xbf16> to vector<8x8x16xbf16>
    %2 = vector.shape_cast %1 : vector<8x8x16xbf16> to vector<64x16xbf16>
    %c0_3 = arith.constant 0 : index
    %c0_4 = arith.constant 0 : index
    %3 = vector.load %arg2[%c0_3, %c0_4] : memref<16x16xbf16, #tpu.memory_space<vmem>>, vector<16x16xbf16>
    %cst = arith.constant dense<0.000000e+00> : vector<64x16xf32>
    %4 = tpu.matmul %2, %3, %cst {dimension_numbers = #tpu.dot_dimension_numbers<[1], [0], [0], [1], [0, 0, 1, 1], [], []>} : vector<64x16xbf16>, vector<16x16xbf16>, vector<64x16xf32> -> vector<64x16xf32>
    %c0_5 = arith.constant 0 : index
    %c0_6 = arith.constant 0 : index
    %5 = vector.load %arg3[%c0_5, %c0_6] : memref<1x16xf32, #tpu.memory_space<vmem>>, vector<1x16xf32>
    %6 = vector.broadcast %5 : vector<1x16xf32> to vector<64x16xf32>
    %7 = arith.addf %4, %6 : vector<64x16xf32>
    %cst_7 = arith.constant 0.000000e+00 : f32
    %8 = vector.broadcast %cst_7 : f32 to vector<64x16xf32>
    %9 = arith.maximumf %7, %8 : vector<64x16xf32>
    %10 = vector.shape_cast %9 : vector<64x16xf32> to vector<8x8x16xf32>
    %c1 = arith.constant 1 : index
    %c1_8 = arith.constant 1 : index
    %c0_9 = arith.constant 0 : index
    %11 = vector.load %arg7[%c1, %c1_8, %c0_9] : memref<10x10x16xf32, #tpu.memory_space<vmem>>, vector<8x8x16xf32>
    tpu.vector_store %arg7[%c1, %c1_8, %c0_9], %10 {strides = array<i32>} : memref<10x10x16xf32, #tpu.memory_space<vmem>>, vector<8x8x16xf32>,
    %cst_10 = arith.constant 0.000000e+00 : f32
    %12 = vector.broadcast %cst_10 : f32 to vector<1x10x16xf32>
    %cst_11 = arith.constant 0.000000e+00 : f32
    %13 = vector.broadcast %cst_11 : f32 to vector<8x1x16xf32>
    %c0_12 = arith.constant 0 : index
    %c0_13 = arith.constant 0 : index
    %c0_14 = arith.constant 0 : index
    %14 = vector.load %arg7[%c0_12, %c0_13, %c0_14] : memref<10x10x16xf32, #tpu.memory_space<vmem>>, vector<1x10x16xf32>
    tpu.vector_store %arg7[%c0_12, %c0_13, %c0_14], %12 {strides = array<i32>} : memref<10x10x16xf32, #tpu.memory_space<vmem>>, vector<1x10x16xf32>,
    %c9 = arith.constant 9 : index
    %c0_15 = arith.constant 0 : index
    %c0_16 = arith.constant 0 : index
    %15 = vector.load %arg7[%c9, %c0_15, %c0_16] : memref<10x10x16xf32, #tpu.memory_space<vmem>>, vector<1x10x16xf32>
    tpu.vector_store %arg7[%c9, %c0_15, %c0_16], %12 {strides = array<i32>} : memref<10x10x16xf32, #tpu.memory_space<vmem>>, vector<1x10x16xf32>,
    %c1_17 = arith.constant 1 : index
    %c0_18 = arith.constant 0 : index
    %c0_19 = arith.constant 0 : index
    %16 = vector.load %arg7[%c1_17, %c0_18, %c0_19] : memref<10x10x16xf32, #tpu.memory_space<vmem>>, vector<8x1x16xf32>
    tpu.vector_store %arg7[%c1_17, %c0_18, %c0_19], %13 {strides = array<i32>} : memref<10x10x16xf32, #tpu.memory_space<vmem>>, vector<8x1x16xf32>,
    %c1_20 = arith.constant 1 : index
    %c9_21 = arith.constant 9 : index
    %c0_22 = arith.constant 0 : index
    %17 = vector.load %arg7[%c1_20, %c9_21, %c0_22] : memref<10x10x16xf32, #tpu.memory_space<vmem>>, vector<8x1x16xf32>
    tpu.vector_store %arg7[%c1_20, %c9_21, %c0_22], %13 {strides = array<i32>} : memref<10x10x16xf32, #tpu.memory_space<vmem>>, vector<8x1x16xf32>,
    %c0_23 = arith.constant 0 : index
    %c0_24 = arith.constant 0 : index
    %c0_25 = arith.constant 0 : index
    %18 = vector.load %arg7[%c0_23, %c0_24, %c0_25] : memref<10x10x16xf32, #tpu.memory_space<vmem>>, vector<8x10x16xf32>
    %19 = vector.extract_strided_slice %18 {offsets = [0, 0, 0], sizes = [8, 8, 16], strides = [1, 1, 1]} : vector<8x10x16xf32> to vector<8x8x16xf32>
    %20 = vector.shape_cast %19 : vector<8x8x16xf32> to vector<64x16xf32>
    %21 = arith.truncf %20 : vector<64x16xf32> to vector<64x16xbf16>
    %c0_26 = arith.constant 0 : index
    %c0_27 = arith.constant 0 : index
    %22 = vector.load %arg4[%c0_26, %c0_27] : memref<144x128xbf16, #tpu.memory_space<vmem>>, vector<16x128xbf16>
    %cst_28 = arith.constant dense<0.000000e+00> : vector<64x128xf32>
    %23 = tpu.matmul %21, %22, %cst_28 {dimension_numbers = #tpu.dot_dimension_numbers<[1], [0], [0], [1], [0, 0, 1, 1], [], []>} : vector<64x16xbf16>, vector<16x128xbf16>, vector<64x128xf32> -> vector<64x128xf32>
    %24 = vector.extract_strided_slice %18 {offsets = [0, 1, 0], sizes = [8, 8, 16], strides = [1, 1, 1]} : vector<8x10x16xf32> to vector<8x8x16xf32>
    %25 = vector.shape_cast %24 : vector<8x8x16xf32> to vector<64x16xf32>
    %26 = arith.truncf %25 : vector<64x16xf32> to vector<64x16xbf16>
    %c16 = arith.constant 16 : index
    %c0_29 = arith.constant 0 : index
    %27 = vector.load %arg4[%c16, %c0_29] : memref<144x128xbf16, #tpu.memory_space<vmem>>, vector<16x128xbf16>
    %cst_30 = arith.constant dense<0.000000e+00> : vector<64x128xf32>
    %28 = tpu.matmul %26, %27, %cst_30 {dimension_numbers = #tpu.dot_dimension_numbers<[1], [0], [0], [1], [0, 0, 1, 1], [], []>} : vector<64x16xbf16>, vector<16x128xbf16>, vector<64x128xf32> -> vector<64x128xf32>
    %29 = arith.addf %23, %28 : vector<64x128xf32>
    %30 = vector.extract_strided_slice %18 {offsets = [0, 2, 0], sizes = [8, 8, 16], strides = [1, 1, 1]} : vector<8x10x16xf32> to vector<8x8x16xf32>
    %31 = vector.shape_cast %30 : vector<8x8x16xf32> to vector<64x16xf32>
    %32 = arith.truncf %31 : vector<64x16xf32> to vector<64x16xbf16>
    %c32 = arith.constant 32 : index
    %c0_31 = arith.constant 0 : index
    %33 = vector.load %arg4[%c32, %c0_31] : memref<144x128xbf16, #tpu.memory_space<vmem>>, vector<16x128xbf16>
    %cst_32 = arith.constant dense<0.000000e+00> : vector<64x128xf32>
    %34 = tpu.matmul %32, %33, %cst_32 {dimension_numbers = #tpu.dot_dimension_numbers<[1], [0], [0], [1], [0, 0, 1, 1], [], []>} : vector<64x16xbf16>, vector<16x128xbf16>, vector<64x128xf32> -> vector<64x128xf32>
    %35 = arith.addf %29, %34 : vector<64x128xf32>
    %c0_33 = arith.constant 0 : index
    %c0_34 = arith.constant 0 : index
    %36 = vector.load %arg8[%c0_33, %c0_34] : memref<64x128xf32, #tpu.memory_space<vmem>>, vector<64x128xf32>
    tpu.vector_store %arg8[%c0_33, %c0_34], %35 {strides = array<i32>} : memref<64x128xf32, #tpu.memory_space<vmem>>, vector<64x128xf32>,
    %c1_35 = arith.constant 1 : index
    %c0_36 = arith.constant 0 : index
    %c0_37 = arith.constant 0 : index
    %37 = vector.load %arg7[%c1_35, %c0_36, %c0_37] : memref<10x10x16xf32, #tpu.memory_space<vmem>>, vector<8x10x16xf32>
    %38 = vector.extract_strided_slice %37 {offsets = [0, 0, 0], sizes = [8, 8, 16], strides = [1, 1, 1]} : vector<8x10x16xf32> to vector<8x8x16xf32>
    %39 = vector.shape_cast %38 : vector<8x8x16xf32> to vector<64x16xf32>
    %40 = arith.truncf %39 : vector<64x16xf32> to vector<64x16xbf16>
    %c48 = arith.constant 48 : index
    %c0_38 = arith.constant 0 : index
    %41 = vector.load %arg4[%c48, %c0_38] : memref<144x128xbf16, #tpu.memory_space<vmem>>, vector<16x128xbf16>
    %cst_39 = arith.constant dense<0.000000e+00> : vector<64x128xf32>
    %42 = tpu.matmul %40, %41, %cst_39 {dimension_numbers = #tpu.dot_dimension_numbers<[1], [0], [0], [1], [0, 0, 1, 1], [], []>} : vector<64x16xbf16>, vector<16x128xbf16>, vector<64x128xf32> -> vector<64x128xf32>
    %43 = vector.extract_strided_slice %37 {offsets = [0, 1, 0], sizes = [8, 8, 16], strides = [1, 1, 1]} : vector<8x10x16xf32> to vector<8x8x16xf32>
    %44 = vector.shape_cast %43 : vector<8x8x16xf32> to vector<64x16xf32>
    %45 = arith.truncf %44 : vector<64x16xf32> to vector<64x16xbf16>
    %c64 = arith.constant 64 : index
    %c0_40 = arith.constant 0 : index
    %46 = vector.load %arg4[%c64, %c0_40] : memref<144x128xbf16, #tpu.memory_space<vmem>>, vector<16x128xbf16>
    %cst_41 = arith.constant dense<0.000000e+00> : vector<64x128xf32>
    %47 = tpu.matmul %45, %46, %cst_41 {dimension_numbers = #tpu.dot_dimension_numbers<[1], [0], [0], [1], [0, 0, 1, 1], [], []>} : vector<64x16xbf16>, vector<16x128xbf16>, vector<64x128xf32> -> vector<64x128xf32>
    %48 = arith.addf %42, %47 : vector<64x128xf32>
    %49 = vector.extract_strided_slice %37 {offsets = [0, 2, 0], sizes = [8, 8, 16], strides = [1, 1, 1]} : vector<8x10x16xf32> to vector<8x8x16xf32>
    %50 = vector.shape_cast %49 : vector<8x8x16xf32> to vector<64x16xf32>
    %51 = arith.truncf %50 : vector<64x16xf32> to vector<64x16xbf16>
    %c80 = arith.constant 80 : index
    %c0_42 = arith.constant 0 : index
    %52 = vector.load %arg4[%c80, %c0_42] : memref<144x128xbf16, #tpu.memory_space<vmem>>, vector<16x128xbf16>
    %cst_43 = arith.constant dense<0.000000e+00> : vector<64x128xf32>
    %53 = tpu.matmul %51, %52, %cst_43 {dimension_numbers = #tpu.dot_dimension_numbers<[1], [0], [0], [1], [0, 0, 1, 1], [], []>} : vector<64x16xbf16>, vector<16x128xbf16>, vector<64x128xf32> -> vector<64x128xf32>
    %54 = arith.addf %48, %53 : vector<64x128xf32>
    %c0_44 = arith.constant 0 : index
    %c0_45 = arith.constant 0 : index
    %55 = vector.load %arg8[%c0_44, %c0_45] : memref<64x128xf32, #tpu.memory_space<vmem>>, vector<64x128xf32>
    %56 = arith.addf %55, %54 : vector<64x128xf32>
    %c0_46 = arith.constant 0 : index
    %c0_47 = arith.constant 0 : index
    %57 = vector.load %arg8[%c0_46, %c0_47] : memref<64x128xf32, #tpu.memory_space<vmem>>, vector<64x128xf32>
    tpu.vector_store %arg8[%c0_46, %c0_47], %56 {strides = array<i32>} : memref<64x128xf32, #tpu.memory_space<vmem>>, vector<64x128xf32>,
    %c2 = arith.constant 2 : index
    %c0_48 = arith.constant 0 : index
    %c0_49 = arith.constant 0 : index
    %58 = vector.load %arg7[%c2, %c0_48, %c0_49] : memref<10x10x16xf32, #tpu.memory_space<vmem>>, vector<8x10x16xf32>
    %59 = vector.extract_strided_slice %58 {offsets = [0, 0, 0], sizes = [8, 8, 16], strides = [1, 1, 1]} : vector<8x10x16xf32> to vector<8x8x16xf32>
    %60 = vector.shape_cast %59 : vector<8x8x16xf32> to vector<64x16xf32>
    %61 = arith.truncf %60 : vector<64x16xf32> to vector<64x16xbf16>
    %c96 = arith.constant 96 : index
    %c0_50 = arith.constant 0 : index
    %62 = vector.load %arg4[%c96, %c0_50] : memref<144x128xbf16, #tpu.memory_space<vmem>>, vector<16x128xbf16>
    %cst_51 = arith.constant dense<0.000000e+00> : vector<64x128xf32>
    %63 = tpu.matmul %61, %62, %cst_51 {dimension_numbers = #tpu.dot_dimension_numbers<[1], [0], [0], [1], [0, 0, 1, 1], [], []>} : vector<64x16xbf16>, vector<16x128xbf16>, vector<64x128xf32> -> vector<64x128xf32>
    %64 = vector.extract_strided_slice %58 {offsets = [0, 1, 0], sizes = [8, 8, 16], strides = [1, 1, 1]} : vector<8x10x16xf32> to vector<8x8x16xf32>
    %65 = vector.shape_cast %64 : vector<8x8x16xf32> to vector<64x16xf32>
    %66 = arith.truncf %65 : vector<64x16xf32> to vector<64x16xbf16>
    %c112 = arith.constant 112 : index
    %c0_52 = arith.constant 0 : index
    %67 = vector.load %arg4[%c112, %c0_52] : memref<144x128xbf16, #tpu.memory_space<vmem>>, vector<16x128xbf16>
    %cst_53 = arith.constant dense<0.000000e+00> : vector<64x128xf32>
    %68 = tpu.matmul %66, %67, %cst_53 {dimension_numbers = #tpu.dot_dimension_numbers<[1], [0], [0], [1], [0, 0, 1, 1], [], []>} : vector<64x16xbf16>, vector<16x128xbf16>, vector<64x128xf32> -> vector<64x128xf32>
    %69 = arith.addf %63, %68 : vector<64x128xf32>
    %70 = vector.extract_strided_slice %58 {offsets = [0, 2, 0], sizes = [8, 8, 16], strides = [1, 1, 1]} : vector<8x10x16xf32> to vector<8x8x16xf32>
    %71 = vector.shape_cast %70 : vector<8x8x16xf32> to vector<64x16xf32>
    %72 = arith.truncf %71 : vector<64x16xf32> to vector<64x16xbf16>
    %c128 = arith.constant 128 : index
    %c0_54 = arith.constant 0 : index
    %73 = vector.load %arg4[%c128, %c0_54] : memref<144x128xbf16, #tpu.memory_space<vmem>>, vector<16x128xbf16>
    %cst_55 = arith.constant dense<0.000000e+00> : vector<64x128xf32>
    %74 = tpu.matmul %72, %73, %cst_55 {dimension_numbers = #tpu.dot_dimension_numbers<[1], [0], [0], [1], [0, 0, 1, 1], [], []>} : vector<64x16xbf16>, vector<16x128xbf16>, vector<64x128xf32> -> vector<64x128xf32>
    %75 = arith.addf %69, %74 : vector<64x128xf32>
    %c0_56 = arith.constant 0 : index
    %c0_57 = arith.constant 0 : index
    %76 = vector.load %arg8[%c0_56, %c0_57] : memref<64x128xf32, #tpu.memory_space<vmem>>, vector<64x128xf32>
    %77 = arith.addf %76, %75 : vector<64x128xf32>
    %c0_58 = arith.constant 0 : index
    %c0_59 = arith.constant 0 : index
    %78 = vector.load %arg8[%c0_58, %c0_59] : memref<64x128xf32, #tpu.memory_space<vmem>>, vector<64x128xf32>
    tpu.vector_store %arg8[%c0_58, %c0_59], %77 {strides = array<i32>} : memref<64x128xf32, #tpu.memory_space<vmem>>, vector<64x128xf32>,
    %c0_60 = arith.constant 0 : index
    %c0_61 = arith.constant 0 : index
    %79 = vector.load %arg8[%c0_60, %c0_61] : memref<64x128xf32, #tpu.memory_space<vmem>>, vector<64x128xf32>
    %cst_62 = arith.constant dense<0.000000e+00> : vector<128xf32>
    %80 = vector.multi_reduction <add>, %79, %cst_62 [0] : vector<64x128xf32> to vector<128xf32>
    %81 = vector.shape_cast %80 : vector<128xf32> to vector<1x128xf32>
    %82 = arith.mulf %79, %79 : vector<64x128xf32>
    %cst_63 = arith.constant dense<0.000000e+00> : vector<128xf32>
    %83 = vector.multi_reduction <add>, %82, %cst_63 [0] : vector<64x128xf32> to vector<128xf32>
    %84 = vector.shape_cast %83 : vector<128xf32> to vector<1x128xf32>
    %85 = tpu.concatenate %81, %84 in 0 : vector<1x128xf32>, vector<1x128xf32> -> vector<2x128xf32>
    %c0_64 = arith.constant 0 : index
    %c0_65 = arith.constant 0 : index
    %c0_66 = arith.constant 0 : index
    %86 = vector.load %arg6[%c0_64, %c0_65, %c0_66] : memref<1x2x128xf32, #tpu.memory_space<vmem>>, vector<1x2x128xf32>
    %87 = vector.shape_cast %86 : vector<1x2x128xf32> to vector<2x128xf32>
    %88 = vector.shape_cast %85 : vector<2x128xf32> to vector<1x2x128xf32>
    tpu.vector_store %arg6[%c0_64, %c0_65, %c0_66], %88 {strides = array<i32>} : memref<1x2x128xf32, #tpu.memory_space<vmem>>, vector<1x2x128xf32>,
    %89 = vector.shape_cast %79 : vector<64x128xf32> to vector<8x8x128xf32>
    %90 = arith.truncf %89 : vector<8x8x128xf32> to vector<8x8x128xbf16>
    %c0_67 = arith.constant 0 : index
    %c0_68 = arith.constant 0 : index
    %c0_69 = arith.constant 0 : index
    %c0_70 = arith.constant 0 : index
    %91 = vector.load %arg5[%c0_67, %c0_68, %c0_69, %c0_70] : memref<1x8x8x128xbf16, #tpu.memory_space<vmem>>, vector<1x8x8x128xbf16>
    %92 = vector.shape_cast %91 : vector<1x8x8x128xbf16> to vector<8x8x128xbf16>
    %93 = vector.shape_cast %90 : vector<8x8x128xbf16> to vector<1x8x8x128xbf16>
    tpu.vector_store %arg5[%c0_67, %c0_68, %c0_69, %c0_70], %93 {strides = array<i32>} : memref<1x8x8x128xbf16, #tpu.memory_space<vmem>>, vector<1x8x8x128xbf16>,
    return
  }
  func.func @transform_0(%arg0: i32) -> (i32, i32, i32, i32) {
    %c0_i32 = arith.constant 0 : i32
    %c0_i32_0 = arith.constant 0 : i32
    %c0_i32_1 = arith.constant 0 : i32
    %c0_i32_2 = arith.constant 0 : i32
    return %arg0, %c0_i32, %c0_i32_0, %c0_i32_1 : i32, i32, i32, i32
  }
  func.func @transform_1(%arg0: i32) -> (i32, i32) {
    %c0_i32 = arith.constant 0 : i32
    %c0_i32_0 = arith.constant 0 : i32
    %c0_i32_1 = arith.constant 0 : i32
    return %c0_i32, %c0_i32_0 : i32, i32
  }
  func.func @transform_2(%arg0: i32) -> (i32, i32) {
    %c0_i32 = arith.constant 0 : i32
    %c0_i32_0 = arith.constant 0 : i32
    %c0_i32_1 = arith.constant 0 : i32
    return %c0_i32, %c0_i32_0 : i32, i32
  }
  func.func @transform_3(%arg0: i32) -> (i32, i32) {
    %c0_i32 = arith.constant 0 : i32
    %c0_i32_0 = arith.constant 0 : i32
    %c0_i32_1 = arith.constant 0 : i32
    return %c0_i32, %c0_i32_0 : i32, i32
  }
  func.func @transform_4(%arg0: i32) -> (i32, i32, i32, i32) {
    %c0_i32 = arith.constant 0 : i32
    %c0_i32_0 = arith.constant 0 : i32
    %c0_i32_1 = arith.constant 0 : i32
    %c0_i32_2 = arith.constant 0 : i32
    return %arg0, %c0_i32, %c0_i32_0, %c0_i32_1 : i32, i32, i32, i32
  }
  func.func @transform_5(%arg0: i32) -> (i32, i32, i32) {
    %c0_i32 = arith.constant 0 : i32
    %c0_i32_0 = arith.constant 0 : i32
    %c0_i32_1 = arith.constant 0 : i32
    return %arg0, %c0_i32, %c0_i32_0 : i32, i32, i32
  }
}

module attributes {stable_mosaic.version = 11 : i64} {
  func.func @_stats3_kernel(%arg0: i32, %arg1: i32, %arg2: memref<1x8x8x128xbf16, #tpu.memory_space<vmem>>, %arg3: memref<1x128xf32, #tpu.memory_space<vmem>>, %arg4: memref<1x128xf32, #tpu.memory_space<vmem>>, %arg5: memref<128x128xbf16, #tpu.memory_space<vmem>>, %arg6: memref<1x2x128xf32, #tpu.memory_space<vmem>>) attributes {dimension_semantics = [#tpu.dimension_semantics<parallel>, #tpu.dimension_semantics<arbitrary>], iteration_bounds = array<i64: 2, 1>, scalar_prefetch = 0 : i64, scratch_operands = 0 : i64, tpu.core_type = #tpu.core_type<tc>, window_params = [{transform_indices = @transform_0, window_bounds = array<i64: 1, 8, 8, 128>}, {pipeline_mode = #tpu.pipeline_mode<synchronous>, transform_indices = @transform_1, window_bounds = array<i64: 1, 128>}, {pipeline_mode = #tpu.pipeline_mode<synchronous>, transform_indices = @transform_2, window_bounds = array<i64: 1, 128>}, {pipeline_mode = #tpu.pipeline_mode<synchronous>, transform_indices = @transform_3, window_bounds = array<i64: 128, 128>}, {transform_indices = @transform_4, window_bounds = array<i64: 1, 2, 128>}]} {
    %c0_i32 = arith.constant 0 : i32
    %0 = arith.cmpi eq, %arg1, %c0_i32 : i32
    %1 = arith.extui %0 : i1 to i32
    %c0_i32_0 = arith.constant 0 : i32
    %2 = arith.cmpi ne, %1, %c0_i32_0 : i32
    scf.if %2 {
      %cst_19 = arith.constant 0.000000e+00 : f32
      %30 = vector.broadcast %cst_19 : f32 to vector<2x128xf32>
      %c0_20 = arith.constant 0 : index
      %c0_21 = arith.constant 0 : index
      %c0_22 = arith.constant 0 : index
      %31 = vector.load %arg6[%c0_20, %c0_21, %c0_22] : memref<1x2x128xf32, #tpu.memory_space<vmem>>, vector<1x2x128xf32>
      %32 = vector.shape_cast %31 : vector<1x2x128xf32> to vector<2x128xf32>
      %33 = vector.shape_cast %30 : vector<2x128xf32> to vector<1x2x128xf32>
      tpu.vector_store %arg6[%c0_20, %c0_21, %c0_22], %33 {strides = array<i32>} : memref<1x2x128xf32, #tpu.memory_space<vmem>>, vector<1x2x128xf32>,
    } else {
    }
    %c0 = arith.constant 0 : index
    %c0_1 = arith.constant 0 : index
    %c0_2 = arith.constant 0 : index
    %c0_3 = arith.constant 0 : index
    %3 = vector.load %arg2[%c0, %c0_1, %c0_2, %c0_3] : memref<1x8x8x128xbf16, #tpu.memory_space<vmem>>, vector<1x8x8x128xbf16>
    %4 = vector.shape_cast %3 : vector<1x8x8x128xbf16> to vector<8x8x128xbf16>
    %5 = arith.extf %4 : vector<8x8x128xbf16> to vector<8x8x128xf32>
    %6 = vector.shape_cast %5 : vector<8x8x128xf32> to vector<64x128xf32>
    %c0_4 = arith.constant 0 : index
    %c0_5 = arith.constant 0 : index
    %7 = vector.load %arg3[%c0_4, %c0_5] : memref<1x128xf32, #tpu.memory_space<vmem>>, vector<1x128xf32>
    %8 = vector.broadcast %7 : vector<1x128xf32> to vector<64x128xf32>
    %9 = arith.mulf %6, %8 : vector<64x128xf32>
    %c0_6 = arith.constant 0 : index
    %c0_7 = arith.constant 0 : index
    %10 = vector.load %arg4[%c0_6, %c0_7] : memref<1x128xf32, #tpu.memory_space<vmem>>, vector<1x128xf32>
    %11 = vector.broadcast %10 : vector<1x128xf32> to vector<64x128xf32>
    %12 = arith.addf %9, %11 : vector<64x128xf32>
    %cst = arith.constant 0.000000e+00 : f32
    %13 = vector.broadcast %cst : f32 to vector<64x128xf32>
    %14 = arith.maximumf %12, %13 : vector<64x128xf32>
    %15 = arith.truncf %14 : vector<64x128xf32> to vector<64x128xbf16>
    %c0_8 = arith.constant 0 : index
    %c0_9 = arith.constant 0 : index
    %16 = vector.load %arg5[%c0_8, %c0_9] : memref<128x128xbf16, #tpu.memory_space<vmem>>, vector<128x128xbf16>
    %cst_10 = arith.constant dense<0.000000e+00> : vector<64x128xf32>
    %17 = tpu.matmul %15, %16, %cst_10 {dimension_numbers = #tpu.dot_dimension_numbers<[1], [0], [0], [1], [0, 0, 1, 1], [], []>} : vector<64x128xbf16>, vector<128x128xbf16>, vector<64x128xf32> -> vector<64x128xf32>
    %c0_11 = arith.constant 0 : index
    %c0_12 = arith.constant 0 : index
    %c0_13 = arith.constant 0 : index
    %18 = vector.load %arg6[%c0_11, %c0_12, %c0_13] : memref<1x2x128xf32, #tpu.memory_space<vmem>>, vector<1x2x128xf32>
    %19 = vector.shape_cast %18 : vector<1x2x128xf32> to vector<2x128xf32>
    %cst_14 = arith.constant dense<0.000000e+00> : vector<128xf32>
    %20 = vector.multi_reduction <add>, %17, %cst_14 [0] : vector<64x128xf32> to vector<128xf32>
    %21 = vector.shape_cast %20 : vector<128xf32> to vector<1x128xf32>
    %22 = arith.mulf %17, %17 : vector<64x128xf32>
    %cst_15 = arith.constant dense<0.000000e+00> : vector<128xf32>
    %23 = vector.multi_reduction <add>, %22, %cst_15 [0] : vector<64x128xf32> to vector<128xf32>
    %24 = vector.shape_cast %23 : vector<128xf32> to vector<1x128xf32>
    %25 = tpu.concatenate %21, %24 in 0 : vector<1x128xf32>, vector<1x128xf32> -> vector<2x128xf32>
    %26 = arith.addf %19, %25 : vector<2x128xf32>
    %c0_16 = arith.constant 0 : index
    %c0_17 = arith.constant 0 : index
    %c0_18 = arith.constant 0 : index
    %27 = vector.load %arg6[%c0_16, %c0_17, %c0_18] : memref<1x2x128xf32, #tpu.memory_space<vmem>>, vector<1x2x128xf32>
    %28 = vector.shape_cast %27 : vector<1x2x128xf32> to vector<2x128xf32>
    %29 = vector.shape_cast %26 : vector<2x128xf32> to vector<1x2x128xf32>
    tpu.vector_store %arg6[%c0_16, %c0_17, %c0_18], %29 {strides = array<i32>} : memref<1x2x128xf32, #tpu.memory_space<vmem>>, vector<1x2x128xf32>,
    return
  }
  func.func @transform_0(%arg0: i32, %arg1: i32) -> (i32, i32, i32, i32) {
    %c0_i32 = arith.constant 0 : i32
    %c0_i32_0 = arith.constant 0 : i32
    %c0_i32_1 = arith.constant 0 : i32
    return %arg0, %arg1, %c0_i32, %c0_i32_0 : i32, i32, i32, i32
  }
  func.func @transform_1(%arg0: i32, %arg1: i32) -> (i32, i32) {
    %c0_i32 = arith.constant 0 : i32
    %c0_i32_0 = arith.constant 0 : i32
    %c0_i32_1 = arith.constant 0 : i32
    return %c0_i32, %c0_i32_0 : i32, i32
  }
  func.func @transform_2(%arg0: i32, %arg1: i32) -> (i32, i32) {
    %c0_i32 = arith.constant 0 : i32
    %c0_i32_0 = arith.constant 0 : i32
    %c0_i32_1 = arith.constant 0 : i32
    return %c0_i32, %c0_i32_0 : i32, i32
  }
  func.func @transform_3(%arg0: i32, %arg1: i32) -> (i32, i32) {
    %c0_i32 = arith.constant 0 : i32
    %c0_i32_0 = arith.constant 0 : i32
    %c0_i32_1 = arith.constant 0 : i32
    return %c0_i32, %c0_i32_0 : i32, i32
  }
  func.func @transform_4(%arg0: i32, %arg1: i32) -> (i32, i32, i32) {
    %c0_i32 = arith.constant 0 : i32
    %c0_i32_0 = arith.constant 0 : i32
    %c0_i32_1 = arith.constant 0 : i32
    return %arg0, %c0_i32, %c0_i32_0 : i32, i32, i32
  }
}

module attributes {stable_mosaic.version = 11 : i64} {
  func.func @_final_kernel(%arg0: i32, %arg1: i32, %arg2: memref<1x8x8x128xbf16, #tpu.memory_space<vmem>>, %arg3: memref<1x8x8x16xbf16, #tpu.memory_space<vmem>>, %arg4: memref<1x128xf32, #tpu.memory_space<vmem>>, %arg5: memref<1x128xf32, #tpu.memory_space<vmem>>, %arg6: memref<128x128xbf16, #tpu.memory_space<vmem>>, %arg7: memref<1x128xf32, #tpu.memory_space<vmem>>, %arg8: memref<16x128xbf16, #tpu.memory_space<vmem>>, %arg9: memref<1x128xf32, #tpu.memory_space<vmem>>, %arg10: memref<1x8x8x128xf32, #tpu.memory_space<vmem>>) attributes {dimension_semantics = [#tpu.dimension_semantics<parallel>, #tpu.dimension_semantics<parallel>], iteration_bounds = array<i64: 2, 1>, scalar_prefetch = 0 : i64, scratch_operands = 0 : i64, tpu.core_type = #tpu.core_type<tc>, window_params = [{transform_indices = @transform_0, window_bounds = array<i64: 1, 8, 8, 128>}, {transform_indices = @transform_1, window_bounds = array<i64: 1, 8, 8, 16>}, {pipeline_mode = #tpu.pipeline_mode<synchronous>, transform_indices = @transform_2, window_bounds = array<i64: 1, 128>}, {pipeline_mode = #tpu.pipeline_mode<synchronous>, transform_indices = @transform_3, window_bounds = array<i64: 1, 128>}, {pipeline_mode = #tpu.pipeline_mode<synchronous>, transform_indices = @transform_4, window_bounds = array<i64: 128, 128>}, {pipeline_mode = #tpu.pipeline_mode<synchronous>, transform_indices = @transform_5, window_bounds = array<i64: 1, 128>}, {pipeline_mode = #tpu.pipeline_mode<synchronous>, transform_indices = @transform_6, window_bounds = array<i64: 16, 128>}, {pipeline_mode = #tpu.pipeline_mode<synchronous>, transform_indices = @transform_7, window_bounds = array<i64: 1, 128>}, {transform_indices = @transform_8, window_bounds = array<i64: 1, 8, 8, 128>}]} {
    %c0 = arith.constant 0 : index
    %c0_0 = arith.constant 0 : index
    %c0_1 = arith.constant 0 : index
    %c0_2 = arith.constant 0 : index
    %0 = vector.load %arg2[%c0, %c0_0, %c0_1, %c0_2] : memref<1x8x8x128xbf16, #tpu.memory_space<vmem>>, vector<1x8x8x128xbf16>
    %1 = vector.shape_cast %0 : vector<1x8x8x128xbf16> to vector<8x8x128xbf16>
    %2 = arith.extf %1 : vector<8x8x128xbf16> to vector<8x8x128xf32>
    %3 = vector.shape_cast %2 : vector<8x8x128xf32> to vector<64x128xf32>
    %c0_3 = arith.constant 0 : index
    %c0_4 = arith.constant 0 : index
    %4 = vector.load %arg4[%c0_3, %c0_4] : memref<1x128xf32, #tpu.memory_space<vmem>>, vector<1x128xf32>
    %5 = vector.broadcast %4 : vector<1x128xf32> to vector<64x128xf32>
    %6 = arith.mulf %3, %5 : vector<64x128xf32>
    %c0_5 = arith.constant 0 : index
    %c0_6 = arith.constant 0 : index
    %7 = vector.load %arg5[%c0_5, %c0_6] : memref<1x128xf32, #tpu.memory_space<vmem>>, vector<1x128xf32>
    %8 = vector.broadcast %7 : vector<1x128xf32> to vector<64x128xf32>
    %9 = arith.addf %6, %8 : vector<64x128xf32>
    %cst = arith.constant 0.000000e+00 : f32
    %10 = vector.broadcast %cst : f32 to vector<64x128xf32>
    %11 = arith.maximumf %9, %10 : vector<64x128xf32>
    %12 = arith.truncf %11 : vector<64x128xf32> to vector<64x128xbf16>
    %c0_7 = arith.constant 0 : index
    %c0_8 = arith.constant 0 : index
    %13 = vector.load %arg6[%c0_7, %c0_8] : memref<128x128xbf16, #tpu.memory_space<vmem>>, vector<128x128xbf16>
    %cst_9 = arith.constant dense<0.000000e+00> : vector<64x128xf32>
    %14 = tpu.matmul %12, %13, %cst_9 {dimension_numbers = #tpu.dot_dimension_numbers<[1], [0], [0], [1], [0, 0, 1, 1], [], []>} : vector<64x128xbf16>, vector<128x128xbf16>, vector<64x128xf32> -> vector<64x128xf32>
    %c0_10 = arith.constant 0 : index
    %c0_11 = arith.constant 0 : index
    %15 = vector.load %arg7[%c0_10, %c0_11] : memref<1x128xf32, #tpu.memory_space<vmem>>, vector<1x128xf32>
    %16 = vector.broadcast %15 : vector<1x128xf32> to vector<64x128xf32>
    %17 = arith.addf %14, %16 : vector<64x128xf32>
    %c0_12 = arith.constant 0 : index
    %c0_13 = arith.constant 0 : index
    %c0_14 = arith.constant 0 : index
    %c0_15 = arith.constant 0 : index
    %18 = vector.load %arg3[%c0_12, %c0_13, %c0_14, %c0_15] : memref<1x8x8x16xbf16, #tpu.memory_space<vmem>>, vector<1x8x8x16xbf16>
    %19 = vector.shape_cast %18 : vector<1x8x8x16xbf16> to vector<8x8x16xbf16>
    %20 = vector.shape_cast %19 : vector<8x8x16xbf16> to vector<64x16xbf16>
    %c0_16 = arith.constant 0 : index
    %c0_17 = arith.constant 0 : index
    %21 = vector.load %arg8[%c0_16, %c0_17] : memref<16x128xbf16, #tpu.memory_space<vmem>>, vector<16x128xbf16>
    %cst_18 = arith.constant dense<0.000000e+00> : vector<64x128xf32>
    %22 = tpu.matmul %20, %21, %cst_18 {dimension_numbers = #tpu.dot_dimension_numbers<[1], [0], [0], [1], [0, 0, 1, 1], [], []>} : vector<64x16xbf16>, vector<16x128xbf16>, vector<64x128xf32> -> vector<64x128xf32>
    %c0_19 = arith.constant 0 : index
    %c0_20 = arith.constant 0 : index
    %23 = vector.load %arg9[%c0_19, %c0_20] : memref<1x128xf32, #tpu.memory_space<vmem>>, vector<1x128xf32>
    %24 = vector.broadcast %23 : vector<1x128xf32> to vector<64x128xf32>
    %25 = arith.addf %22, %24 : vector<64x128xf32>
    %26 = arith.addf %17, %25 : vector<64x128xf32>
    %cst_21 = arith.constant 0.000000e+00 : f32
    %27 = vector.broadcast %cst_21 : f32 to vector<64x128xf32>
    %28 = arith.maximumf %26, %27 : vector<64x128xf32>
    %29 = vector.shape_cast %28 : vector<64x128xf32> to vector<8x8x128xf32>
    %c0_22 = arith.constant 0 : index
    %c0_23 = arith.constant 0 : index
    %c0_24 = arith.constant 0 : index
    %c0_25 = arith.constant 0 : index
    %30 = vector.load %arg10[%c0_22, %c0_23, %c0_24, %c0_25] : memref<1x8x8x128xf32, #tpu.memory_space<vmem>>, vector<1x8x8x128xf32>
    %31 = vector.shape_cast %30 : vector<1x8x8x128xf32> to vector<8x8x128xf32>
    %32 = vector.shape_cast %29 : vector<8x8x128xf32> to vector<1x8x8x128xf32>
    tpu.vector_store %arg10[%c0_22, %c0_23, %c0_24, %c0_25], %32 {strides = array<i32>} : memref<1x8x8x128xf32, #tpu.memory_space<vmem>>, vector<1x8x8x128xf32>,
    return
  }
  func.func @transform_0(%arg0: i32, %arg1: i32) -> (i32, i32, i32, i32) {
    %c0_i32 = arith.constant 0 : i32
    %c0_i32_0 = arith.constant 0 : i32
    %c0_i32_1 = arith.constant 0 : i32
    return %arg0, %arg1, %c0_i32, %c0_i32_0 : i32, i32, i32, i32
  }
  func.func @transform_1(%arg0: i32, %arg1: i32) -> (i32, i32, i32, i32) {
    %c0_i32 = arith.constant 0 : i32
    %c0_i32_0 = arith.constant 0 : i32
    %c0_i32_1 = arith.constant 0 : i32
    return %arg0, %arg1, %c0_i32, %c0_i32_0 : i32, i32, i32, i32
  }
  func.func @transform_2(%arg0: i32, %arg1: i32) -> (i32, i32) {
    %c0_i32 = arith.constant 0 : i32
    %c0_i32_0 = arith.constant 0 : i32
    %c0_i32_1 = arith.constant 0 : i32
    return %c0_i32, %c0_i32_0 : i32, i32
  }
  func.func @transform_3(%arg0: i32, %arg1: i32) -> (i32, i32) {
    %c0_i32 = arith.constant 0 : i32
    %c0_i32_0 = arith.constant 0 : i32
    %c0_i32_1 = arith.constant 0 : i32
    return %c0_i32, %c0_i32_0 : i32, i32
  }
  func.func @transform_4(%arg0: i32, %arg1: i32) -> (i32, i32) {
    %c0_i32 = arith.constant 0 : i32
    %c0_i32_0 = arith.constant 0 : i32
    %c0_i32_1 = arith.constant 0 : i32
    return %c0_i32, %c0_i32_0 : i32, i32
  }
  func.func @transform_5(%arg0: i32, %arg1: i32) -> (i32, i32) {
    %c0_i32 = arith.constant 0 : i32
    %c0_i32_0 = arith.constant 0 : i32
    %c0_i32_1 = arith.constant 0 : i32
    return %c0_i32, %c0_i32_0 : i32, i32
  }
  func.func @transform_6(%arg0: i32, %arg1: i32) -> (i32, i32) {
    %c0_i32 = arith.constant 0 : i32
    %c0_i32_0 = arith.constant 0 : i32
    %c0_i32_1 = arith.constant 0 : i32
    return %c0_i32, %c0_i32_0 : i32, i32
  }
  func.func @transform_7(%arg0: i32, %arg1: i32) -> (i32, i32) {
    %c0_i32 = arith.constant 0 : i32
    %c0_i32_0 = arith.constant 0 : i32
    %c0_i32_1 = arith.constant 0 : i32
    return %c0_i32, %c0_i32_0 : i32, i32
  }
  func.func @transform_8(%arg0: i32, %arg1: i32) -> (i32, i32, i32, i32) {
    %c0_i32 = arith.constant 0 : i32
    %c0_i32_0 = arith.constant 0 : i32
    %c0_i32_1 = arith.constant 0 : i32
    return %arg0, %arg1, %c0_i32, %c0_i32_0 : i32, i32, i32, i32
  }
}

</mosaic_0001>

<llo_original>
// kernel: conv_block_forward.6
$region0: #{conv_block_forward.6}
  #allocation0 [shape = 'u32[]', space=smem, size = 0x4, offset = 0x4, fixed_abs, tag = 'smem constant byte address 0x4 - core index']
  #allocation1 [shape = 'u32[144,128]{1,0:T(1,128)}', space=vmem, size = 0x12000, scoped, tag = 'internal scratch']
  %s0 = inlined_call_operand.vmem [shape: bf16[2,8,8,128], index: 0, kind: input, shape index: {}]
  %s1 = inlined_call_operand.vmem [shape: f32[1,128], index: 1, kind: input, shape index: {}]
  %s2 = inlined_call_operand.vmem [shape: f32[1,128], index: 2, kind: input, shape index: {}]
  %s3 = inlined_call_operand.vmem [shape: bf16[128,128], index: 3, kind: input, shape index: {}]
  %s4 = inlined_call_operand.vmem [shape: f32[2,2,128], index: 4, kind: output, shape index: {}]
  %s5 = sld [smem:[#allocation0]]
  $region53: #{conv_block_forward.6} parent=0
    _
  %s7 = ssub.s32 1, %s5
  %s8 = scalar_select 0, %s7, %s5
  loop: start=0, step=1, limit=4
  $region2: #{conv_block_forward.6} parent=0 // loop_pre_header
    _
  $region3: #{conv_block_forward.6} parent=0 // loop_header
    %s10 = sphi 0, %s14
    %p11 = scmp.ge.s32.totalorder %s10, 4
    %s17 = sphi 0, %s29
    %s18 = sphi 0, %s25
    %s19 = sphi 0, %s17
    %s20 = sphi 0, %s18
    %s21 = sphi 0, %s19
    %s22 = sphi 0, %s20
    %s34 = sphi 0, %s36
    %s37 = sphi 0, %s34
    %s38 = sphi 0, %s37
    %s54 = sphi 0, %s38
    %s58 = sphi 0, %s58
    %s60 = sphi 0, %s58
    %s61 = sphi 0, %s60
    %s75 = sphi 0, %s61
    %s79 = sphi 0, %s79
    %s81 = sphi 0, %s79
    %s82 = sphi 0, %s81
    %s96 = sphi 0, %s82
    %s100 = sphi 0, %s100
    %s102 = sphi 0, %s100
    %s103 = sphi 0, %s102
    %s117 = sphi 0, %s103
    %s123 = sphi 0, %s125
    %s126 = sphi 0, %s123
    %s127 = sphi 0, %s126
    %s143 = sphi 0, %s127
  $region4: #{conv_block_forward.6} parent=0 // loop_header_branch
    %13 = sbr.rel (%p11) target = $region8
  $region5: #{conv_block_forward.6} parent=0 // loop_body
    %s15 = ssub.s32 %s10, 1
    %s16 = ssub.s32 %s10, 2
    %s23 = sadd.s32 1, %s18
    %p24 = scmp.ge.s32.totalorder %s23, 1
    %s25 = scalar_select %p24, 0, %s23
    %s26 = sadd.s32 1, %s17
    %s27 = scalar_select %p24, %s26, %s17
    %p28 = scmp.ge.s32.totalorder %s27, 2
    %s29 = scalar_select %p28, 0, %s27
    %s30 = ssub.s32 %s17, %s29
    %s31 = ssub.s32 %s18, %s25
    %s32 = sor.u32 %s30, %s31
    %p33 = scmp.eq.s32.totalorder %s32, 0
    %s35 = sadd.s32 %s34, 1
    %s36 = scalar_select %p33, %s34, %s35
    %p39 = pneg %p33
    %p40 = scmp.eq.s32.totalorder %s10, 1
    %p41 = por %p39, %p40
    %p42 = scmp.ne.s32.totalorder %s34, %s37
    %p43 = scmp.eq.s32.totalorder %s10, 0
    %p44 = por %p42, %p43
    %p45 = scmp.ne.s32.totalorder %s34, %s37
    %p46 = scmp.eq.s32.totalorder %s15, 1
    %p47 = por %p45, %p46
    %p48 = scmp.ne.s32.totalorder %s37, %s38
    %p49 = scmp.eq.s32.totalorder %s15, 0
    %p50 = por %p48, %p49
    %p51 = scmp.ne.s32.totalorder %s37, %s38
    %p52 = scmp.eq.s32.totalorder %s16, 1
    %p53 = por %p51, %p52
    %p55 = scmp.ne.s32.totalorder %s38, %s54
    %p56 = scmp.eq.s32.totalorder %s16, 0
    %p57 = por %p55, %p56
    %s59 = sadd.s32 %s58, 1
    %p62 = scmp.eq.s32.totalorder %s10, 1
    %p63 = scmp.ne.s32.totalorder %s58, %s60
    %p64 = scmp.eq.s32.totalorder %s10, 0
    %p65 = por %p63, %p64
    %p66 = scmp.ne.s32.totalorder %s58, %s60
    %p67 = scmp.eq.s32.totalorder %s15, 1
    %p68 = por %p66, %p67
    %p69 = scmp.ne.s32.totalorder %s60, %s61
    %p70 = scmp.eq.s32.totalorder %s15, 0
    %p71 = por %p69, %p70
    %p72 = scmp.ne.s32.totalorder %s60, %s61
    %p73 = scmp.eq.s32.totalorder %s16, 1
    %p74 = por %p72, %p73
    %p76 = scmp.ne.s32.totalorder %s61, %s75
    %p77 = scmp.eq.s32.totalorder %s16, 0
    %p78 = por %p76, %p77
    %s80 = sadd.s32 %s79, 1
    %p83 = scmp.eq.s32.totalorder %s10, 1
    %p84 = scmp.ne.s32.totalorder %s79, %s81
    %p85 = scmp.eq.s32.totalorder %s10, 0
    %p86 = por %p84, %p85
    %p87 = scmp.ne.s32.totalorder %s79, %s81
    %p88 = scmp.eq.s32.totalorder %s15, 1
    %p89 = por %p87, %p88
    %p90 = scmp.ne.s32.totalorder %s81, %s82
    %p91 = scmp.eq.s32.totalorder %s15, 0
    %p92 = por %p90, %p91
    %p93 = scmp.ne.s32.totalorder %s81, %s82
    %p94 = scmp.eq.s32.totalorder %s16, 1
    %p95 = por %p93, %p94
    %p97 = scmp.ne.s32.totalorder %s82, %s96
    %p98 = scmp.eq.s32.totalorder %s16, 0
    %p99 = por %p97, %p98
    %s101 = sadd.s32 %s100, 1
    %p104 = scmp.eq.s32.totalorder %s10, 1
    %p105 = scmp.ne.s32.totalorder %s100, %s102
    %p106 = scmp.eq.s32.totalorder %s10, 0
    %p107 = por %p105, %p106
    %p108 = scmp.ne.s32.totalorder %s100, %s102
    %p109 = scmp.eq.s32.totalorder %s15, 1
    %p110 = por %p108, %p109
    %p111 = scmp.ne.s32.totalorder %s102, %s103
    %p112 = scmp.eq.s32.totalorder %s15, 0
    %p113 = por %p111, %p112
    %p114 = scmp.ne.s32.totalorder %s102, %s103
    %p115 = scmp.eq.s32.totalorder %s16, 1
    %p116 = por %p114, %p115
    %p118 = scmp.ne.s32.totalorder %s103, %s117
    %p119 = scmp.eq.s32.totalorder %s16, 0
    %p120 = por %p118, %p119
    %s121 = ssub.s32 %s17, %s29
    %p122 = scmp.eq.s32.totalorder %s121, 0
    %s124 = sadd.s32 %s123, 1
    %s125 = scalar_select %p122, %s123, %s124
    %p128 = pneg %p122
    %p129 = scmp.eq.s32.totalorder %s10, 1
    %p130 = por %p128, %p129
    %p131 = scmp.ne.s32.totalorder %s123, %s126
    %p132 = scmp.eq.s32.totalorder %s10, 0
    %p133 = por %p131, %p132
    %p134 = scmp.ne.s32.totalorder %s123, %s126
    %p135 = scmp.eq.s32.totalorder %s15, 1
    %p136 = por %p134, %p135
    %p137 = scmp.ne.s32.totalorder %s126, %s127
    %p138 = scmp.eq.s32.totalorder %s15, 0
    %p139 = por %p137, %p138
    %p140 = scmp.ne.s32.totalorder %s126, %s127
    %p141 = scmp.eq.s32.totalorder %s16, 1
    %p142 = por %p140, %p141
    %p144 = scmp.ne.s32.totalorder %s127, %s143
    %p145 = scmp.eq.s32.totalorder %s16, 0
    %p146 = por %p144, %p145
    %p147 = scmp.le.s32.totalorder 1, %s10
    %p148 = scmp.lt.s32.totalorder %s10, 3
    %p149 = pnand %p147, %p148
    %p150 = pneg %p149
    // Predicated region
    $region9: #{conv_block_forward.6} parent=5 // pred_check
      _
    $region10: #{conv_block_forward.6} parent=5 // pred_check_branch
      %152 = sbr.rel (%p149) target = $region12
    $region11: #{conv_block_forward.6} parent=5 // pred_region
      %s153 = ssub.s32 %s10, 1
      // Predicated region
      $region13: #{conv_block_forward.6} parent=11 // pred_check
        %p154 = pneg %p71
      $region14: #{conv_block_forward.6} parent=11 // pred_check_branch
        %156 = sbr.rel (%p154) target = $region16
      $region15: #{conv_block_forward.6} parent=11 // pred_region
        _
      $region16: #{conv_block_forward.6} parent=11 // pred_fallthru
        _
      // Predicated region
      $region17: #{conv_block_forward.6} parent=11 // pred_check
        %p157 = pneg %p92
      $region18: #{conv_block_forward.6} parent=11 // pred_check_branch
        %159 = sbr.rel (%p157) target = $region20
      $region19: #{conv_block_forward.6} parent=11 // pred_region
        _
      $region20: #{conv_block_forward.6} parent=11 // pred_fallthru
        _
      // Predicated region
      $region21: #{conv_block_forward.6} parent=11 // pred_check
        %p160 = pneg %p113
      $region22: #{conv_block_forward.6} parent=11 // pred_check_branch
        %162 = sbr.rel (%p160) target = $region24
      $region23: #{conv_block_forward.6} parent=11 // pred_region
        _
      $region24: #{conv_block_forward.6} parent=11 // pred_fallthru
        _
    $region12: #{conv_block_forward.6} parent=5 // pred_fallthru
      _
    %p163 = scmp.lt.s32.totalorder %s10, 2
    // Predicated region
    $region25: #{conv_block_forward.6} parent=5 // pred_check
      %p164 = pneg %p163
    $region26: #{conv_block_forward.6} parent=5 // pred_check_branch
      %166 = sbr.rel (%p164) target = $region28
    $region27: #{conv_block_forward.6} parent=5 // pred_region
      // Predicated region
      $region29: #{conv_block_forward.6} parent=27 // pred_check
        %p167 = pneg %p44
      $region30: #{conv_block_forward.6} parent=27 // pred_check_branch
        %169 = sbr.rel (%p167) target = $region32
      $region31: #{conv_block_forward.6} parent=27 // pred_region
        %s170 = smul.u32 8, %s18
        %p171 = scmp.lt.s32.totalorder %s17, 1
        %s172 = scalar_select %p171, %s17, 1
        %p173 = scmp.lt.s32.totalorder %s170, 7
        %s174 = scalar_select %p173, %s170, 7
        %s175 = smul.addr %s172, 8
        %s176 = sadd.s32 %s174, %s175
        %s177 = smul.addr %s176, 4
        %s178 = scalar_lea.vmem %s0, %s177
        %s179 = smul.u32 8, %s18
      $region32: #{conv_block_forward.6} parent=27 // pred_fallthru
        _
    $region28: #{conv_block_forward.6} parent=5 // pred_fallthru
      _
    %p180 = scmp.le.s32.totalorder 1, %s10
    %p181 = scmp.lt.s32.totalorder %s10, 3
    %p182 = pnand %p180, %p181
    %p183 = pneg %p182
    // Predicated region
    $region33: #{conv_block_forward.6} parent=5 // pred_check
      _
    $region34: #{conv_block_forward.6} parent=5 // pred_check_branch
      %185 = sbr.rel (%p182) target = $region36
    $region35: #{conv_block_forward.6} parent=5 // pred_region
      %s186 = ssub.s32 %s10, 1
      %s187 = smul.u32 8, %s20
      %p188 = scmp.lt.s32.totalorder %s19, 1
      %s189 = scalar_select %p188, %s19, 1
      %p190 = scmp.lt.s32.totalorder %s187, 7
      %s191 = scalar_select %p190, %s187, 7
      %s192 = smul.addr %s189, 8
      %s193 = sadd.s32 %s191, %s192
      %s194 = smul.addr %s193, 4
      %s195 = scalar_lea.vmem %s0, %s194
      %p196 = pneg %p50
      %p197 = pneg %p47
      %p198 = pneg %p71
      %p199 = pneg %p68
      %p200 = pneg %p92
      %p201 = pneg %p89
      %p202 = pneg %p113
      %p203 = pneg %p110
      %p204 = pneg %p139
      %p205 = pneg %p136
      %p206 = scmp.lt.s32.totalorder %s19, 1
      %s207 = scalar_select %p206, %s19, 1
      %s208 = smul.addr %s207, 2
      %s209 = scalar_lea.vmem %s4, %s208
      %s210 = smul.u32 8, %s20
      %p211 = scmp.lt.s32.totalorder %s19, 1
      %s212 = scalar_select %p211, %s19, 1
      %p213 = scmp.lt.s32.totalorder %s210, 7
      %s214 = scalar_select %p213, %s210, 7
      %s215 = smul.addr %s212, 8
      %s216 = sadd.s32 %s214, %s215
      %s217 = smul.addr %s216, 4
      %s218 = scalar_lea.vmem %s0, %s217
      %s219 = smul.u32 8, %s20
      %p220 = scmp.lt.s32.totalorder %s19, 1
      %s221 = scalar_select %p220, %s19, 1
      %s222 = smul.addr %s221, 2
      %s223 = scalar_lea.vmem %s4, %s222
      %p225 = scmp.eq.s32.totalorder %s20, 0
      // Predicated region
      $region37: #{conv_block_forward.6} parent=35 // pred_check
        %p226 = pneg %p225
      $region38: #{conv_block_forward.6} parent=35 // pred_check_branch
        %228 = sbr.rel (%p226) target = $region40
      $region39: #{conv_block_forward.6} parent=35 // pred_region
        %229 = vst [vmem:[%s223] sm:$0x3] 0.0
      $region40: #{conv_block_forward.6} parent=35 // pred_fallthru
        _
      %v230 = vld [vmem:[%s218] sm:$0xf]
      %v231 = vld [vmem:[%s218 + $0x4] sm:$0xf]
      %v232 = vld [vmem:[%s218 + $0x8] sm:$0xf]
      %v233 = vld [vmem:[%s218 + $0xc] sm:$0xf]
      %v234 = vld [vmem:[%s218 + $0x10] sm:$0xf]
      %v235 = vld [vmem:[%s218 + $0x14] sm:$0xf]
      %v236 = vld [vmem:[%s218 + $0x18] sm:$0xf]
      %v237 = vld [vmem:[%s218 + $0x1c] sm:$0xf]
      %v238 = vunpack.c.l.bf16 %v230
      %v239 = vunpack.c.l.bf16 %v231
      %v240 = vunpack.c.l.bf16 %v232
      %v241 = vunpack.c.l.bf16 %v233
      %v242 = vunpack.c.l.bf16 %v234
      %v243 = vunpack.c.l.bf16 %v235
      %v244 = vunpack.c.l.bf16 %v236
      %v245 = vunpack.c.l.bf16 %v237
      %v246 = vld [vmem:[%s1] sm:$0x1]
      %v248 = vlaneseq
      %v249 = vshrl.u32 %v248, 7
      %v250 = vsub.s32 0, %v249
      %v251 = vrot.slane %v246, %v250
      %v253 = vmul.f32 %v238, %v251
      %v254 = vmul.f32 %v239, %v251
      %v255 = vmul.f32 %v240, %v251
      %v256 = vmul.f32 %v241, %v251
      %v257 = vmul.f32 %v242, %v251
      %v258 = vmul.f32 %v243, %v251
      %v259 = vmul.f32 %v244, %v251
      %v260 = vmul.f32 %v245, %v251
      %v261 = vld [vmem:[%s2] sm:$0x1]
      %v263 = vlaneseq
      %v264 = vshrl.u32 %v263, 7
      %v265 = vsub.s32 0, %v264
      %v266 = vrot.slane %v261, %v265
      %v268 = vadd.f32 %v253, %v266
      %v269 = vadd.f32 %v254, %v266
      %v270 = vadd.f32 %v255, %v266
      %v271 = vadd.f32 %v256, %v266
      %v272 = vadd.f32 %v257, %v266
      %v273 = vadd.f32 %v258, %v266
      %v274 = vadd.f32 %v259, %v266
      %v275 = vadd.f32 %v260, %v266
      %v276 = vmax.f32 %v268, 0.0
      %v277 = vmax.f32 %v269, 0.0
      %v278 = vmax.f32 %v270, 0.0
      %v279 = vmax.f32 %v271, 0.0
      %v280 = vmax.f32 %v272, 0.0
      %v281 = vmax.f32 %v273, 0.0
      %v282 = vmax.f32 %v274, 0.0
      %v283 = vmax.f32 %v275, 0.0
      %v284 = vpack.c.bf16 %v277, %v276
      %v285 = vpack.c.bf16 %v279, %v278
      %v286 = vpack.c.bf16 %v281, %v280
      %v287 = vpack.c.bf16 %v283, %v282
      %v288 = vld [vmem:[%s3] sm:$0xf]
      %v289 = vld [vmem:[%s3 + $0x4] sm:$0xf]
      %v290 = vld [vmem:[%s3 + $0x8] sm:$0xf]
      %v291 = vld [vmem:[%s3 + $0xc] sm:$0xf]
      %v292 = vld [vmem:[%s3 + $0x10] sm:$0xf]
      %v293 = vld [vmem:[%s3 + $0x14] sm:$0xf]
      %v294 = vld [vmem:[%s3 + $0x18] sm:$0xf]
      %v295 = vld [vmem:[%s3 + $0x1c] sm:$0xf]
      %v296 = vld [vmem:[%s3 + $0x20] sm:$0xf]
      %v297 = vld [vmem:[%s3 + $0x24] sm:$0xf]
      %v298 = vld [vmem:[%s3 + $0x28] sm:$0xf]
      %v299 = vld [vmem:[%s3 + $0x2c] sm:$0xf]
      %v300 = vld [vmem:[%s3 + $0x30] sm:$0xf]
      %v301 = vld [vmem:[%s3 + $0x34] sm:$0xf]
      %v302 = vld [vmem:[%s3 + $0x38] sm:$0xf]
      %v303 = vld [vmem:[%s3 + $0x3c] sm:$0xf]
      %v320 = vunpack.c.l.b16 %v288
      %v321 = vunpack.c.l.b16 %v289
      %v322 = vunpack.c.l.b16 %v290
      %v323 = vunpack.c.l.b16 %v291
      %v324 = vunpack.c.l.b16 %v292
      %v325 = vunpack.c.l.b16 %v293
      %v326 = vunpack.c.l.b16 %v294
      %v327 = vunpack.c.l.b16 %v295
      %v328 = vunpack.c.l.b16 %v296
      %v329 = vunpack.c.l.b16 %v297
      %v330 = vunpack.c.l.b16 %v298
      %v331 = vunpack.c.l.b16 %v299
      %v332 = vunpack.c.l.b16 %v300
      %v333 = vunpack.c.l.b16 %v301
      %v334 = vunpack.c.l.b16 %v302
      %v335 = vunpack.c.l.b16 %v303
      %v336 = vpack.c.b16 %v321, %v320
      %v337 = vpack.c.b16 %v323, %v322
      %v338 = vpack.c.b16 %v325, %v324
      %v339 = vpack.c.b16 %v327, %v326
      %v340 = vpack.c.b16 %v329, %v328
      %v341 = vpack.c.b16 %v331, %v330
      %v342 = vpack.c.b16 %v333, %v332
      %v343 = vpack.c.b16 %v335, %v334
      %352 = vmatprep.subr.bf16.mxu0 0
      %353 = vmatpush1.bf16.msra.mxu0 %v343
      %354 = vmatprep.subr.bf16.mxu0 0
      %355 = vmatpush1.bf16.msra.mxu0 %v342
      %356 = vmatprep.subr.bf16.mxu0 0
      %357 = vmatpush1.bf16.msra.mxu0 %v341
      %358 = vmatprep.subr.bf16.mxu0 0
      %359 = vmatpush1.bf16.msra.mxu0 %v340
      %360 = vmatprep.subr.bf16.mxu0 0
      %361 = vmatpush1.bf16.msra.mxu0 %v339
      %362 = vmatprep.subr.bf16.mxu0 0
      %363 = vmatpush1.bf16.msra.mxu0 %v338
      %364 = vmatprep.subr.bf16.mxu0 0
      %365 = vmatpush1.bf16.msra.mxu0 %v337
      %366 = vmatprep.subr.bf16.mxu0 0
      %367 = vmatpush1.bf16.msra.mxu0 %v336
      %368 = vmatprep.subr.bf16.mxu0 0
      %369 = vmatpush2.bf16.msra.mxu0 0
      %370 = vmatprep.subr.bf16.mxu0 0
      %371 = vmatpush2.bf16.msra.mxu0 0
      %372 = vmatprep.subr.bf16.mxu0 0
      %373 = vmatpush2.bf16.msra.mxu0 0
      %374 = vmatprep.subr.bf16.mxu0 0
      %375 = vmatpush2.bf16.msra.mxu0 0
      %376 = vmatprep.subr.bf16.mxu0 0
      %377 = vmatpush2.bf16.msra.mxu0 0
      %378 = vmatprep.subr.bf16.mxu0 0
      %379 = vmatpush2.bf16.msra.mxu0 0
      %380 = vmatprep.subr.bf16.mxu0 0
      %381 = vmatpush2.bf16.msra.mxu0 0
      %382 = vmatprep.subr.bf16.mxu0 0
      %383 = vmatpush2.bf16.msra.mxu0 0
      %384 = vmatprep.mubr.bf16.mxu0 0
      %385 = vmatmul.mubr.bf16.gmra.mxu0 %v284
      %v386 = vpop.f32.mrf.mxu0
      %v387 = vadd.f32 0.0, %v386
      %v388 = vpop.f32.mrf.mxu0
      %v389 = vpop.f32.mrf.mxu0
      %v390 = vadd.f32 0.0, %v389
      %v391 = vpop.f32.mrf.mxu0
      %392 = vmatprep.mubr.bf16.mxu0 0
      %393 = vmatmul.mubr.bf16.gmra.mxu0 %v285
      %v394 = vpop.f32.mrf.mxu0
      %v395 = vadd.f32 0.0, %v394
      %v396 = vpop.f32.mrf.mxu0
      %v397 = vpop.f32.mrf.mxu0
      %v398 = vadd.f32 0.0, %v397
      %v399 = vpop.f32.mrf.mxu0
      %400 = vmatprep.mubr.bf16.mxu0 0
      %401 = vmatmul.mubr.bf16.gmra.mxu0 %v286
      %v402 = vpop.f32.mrf.mxu0
      %v403 = vadd.f32 0.0, %v402
      %v404 = vpop.f32.mrf.mxu0
      %v405 = vpop.f32.mrf.mxu0
      %v406 = vadd.f32 0.0, %v405
      %v407 = vpop.f32.mrf.mxu0
      %408 = vmatprep.mubr.bf16.mxu0 0
      %409 = vmatmul.mubr.bf16.gmra.mxu0 %v287
      %v410 = vpop.f32.mrf.mxu0
      %v411 = vadd.f32 0.0, %v410
      %v412 = vpop.f32.mrf.mxu0
      %v413 = vpop.f32.mrf.mxu0
      %v414 = vadd.f32 0.0, %v413
      %v415 = vpop.f32.mrf.mxu0
      %416 = vdwg.mxu0
      %v417 = vld [vmem:[%s223] sm:$0x3]
      %v418 = vadd.f32 %v387, %v390
      %v419 = vadd.f32 %v418, %v395
      %v420 = vadd.f32 %v419, %v398
      %v421 = vadd.f32 %v420, %v403
      %v422 = vadd.f32 %v421, %v406
      %v423 = vadd.f32 %v422, %v411
      %v424 = vadd.f32 %v423, %v414
      %v425 = vrot.slane %v424, 4
      %v426 = vadd.f32 %v424, %v425
      %v427 = vrot.slane %v426, 2
      %v428 = vadd.f32 %v426, %v427
      %v429 = vrot.slane %v428, 1
      %v430 = vadd.f32 %v428, %v429
      %v431 = vmul.f32 %v387, %v387
      %v432 = vmul.f32 %v390, %v390
      %v433 = vmul.f32 %v395, %v395
      %v434 = vmul.f32 %v398, %v398
      %v435 = vmul.f32 %v403, %v403
      %v436 = vmul.f32 %v406, %v406
      %v437 = vmul.f32 %v411, %v411
      %v438 = vmul.f32 %v414, %v414
      %v439 = vadd.f32 %v431, %v432
      %v440 = vadd.f32 %v439, %v433
      %v441 = vadd.f32 %v440, %v434
      %v442 = vadd.f32 %v441, %v435
      %v443 = vadd.f32 %v442, %v436
      %v444 = vadd.f32 %v443, %v437
      %v445 = vadd.f32 %v444, %v438
      %v446 = vrot.slane %v445, 4
      %v447 = vadd.f32 %v445, %v446
      %v448 = vrot.slane %v447, 2
      %v449 = vadd.f32 %v447, %v448
      %v450 = vrot.slane %v449, 1
      %v451 = vadd.f32 %v449, %v450
      %vm452 = vcmask 1040384
      %v453 = vsel %vm452, %v430, %v451
      %v454 = vadd.f32 %v417, %v453
      %455 = vst [vmem:[%s223] sm:$0x3] %v454
      %p456 = scmp.lt.s32.totalorder %s19, 1
      %s457 = scalar_select %p456, %s19, 1
      %s458 = smul.addr %s457, 2
      %s459 = scalar_lea.vmem %s4, %s458
      // Predicated region
      $region41: #{conv_block_forward.6} parent=35 // pred_check
        %p460 = pneg %p136
      $region42: #{conv_block_forward.6} parent=35 // pred_check_branch
        %462 = sbr.rel (%p460) target = $region44
      $region43: #{conv_block_forward.6} parent=35 // pred_region
        _
      $region44: #{conv_block_forward.6} parent=35 // pred_fallthru
        _
    $region36: #{conv_block_forward.6} parent=5 // pred_fallthru
      _
    %p463 = scmp.le.s32.totalorder 2, %s10
    // Predicated region
    $region45: #{conv_block_forward.6} parent=5 // pred_check
      %p464 = pneg %p463
    $region46: #{conv_block_forward.6} parent=5 // pred_check_branch
      %466 = sbr.rel (%p464) target = $region48
    $region47: #{conv_block_forward.6} parent=5 // pred_region
      %s467 = ssub.s32 %s10, 2
      // Predicated region
      $region49: #{conv_block_forward.6} parent=47 // pred_check
        %p468 = pneg %p142
      $region50: #{conv_block_forward.6} parent=47 // pred_check_branch
        %470 = sbr.rel (%p468) target = $region52
      $region51: #{conv_block_forward.6} parent=47 // pred_region
        %p471 = scmp.lt.s32.totalorder %s21, 1
        %s472 = scalar_select %p471, %s21, 1
        %s473 = smul.addr %s472, 2
        %s474 = scalar_lea.vmem %s4, %s473
      $region52: #{conv_block_forward.6} parent=47 // pred_fallthru
        _
    $region48: #{conv_block_forward.6} parent=5 // pred_fallthru
      _
  $region6: #{conv_block_forward.6} parent=0 // loop_footer
    %s14 = sadd.s32 1, %s10
  $region7: #{conv_block_forward.6} parent=0 // loop_footer_branch
    %9 = sbr.rel target = $region3
  $region8: #{conv_block_forward.6} parent=0 // loop_exit
    _

// kernel: conv_block_forward.4
$region0: #{conv_block_forward.4}
  #allocation0 [shape = 'u32[]', space=smem, size = 0x4, offset = 0x4, fixed_abs, tag = 'smem constant byte address 0x4 - core index']
  #allocation1 [shape = 'u32[144,128]{1,0:T(1,128)}', space=vmem, size = 0x12000, scoped, tag = 'internal scratch']
  %s0 = inlined_call_operand.vmem [shape: bf16[2,8,8,16], index: 0, kind: input, shape index: {}]
  %s1 = inlined_call_operand.vmem [shape: bf16[16,144], index: 1, kind: input, shape index: {}]
  %s2 = inlined_call_operand.vmem [shape: f32[2,2,144], index: 2, kind: output, shape index: {}]
  %s3 = sld [smem:[#allocation0]]
  $region45: #{conv_block_forward.4} parent=0
    _
  %s5 = ssub.s32 1, %s3
  %s6 = scalar_select 0, %s5, %s3
  loop: start=0, step=1, limit=4
  $region2: #{conv_block_forward.4} parent=0 // loop_pre_header
    _
  $region3: #{conv_block_forward.4} parent=0 // loop_header
    %s8 = sphi 0, %s12
    %p9 = scmp.ge.s32.totalorder %s8, 4
    %s15 = sphi 0, %s27
    %s16 = sphi 0, %s23
    %s17 = sphi 0, %s15
    %s18 = sphi 0, %s16
    %s19 = sphi 0, %s17
    %s20 = sphi 0, %s18
    %s32 = sphi 0, %s34
    %s35 = sphi 0, %s32
    %s36 = sphi 0, %s35
    %s52 = sphi 0, %s36
    %s56 = sphi 0, %s56
    %s58 = sphi 0, %s56
    %s59 = sphi 0, %s58
    %s73 = sphi 0, %s59
    %s79 = sphi 0, %s81
    %s82 = sphi 0, %s79
    %s83 = sphi 0, %s82
    %s99 = sphi 0, %s83
  $region4: #{conv_block_forward.4} parent=0 // loop_header_branch
    %11 = sbr.rel (%p9) target = $region8
  $region5: #{conv_block_forward.4} parent=0 // loop_body
    %s13 = ssub.s32 %s8, 1
    %s14 = ssub.s32 %s8, 2
    %s21 = sadd.s32 1, %s16
    %p22 = scmp.ge.s32.totalorder %s21, 1
    %s23 = scalar_select %p22, 0, %s21
    %s24 = sadd.s32 1, %s15
    %s25 = scalar_select %p22, %s24, %s15
    %p26 = scmp.ge.s32.totalorder %s25, 2
    %s27 = scalar_select %p26, 0, %s25
    %s28 = ssub.s32 %s15, %s27
    %s29 = ssub.s32 %s16, %s23
    %s30 = sor.u32 %s28, %s29
    %p31 = scmp.eq.s32.totalorder %s30, 0
    %s33 = sadd.s32 %s32, 1
    %s34 = scalar_select %p31, %s32, %s33
    %p37 = pneg %p31
    %p38 = scmp.eq.s32.totalorder %s8, 1
    %p39 = por %p37, %p38
    %p40 = scmp.ne.s32.totalorder %s32, %s35
    %p41 = scmp.eq.s32.totalorder %s8, 0
    %p42 = por %p40, %p41
    %p43 = scmp.ne.s32.totalorder %s32, %s35
    %p44 = scmp.eq.s32.totalorder %s13, 1
    %p45 = por %p43, %p44
    %p46 = scmp.ne.s32.totalorder %s35, %s36
    %p47 = scmp.eq.s32.totalorder %s13, 0
    %p48 = por %p46, %p47
    %p49 = scmp.ne.s32.totalorder %s35, %s36
    %p50 = scmp.eq.s32.totalorder %s14, 1
    %p51 = por %p49, %p50
    %p53 = scmp.ne.s32.totalorder %s36, %s52
    %p54 = scmp.eq.s32.totalorder %s14, 0
    %p55 = por %p53, %p54
    %s57 = sadd.s32 %s56, 1
    %p60 = scmp.eq.s32.totalorder %s8, 1
    %p61 = scmp.ne.s32.totalorder %s56, %s58
    %p62 = scmp.eq.s32.totalorder %s8, 0
    %p63 = por %p61, %p62
    %p64 = scmp.ne.s32.totalorder %s56, %s58
    %p65 = scmp.eq.s32.totalorder %s13, 1
    %p66 = por %p64, %p65
    %p67 = scmp.ne.s32.totalorder %s58, %s59
    %p68 = scmp.eq.s32.totalorder %s13, 0
    %p69 = por %p67, %p68
    %p70 = scmp.ne.s32.totalorder %s58, %s59
    %p71 = scmp.eq.s32.totalorder %s14, 1
    %p72 = por %p70, %p71
    %p74 = scmp.ne.s32.totalorder %s59, %s73
    %p75 = scmp.eq.s32.totalorder %s14, 0
    %p76 = por %p74, %p75
    %s77 = ssub.s32 %s15, %s27
    %p78 = scmp.eq.s32.totalorder %s77, 0
    %s80 = sadd.s32 %s79, 1
    %s81 = scalar_select %p78, %s79, %s80
    %p84 = pneg %p78
    %p85 = scmp.eq.s32.totalorder %s8, 1
    %p86 = por %p84, %p85
    %p87 = scmp.ne.s32.totalorder %s79, %s82
    %p88 = scmp.eq.s32.totalorder %s8, 0
    %p89 = por %p87, %p88
    %p90 = scmp.ne.s32.totalorder %s79, %s82
    %p91 = scmp.eq.s32.totalorder %s13, 1
    %p92 = por %p90, %p91
    %p93 = scmp.ne.s32.totalorder %s82, %s83
    %p94 = scmp.eq.s32.totalorder %s13, 0
    %p95 = por %p93, %p94
    %p96 = scmp.ne.s32.totalorder %s82, %s83
    %p97 = scmp.eq.s32.totalorder %s14, 1
    %p98 = por %p96, %p97
    %p100 = scmp.ne.s32.totalorder %s83, %s99
    %p101 = scmp.eq.s32.totalorder %s14, 0
    %p102 = por %p100, %p101
    %p103 = scmp.le.s32.totalorder 1, %s8
    %p104 = scmp.lt.s32.totalorder %s8, 3
    %p105 = pnand %p103, %p104
    %p106 = pneg %p105
    // Predicated region
    $region9: #{conv_block_forward.4} parent=5 // pred_check
      _
    $region10: #{conv_block_forward.4} parent=5 // pred_check_branch
      %108 = sbr.rel (%p105) target = $region12
    $region11: #{conv_block_forward.4} parent=5 // pred_region
      %s109 = ssub.s32 %s8, 1
      // Predicated region
      $region13: #{conv_block_forward.4} parent=11 // pred_check
        %p110 = pneg %p69
      $region14: #{conv_block_forward.4} parent=11 // pred_check_branch
        %112 = sbr.rel (%p110) target = $region16
      $region15: #{conv_block_forward.4} parent=11 // pred_region
        _
      $region16: #{conv_block_forward.4} parent=11 // pred_fallthru
        _
    $region12: #{conv_block_forward.4} parent=5 // pred_fallthru
      _
    %p113 = scmp.lt.s32.totalorder %s8, 2
    // Predicated region
    $region17: #{conv_block_forward.4} parent=5 // pred_check
      %p114 = pneg %p113
    $region18: #{conv_block_forward.4} parent=5 // pred_check_branch
      %116 = sbr.rel (%p114) target = $region20
    $region19: #{conv_block_forward.4} parent=5 // pred_region
      // Predicated region
      $region21: #{conv_block_forward.4} parent=19 // pred_check
        %p117 = pneg %p42
      $region22: #{conv_block_forward.4} parent=19 // pred_check_branch
        %119 = sbr.rel (%p117) target = $region24
      $region23: #{conv_block_forward.4} parent=19 // pred_region
        %s120 = smul.u32 8, %s16
        %p121 = scmp.lt.s32.totalorder %s15, 1
        %s122 = scalar_select %p121, %s15, 1
        %p123 = scmp.lt.s32.totalorder %s120, 7
        %s124 = scalar_select %p123, %s120, 7
        %s125 = smul.addr %s122, 8
        %s126 = sadd.s32 %s124, %s125
        %s127 = smul.addr %s126, 4
        %s128 = scalar_lea.vmem %s0, %s127
        %s129 = smul.u32 8, %s16
      $region24: #{conv_block_forward.4} parent=19 // pred_fallthru
        _
    $region20: #{conv_block_forward.4} parent=5 // pred_fallthru
      _
    %p130 = scmp.le.s32.totalorder 1, %s8
    %p131 = scmp.lt.s32.totalorder %s8, 3
    %p132 = pnand %p130, %p131
    %p133 = pneg %p132
    // Predicated region
    $region25: #{conv_block_forward.4} parent=5 // pred_check
      _
    $region26: #{conv_block_forward.4} parent=5 // pred_check_branch
      %135 = sbr.rel (%p132) target = $region28
    $region27: #{conv_block_forward.4} parent=5 // pred_region
      %s136 = ssub.s32 %s8, 1
      %s137 = smul.u32 8, %s18
      %p138 = scmp.lt.s32.totalorder %s17, 1
      %s139 = scalar_select %p138, %s17, 1
      %p140 = scmp.lt.s32.totalorder %s137, 7
      %s141 = scalar_select %p140, %s137, 7
      %s142 = smul.addr %s139, 8
      %s143 = sadd.s32 %s141, %s142
      %s144 = smul.addr %s143, 4
      %s145 = scalar_lea.vmem %s0, %s144
      %p146 = pneg %p48
      %p147 = pneg %p45
      %p148 = pneg %p69
      %p149 = pneg %p66
      %p150 = pneg %p95
      %p151 = pneg %p92
      %p152 = scmp.lt.s32.totalorder %s17, 1
      %s153 = scalar_select %p152, %s17, 1
      %s154 = smul.addr %s153, 2
      %s155 = smul.addr %s154, 2
      %s156 = scalar_lea.vmem %s2, %s155
      %s157 = smul.u32 8, %s18
      %p158 = scmp.lt.s32.totalorder %s17, 1
      %s159 = scalar_select %p158, %s17, 1
      %p160 = scmp.lt.s32.totalorder %s157, 7
      %s161 = scalar_select %p160, %s157, 7
      %s162 = smul.addr %s159, 8
      %s163 = sadd.s32 %s161, %s162
      %s164 = smul.addr %s163, 4
      %s165 = scalar_lea.vmem %s0, %s164
      %s166 = smul.u32 8, %s18
      %p167 = scmp.lt.s32.totalorder %s17, 1
      %s168 = scalar_select %p167, %s17, 1
      %s169 = smul.addr %s168, 2
      %s170 = smul.addr %s169, 2
      %s171 = scalar_lea.vmem %s2, %s170
      %p173 = scmp.eq.s32.totalorder %s18, 0
      // Predicated region
      $region29: #{conv_block_forward.4} parent=27 // pred_check
        %p174 = pneg %p173
      $region30: #{conv_block_forward.4} parent=27 // pred_check_branch
        %176 = sbr.rel (%p174) target = $region32
      $region31: #{conv_block_forward.4} parent=27 // pred_region
        %vm177 = vcmask 1041408
        %vm178 = vcmask 125954
        %vm179 = vmor %vm178, %vm177
        %180 = vst.msk [vmem:[%s171] sm:$0xf] %vm179, 0.0
      $region32: #{conv_block_forward.4} parent=27 // pred_fallthru
        _
      %v181 = vld [vmem:[%s165] sm:$0xf]
      %v182 = vld [vmem:[%s165 + $0x4] sm:$0xf]
      %v183 = vld [vmem:[%s165 + $0x8] sm:$0xf]
      %v184 = vld [vmem:[%s165 + $0xc] sm:$0xf]
      %v185 = vld [vmem:[%s165 + $0x10] sm:$0xf]
      %v186 = vld [vmem:[%s165 + $0x14] sm:$0xf]
      %v187 = vld [vmem:[%s165 + $0x18] sm:$0xf]
      %v188 = vld [vmem:[%s165 + $0x1c] sm:$0xf]
      %v189 = vld [vmem:[%s1] sm:$0xff]
      %v190 = vld [vmem:[%s1 + $0x8] sm:$0xff]
      %v199 = vunpack.c.l.b16 %v181
      %v200 = vunpack.c.l.b16 %v182
      %v201 = vunpack.c.l.b16 %v183
      %v202 = vunpack.c.l.b16 %v184
      %v203 = vunpack.c.l.b16 %v185
      %v204 = vunpack.c.l.b16 %v186
      %v205 = vunpack.c.l.b16 %v187
      %v206 = vunpack.c.l.b16 %v188
      %v207 = vpack.c.b16 %v200, %v199
      %v208 = vpack.c.b16 %v202, %v201
      %v209 = vpack.c.b16 %v204, %v203
      %v210 = vpack.c.b16 %v206, %v205
      %v213 = vunpack.c.l.b16 %v189
      %v214 = vunpack.c.h.b16 %v189
      %v215 = vunpack.c.l.b16 %v190
      %v216 = vunpack.c.h.b16 %v190
      %v217 = vpack.c.b16 %v215, %v213
      %v218 = vpack.c.b16 %v216, %v214
      %vm221 = vcmask 130048
      %v223 = vsel %vm221, %v207, 0
      %v226 = vsel %vm221, %v208, 0
      %v229 = vsel %vm221, %v209, 0
      %v232 = vsel %vm221, %v210, 0
      %234 = vmatprep.subr.bf16.mxu0 0
      %235 = vmatpush1.bf16.msra.mxu0 0
      %236 = vmatprep.subr.bf16.mxu0 0
      %237 = vmatpush1.bf16.msra.mxu0 0
      %238 = vmatprep.subr.bf16.mxu0 0
      %239 = vmatpush1.bf16.msra.mxu0 0
      %240 = vmatprep.subr.bf16.mxu0 0
      %241 = vmatpush1.bf16.msra.mxu0 0
      %242 = vmatprep.subr.bf16.mxu0 0
      %243 = vmatpush1.bf16.msra.mxu0 0
      %244 = vmatprep.subr.bf16.mxu0 0
      %245 = vmatpush1.bf16.msra.mxu0 0
      %246 = vmatprep.subr.bf16.mxu0 0
      %247 = vmatpush1.bf16.msra.mxu0 0
      %248 = vmatprep.subr.bf16.mxu0 %v218
      %249 = vmatpush1.bf16.msra.mxu0 %v217
      %250 = vmatprep.subr.bf16.mxu0 0
      %251 = vmatpush2.bf16.msra.mxu0 0
      %252 = vmatprep.subr.bf16.mxu0 0
      %253 = vmatpush2.bf16.msra.mxu0 0
      %254 = vmatprep.subr.bf16.mxu0 0
      %255 = vmatpush2.bf16.msra.mxu0 0
      %256 = vmatprep.subr.bf16.mxu0 0
      %257 = vmatpush2.bf16.msra.mxu0 0
      %258 = vmatprep.subr.bf16.mxu0 0
      %259 = vmatpush2.bf16.msra.mxu0 0
      %260 = vmatprep.subr.bf16.mxu0 0
      %261 = vmatpush2.bf16.msra.mxu0 0
      %262 = vmatprep.subr.bf16.mxu0 0
      %263 = vmatpush2.bf16.msra.mxu0 0
      %264 = vmatprep.subr.bf16.mxu0 0
      %265 = vmatpush2.bf16.msra.mxu0 0
      %266 = vmatprep.mubr.bf16.mxu0 0
      %267 = vmatmul.mubr.bf16.gmra.mxu0 %v223
      %v268 = vpop.f32.mrf.mxu0
      %v269 = vadd.f32 0.0, %v268
      %v270 = vpop.f32.mrf.mxu0
      %v271 = vadd.f32 0.0, %v270
      %v272 = vpop.f32.mrf.mxu0
      %v273 = vadd.f32 0.0, %v272
      %v274 = vpop.f32.mrf.mxu0
      %v275 = vadd.f32 0.0, %v274
      %276 = vmatprep.mubr.bf16.mxu0 0
      %277 = vmatmul.mubr.bf16.gmra.mxu0 %v226
      %v278 = vpop.f32.mrf.mxu0
      %v279 = vadd.f32 0.0, %v278
      %v280 = vpop.f32.mrf.mxu0
      %v281 = vadd.f32 0.0, %v280
      %v282 = vpop.f32.mrf.mxu0
      %v283 = vadd.f32 0.0, %v282
      %v284 = vpop.f32.mrf.mxu0
      %v285 = vadd.f32 0.0, %v284
      %286 = vmatprep.mubr.bf16.mxu0 0
      %287 = vmatmul.mubr.bf16.gmra.mxu0 %v229
      %v288 = vpop.f32.mrf.mxu0
      %v289 = vadd.f32 0.0, %v288
      %v290 = vpop.f32.mrf.mxu0
      %v291 = vadd.f32 0.0, %v290
      %v292 = vpop.f32.mrf.mxu0
      %v293 = vadd.f32 0.0, %v292
      %v294 = vpop.f32.mrf.mxu0
      %v295 = vadd.f32 0.0, %v294
      %296 = vmatprep.mubr.bf16.mxu0 0
      %297 = vmatmul.mubr.bf16.gmra.mxu0 %v232
      %v298 = vpop.f32.mrf.mxu0
      %v299 = vadd.f32 0.0, %v298
      %v300 = vpop.f32.mrf.mxu0
      %v301 = vadd.f32 0.0, %v300
      %v302 = vpop.f32.mrf.mxu0
      %v303 = vadd.f32 0.0, %v302
      %v304 = vpop.f32.mrf.mxu0
      %v305 = vadd.f32 0.0, %v304
      %306 = vdwg.mxu0
      %v307 = vld [vmem:[%s171] sm:$0xf]
      %v308 = vadd.f32 %v269, %v273
      %v309 = vadd.f32 %v308, %v279
      %v310 = vadd.f32 %v309, %v283
      %v311 = vadd.f32 %v310, %v289
      %v312 = vadd.f32 %v311, %v293
      %v313 = vadd.f32 %v312, %v299
      %v314 = vadd.f32 %v313, %v303
      %v315 = vrot.slane %v314, 4
      %v316 = vadd.f32 %v314, %v315
      %v317 = vrot.slane %v316, 2
      %v318 = vadd.f32 %v316, %v317
      %v319 = vrot.slane %v318, 1
      %v320 = vadd.f32 %v318, %v319
      %v321 = vsel %vm221, %v271, 0.0
      %v322 = vsel %vm221, %v275, 0.0
      %v323 = vadd.f32 %v321, %v322
      %v324 = vsel %vm221, %v281, 0.0
      %v325 = vadd.f32 %v323, %v324
      %v326 = vsel %vm221, %v285, 0.0
      %v327 = vadd.f32 %v325, %v326
      %v328 = vsel %vm221, %v291, 0.0
      %v329 = vadd.f32 %v327, %v328
      %v330 = vsel %vm221, %v295, 0.0
      %v331 = vadd.f32 %v329, %v330
      %v332 = vsel %vm221, %v301, 0.0
      %v333 = vadd.f32 %v331, %v332
      %v334 = vsel %vm221, %v305, 0.0
      %v335 = vadd.f32 %v333, %v334
      %v336 = vrot.slane %v335, 4
      %v337 = vadd.f32 %v335, %v336
      %v338 = vrot.slane %v337, 2
      %v339 = vadd.f32 %v337, %v338
      %v340 = vrot.slane %v339, 1
      %v341 = vadd.f32 %v339, %v340
      %v342 = vmul.f32 %v269, %v269
      %v343 = vmul.f32 %v271, %v271
      %v344 = vmul.f32 %v273, %v273
      %v345 = vmul.f32 %v275, %v275
      %v346 = vmul.f32 %v279, %v279
      %v347 = vmul.f32 %v281, %v281
      %v348 = vmul.f32 %v283, %v283
      %v349 = vmul.f32 %v285, %v285
      %v350 = vmul.f32 %v289, %v289
      %v351 = vmul.f32 %v291, %v291
      %v352 = vmul.f32 %v293, %v293
      %v353 = vmul.f32 %v295, %v295
      %v354 = vmul.f32 %v299, %v299
      %v355 = vmul.f32 %v301, %v301
      %v356 = vmul.f32 %v303, %v303
      %v357 = vmul.f32 %v305, %v305
      %v358 = vadd.f32 %v342, %v344
      %v359 = vadd.f32 %v358, %v346
      %v360 = vadd.f32 %v359, %v348
      %v361 = vadd.f32 %v360, %v350
      %v362 = vadd.f32 %v361, %v352
      %v363 = vadd.f32 %v362, %v354
      %v364 = vadd.f32 %v363, %v356
      %v365 = vrot.slane %v364, 4
      %v366 = vadd.f32 %v364, %v365
      %v367 = vrot.slane %v366, 2
      %v368 = vadd.f32 %v366, %v367
      %v369 = vrot.slane %v368, 1
      %v370 = vadd.f32 %v368, %v369
      %v371 = vsel %vm221, %v343, 0.0
      %v372 = vsel %vm221, %v345, 0.0
      %v373 = vadd.f32 %v371, %v372
      %v374 = vsel %vm221, %v347, 0.0
      %v375 = vadd.f32 %v373, %v374
      %v376 = vsel %vm221, %v349, 0.0
      %v377 = vadd.f32 %v375, %v376
      %v378 = vsel %vm221, %v351, 0.0
      %v379 = vadd.f32 %v377, %v378
      %v380 = vsel %vm221, %v353, 0.0
      %v381 = vadd.f32 %v379, %v380
      %v382 = vsel %vm221, %v355, 0.0
      %v383 = vadd.f32 %v381, %v382
      %v384 = vsel %vm221, %v357, 0.0
      %v385 = vadd.f32 %v383, %v384
      %v386 = vrot.slane %v385, 4
      %v387 = vadd.f32 %v385, %v386
      %v388 = vrot.slane %v387, 2
      %v389 = vadd.f32 %v387, %v388
      %v390 = vrot.slane %v389, 1
      %v391 = vadd.f32 %v389, %v390
      %vm392 = vcmask 1040384
      %v393 = vsel %vm392, %v320, %v370
      %v394 = vsel %vm392, %v341, %v391
      %v397 = vcombine.low %v393, %v394
      %v399 = vunpack.c.l.s4 1983009808
      %v400 = vunpack.c.0.s8 %v399
      %v401 = vlaneseq
      %v402 = vshrl.u32 %v401, 7
      %v403 = vsub.s32 %v400, %v402
      %v404 = vrot.slane %v397, %v403
      %v406 = vadd.f32 %v307, %v404
      %vm407 = vcmask 1041408
      %vm408 = vcmask 125954
      %vm409 = vmor %vm408, %vm407
      %410 = vst.msk [vmem:[%s171] sm:$0xf] %vm409, %v406
      %p411 = scmp.lt.s32.totalorder %s17, 1
      %s412 = scalar_select %p411, %s17, 1
      %s413 = smul.addr %s412, 2
      %s414 = smul.addr %s413, 2
      %s415 = scalar_lea.vmem %s2, %s414
      // Predicated region
      $region33: #{conv_block_forward.4} parent=27 // pred_check
        %p416 = pneg %p92
      $region34: #{conv_block_forward.4} parent=27 // pred_check_branch
        %418 = sbr.rel (%p416) target = $region36
      $region35: #{conv_block_forward.4} parent=27 // pred_region
        _
      $region36: #{conv_block_forward.4} parent=27 // pred_fallthru
        _
    $region28: #{conv_block_forward.4} parent=5 // pred_fallthru
      _
    %p419 = scmp.le.s32.totalorder 2, %s8
    // Predicated region
    $region37: #{conv_block_forward.4} parent=5 // pred_check
      %p420 = pneg %p419
    $region38: #{conv_block_forward.4} parent=5 // pred_check_branch
      %422 = sbr.rel (%p420) target = $region40
    $region39: #{conv_block_forward.4} parent=5 // pred_region
      %s423 = ssub.s32 %s8, 2
      // Predicated region
      $region41: #{conv_block_forward.4} parent=39 // pred_check
        %p424 = pneg %p98
      $region42: #{conv_block_forward.4} parent=39 // pred_check_branch
        %426 = sbr.rel (%p424) target = $region44
      $region43: #{conv_block_forward.4} parent=39 // pred_region
        %p427 = scmp.lt.s32.totalorder %s19, 1
        %s428 = scalar_select %p427, %s19, 1
        %s429 = smul.addr %s428, 2
        %s430 = smul.addr %s429, 2
        %s431 = scalar_lea.vmem %s2, %s430
      $region44: #{conv_block_forward.4} parent=39 // pred_fallthru
        _
    $region40: #{conv_block_forward.4} parent=5 // pred_fallthru
      _
  $region6: #{conv_block_forward.4} parent=0 // loop_footer
    %s12 = sadd.s32 1, %s8
  $region7: #{conv_block_forward.4} parent=0 // loop_footer_branch
    %7 = sbr.rel target = $region3
  $region8: #{conv_block_forward.4} parent=0 // loop_exit
    _

// kernel: conv_block_forward.7
$region0: #{conv_block_forward.7}
  #allocation0 [shape = 'u32[]', space=smem, size = 0x4, offset = 0x4, fixed_abs, tag = 'smem constant byte address 0x4 - core index']
  #allocation1 [shape = 'u32[144,128]{1,0:T(1,128)}', space=vmem, size = 0x12000, scoped, tag = 'internal scratch']
  %s0 = inlined_call_operand.vmem [shape: bf16[2,8,8,128], index: 0, kind: input, shape index: {}]
  %s1 = inlined_call_operand.vmem [shape: bf16[2,8,8,16], index: 1, kind: input, shape index: {}]
  %s2 = inlined_call_operand.vmem [shape: f32[1,128], index: 2, kind: input, shape index: {}]
  %s3 = inlined_call_operand.vmem [shape: f32[1,128], index: 3, kind: input, shape index: {}]
  %s4 = inlined_call_operand.vmem [shape: bf16[128,128], index: 4, kind: input, shape index: {}]
  %s5 = inlined_call_operand.vmem [shape: f32[1,128], index: 5, kind: input, shape index: {}]
  %s6 = inlined_call_operand.vmem [shape: bf16[16,128], index: 6, kind: input, shape index: {}]
  %s7 = inlined_call_operand.vmem [shape: f32[1,128], index: 7, kind: input, shape index: {}]
  %s8 = inlined_call_operand.vmem [shape: f32[2,8,8,128], index: 8, kind: output, shape index: {}]
  %s9 = sld [smem:[#allocation0]]
  $region65: #{conv_block_forward.7} parent=0
    _
  %s11 = ssub.s32 1, %s9
  %s12 = scalar_select 0, %s11, %s9
  loop: start=0, step=1, limit=4
  $region2: #{conv_block_forward.7} parent=0 // loop_pre_header
    _
  $region3: #{conv_block_forward.7} parent=0 // loop_header
    %s14 = sphi 0, %s18
    %p15 = scmp.ge.s32.totalorder %s14, 4
    %s21 = sphi 0, %s33
    %s22 = sphi 0, %s29
    %s23 = sphi 0, %s21
    %s24 = sphi 0, %s22
    %s25 = sphi 0, %s23
    %s26 = sphi 0, %s24
    %s38 = sphi 0, %s40
    %s41 = sphi 0, %s38
    %s42 = sphi 0, %s41
    %s58 = sphi 0, %s42
    %s66 = sphi 0, %s68
    %s69 = sphi 0, %s66
    %s70 = sphi 0, %s69
    %s86 = sphi 0, %s70
    %s90 = sphi 0, %s90
    %s92 = sphi 0, %s90
    %s93 = sphi 0, %s92
    %s107 = sphi 0, %s93
    %s111 = sphi 0, %s111
    %s113 = sphi 0, %s111
    %s114 = sphi 0, %s113
    %s128 = sphi 0, %s114
    %s132 = sphi 0, %s132
    %s134 = sphi 0, %s132
    %s135 = sphi 0, %s134
    %s149 = sphi 0, %s135
    %s153 = sphi 0, %s153
    %s155 = sphi 0, %s153
    %s156 = sphi 0, %s155
    %s170 = sphi 0, %s156
    %s174 = sphi 0, %s174
    %s176 = sphi 0, %s174
    %s177 = sphi 0, %s176
    %s191 = sphi 0, %s177
    %s195 = sphi 0, %s195
    %s197 = sphi 0, %s195
    %s198 = sphi 0, %s197
    %s212 = sphi 0, %s198
    %s220 = sphi 0, %s222
    %s223 = sphi 0, %s220
    %s224 = sphi 0, %s223
    %s240 = sphi 0, %s224
  $region4: #{conv_block_forward.7} parent=0 // loop_header_branch
    %17 = sbr.rel (%p15) target = $region8
  $region5: #{conv_block_forward.7} parent=0 // loop_body
    %s19 = ssub.s32 %s14, 1
    %s20 = ssub.s32 %s14, 2
    %s27 = sadd.s32 1, %s22
    %p28 = scmp.ge.s32.totalorder %s27, 1
    %s29 = scalar_select %p28, 0, %s27
    %s30 = sadd.s32 1, %s21
    %s31 = scalar_select %p28, %s30, %s21
    %p32 = scmp.ge.s32.totalorder %s31, 2
    %s33 = scalar_select %p32, 0, %s31
    %s34 = ssub.s32 %s21, %s33
    %s35 = ssub.s32 %s22, %s29
    %s36 = sor.u32 %s34, %s35
    %p37 = scmp.eq.s32.totalorder %s36, 0
    %s39 = sadd.s32 %s38, 1
    %s40 = scalar_select %p37, %s38, %s39
    %p43 = pneg %p37
    %p44 = scmp.eq.s32.totalorder %s14, 1
    %p45 = por %p43, %p44
    %p46 = scmp.ne.s32.totalorder %s38, %s41
    %p47 = scmp.eq.s32.totalorder %s14, 0
    %p48 = por %p46, %p47
    %p49 = scmp.ne.s32.totalorder %s38, %s41
    %p50 = scmp.eq.s32.totalorder %s19, 1
    %p51 = por %p49, %p50
    %p52 = scmp.ne.s32.totalorder %s41, %s42
    %p53 = scmp.eq.s32.totalorder %s19, 0
    %p54 = por %p52, %p53
    %p55 = scmp.ne.s32.totalorder %s41, %s42
    %p56 = scmp.eq.s32.totalorder %s20, 1
    %p57 = por %p55, %p56
    %p59 = scmp.ne.s32.totalorder %s42, %s58
    %p60 = scmp.eq.s32.totalorder %s20, 0
    %p61 = por %p59, %p60
    %s62 = ssub.s32 %s21, %s33
    %s63 = ssub.s32 %s22, %s29
    %s64 = sor.u32 %s62, %s63
    %p65 = scmp.eq.s32.totalorder %s64, 0
    %s67 = sadd.s32 %s66, 1
    %s68 = scalar_select %p65, %s66, %s67
    %p71 = pneg %p65
    %p72 = scmp.eq.s32.totalorder %s14, 1
    %p73 = por %p71, %p72
    %p74 = scmp.ne.s32.totalorder %s66, %s69
    %p75 = scmp.eq.s32.totalorder %s14, 0
    %p76 = por %p74, %p75
    %p77 = scmp.ne.s32.totalorder %s66, %s69
    %p78 = scmp.eq.s32.totalorder %s19, 1
    %p79 = por %p77, %p78
    %p80 = scmp.ne.s32.totalorder %s69, %s70
    %p81 = scmp.eq.s32.totalorder %s19, 0
    %p82 = por %p80, %p81
    %p83 = scmp.ne.s32.totalorder %s69, %s70
    %p84 = scmp.eq.s32.totalorder %s20, 1
    %p85 = por %p83, %p84
    %p87 = scmp.ne.s32.totalorder %s70, %s86
    %p88 = scmp.eq.s32.totalorder %s20, 0
    %p89 = por %p87, %p88
    %s91 = sadd.s32 %s90, 1
    %p94 = scmp.eq.s32.totalorder %s14, 1
    %p95 = scmp.ne.s32.totalorder %s90, %s92
    %p96 = scmp.eq.s32.totalorder %s14, 0
    %p97 = por %p95, %p96
    %p98 = scmp.ne.s32.totalorder %s90, %s92
    %p99 = scmp.eq.s32.totalorder %s19, 1
    %p100 = por %p98, %p99
    %p101 = scmp.ne.s32.totalorder %s92, %s93
    %p102 = scmp.eq.s32.totalorder %s19, 0
    %p103 = por %p101, %p102
    %p104 = scmp.ne.s32.totalorder %s92, %s93
    %p105 = scmp.eq.s32.totalorder %s20, 1
    %p106 = por %p104, %p105
    %p108 = scmp.ne.s32.totalorder %s93, %s107
    %p109 = scmp.eq.s32.totalorder %s20, 0
    %p110 = por %p108, %p109
    %s112 = sadd.s32 %s111, 1
    %p115 = scmp.eq.s32.totalorder %s14, 1
    %p116 = scmp.ne.s32.totalorder %s111, %s113
    %p117 = scmp.eq.s32.totalorder %s14, 0
    %p118 = por %p116, %p117
    %p119 = scmp.ne.s32.totalorder %s111, %s113
    %p120 = scmp.eq.s32.totalorder %s19, 1
    %p121 = por %p119, %p120
    %p122 = scmp.ne.s32.totalorder %s113, %s114
    %p123 = scmp.eq.s32.totalorder %s19, 0
    %p124 = por %p122, %p123
    %p125 = scmp.ne.s32.totalorder %s113, %s114
    %p126 = scmp.eq.s32.totalorder %s20, 1
    %p127 = por %p125, %p126
    %p129 = scmp.ne.s32.totalorder %s114, %s128
    %p130 = scmp.eq.s32.totalorder %s20, 0
    %p131 = por %p129, %p130
    %s133 = sadd.s32 %s132, 1
    %p136 = scmp.eq.s32.totalorder %s14, 1
    %p137 = scmp.ne.s32.totalorder %s132, %s134
    %p138 = scmp.eq.s32.totalorder %s14, 0
    %p139 = por %p137, %p138
    %p140 = scmp.ne.s32.totalorder %s132, %s134
    %p141 = scmp.eq.s32.totalorder %s19, 1
    %p142 = por %p140, %p141
    %p143 = scmp.ne.s32.totalorder %s134, %s135
    %p144 = scmp.eq.s32.totalorder %s19, 0
    %p145 = por %p143, %p144
    %p146 = scmp.ne.s32.totalorder %s134, %s135
    %p147 = scmp.eq.s32.totalorder %s20, 1
    %p148 = por %p146, %p147
    %p150 = scmp.ne.s32.totalorder %s135, %s149
    %p151 = scmp.eq.s32.totalorder %s20, 0
    %p152 = por %p150, %p151
    %s154 = sadd.s32 %s153, 1
    %p157 = scmp.eq.s32.totalorder %s14, 1
    %p158 = scmp.ne.s32.totalorder %s153, %s155
    %p159 = scmp.eq.s32.totalorder %s14, 0
    %p160 = por %p158, %p159
    %p161 = scmp.ne.s32.totalorder %s153, %s155
    %p162 = scmp.eq.s32.totalorder %s19, 1
    %p163 = por %p161, %p162
    %p164 = scmp.ne.s32.totalorder %s155, %s156
    %p165 = scmp.eq.s32.totalorder %s19, 0
    %p166 = por %p164, %p165
    %p167 = scmp.ne.s32.totalorder %s155, %s156
    %p168 = scmp.eq.s32.totalorder %s20, 1
    %p169 = por %p167, %p168
    %p171 = scmp.ne.s32.totalorder %s156, %s170
    %p172 = scmp.eq.s32.totalorder %s20, 0
    %p173 = por %p171, %p172
    %s175 = sadd.s32 %s174, 1
    %p178 = scmp.eq.s32.totalorder %s14, 1
    %p179 = scmp.ne.s32.totalorder %s174, %s176
    %p180 = scmp.eq.s32.totalorder %s14, 0
    %p181 = por %p179, %p180
    %p182 = scmp.ne.s32.totalorder %s174, %s176
    %p183 = scmp.eq.s32.totalorder %s19, 1
    %p184 = por %p182, %p183
    %p185 = scmp.ne.s32.totalorder %s176, %s177
    %p186 = scmp.eq.s32.totalorder %s19, 0
    %p187 = por %p185, %p186
    %p188 = scmp.ne.s32.totalorder %s176, %s177
    %p189 = scmp.eq.s32.totalorder %s20, 1
    %p190 = por %p188, %p189
    %p192 = scmp.ne.s32.totalorder %s177, %s191
    %p193 = scmp.eq.s32.totalorder %s20, 0
    %p194 = por %p192, %p193
    %s196 = sadd.s32 %s195, 1
    %p199 = scmp.eq.s32.totalorder %s14, 1
    %p200 = scmp.ne.s32.totalorder %s195, %s197
    %p201 = scmp.eq.s32.totalorder %s14, 0
    %p202 = por %p200, %p201
    %p203 = scmp.ne.s32.totalorder %s195, %s197
    %p204 = scmp.eq.s32.totalorder %s19, 1
    %p205 = por %p203, %p204
    %p206 = scmp.ne.s32.totalorder %s197, %s198
    %p207 = scmp.eq.s32.totalorder %s19, 0
    %p208 = por %p206, %p207
    %p209 = scmp.ne.s32.totalorder %s197, %s198
    %p210 = scmp.eq.s32.totalorder %s20, 1
    %p211 = por %p209, %p210
    %p213 = scmp.ne.s32.totalorder %s198, %s212
    %p214 = scmp.eq.s32.totalorder %s20, 0
    %p215 = por %p213, %p214
    %s216 = ssub.s32 %s21, %s33
    %s217 = ssub.s32 %s22, %s29
    %s218 = sor.u32 %s216, %s217
    %p219 = scmp.eq.s32.totalorder %s218, 0
    %s221 = sadd.s32 %s220, 1
    %s222 = scalar_select %p219, %s220, %s221
    %p225 = pneg %p219
    %p226 = scmp.eq.s32.totalorder %s14, 1
    %p227 = por %p225, %p226
    %p228 = scmp.ne.s32.totalorder %s220, %s223
    %p229 = scmp.eq.s32.totalorder %s14, 0
    %p230 = por %p228, %p229
    %p231 = scmp.ne.s32.totalorder %s220, %s223
    %p232 = scmp.eq.s32.totalorder %s19, 1
    %p233 = por %p231, %p232
    %p234 = scmp.ne.s32.totalorder %s223, %s224
    %p235 = scmp.eq.s32.totalorder %s19, 0
    %p236 = por %p234, %p235
    %p237 = scmp.ne.s32.totalorder %s223, %s224
    %p238 = scmp.eq.s32.totalorder %s20, 1
    %p239 = por %p237, %p238
    %p241 = scmp.ne.s32.totalorder %s224, %s240
    %p242 = scmp.eq.s32.totalorder %s20, 0
    %p243 = por %p241, %p242
    %p244 = scmp.le.s32.totalorder 1, %s14
    %p245 = scmp.lt.s32.totalorder %s14, 3
    %p246 = pnand %p244, %p245
    %p247 = pneg %p246
    // Predicated region
    $region9: #{conv_block_forward.7} parent=5 // pred_check
      _
    $region10: #{conv_block_forward.7} parent=5 // pred_check_branch
      %249 = sbr.rel (%p246) target = $region12
    $region11: #{conv_block_forward.7} parent=5 // pred_region
      %s250 = ssub.s32 %s14, 1
      // Predicated region
      $region13: #{conv_block_forward.7} parent=11 // pred_check
        %p251 = pneg %p103
      $region14: #{conv_block_forward.7} parent=11 // pred_check_branch
        %253 = sbr.rel (%p251) target = $region16
      $region15: #{conv_block_forward.7} parent=11 // pred_region
        _
      $region16: #{conv_block_forward.7} parent=11 // pred_fallthru
        _
      // Predicated region
      $region17: #{conv_block_forward.7} parent=11 // pred_check
        %p254 = pneg %p124
      $region18: #{conv_block_forward.7} parent=11 // pred_check_branch
        %256 = sbr.rel (%p254) target = $region20
      $region19: #{conv_block_forward.7} parent=11 // pred_region
        _
      $region20: #{conv_block_forward.7} parent=11 // pred_fallthru
        _
      // Predicated region
      $region21: #{conv_block_forward.7} parent=11 // pred_check
        %p257 = pneg %p145
      $region22: #{conv_block_forward.7} parent=11 // pred_check_branch
        %259 = sbr.rel (%p257) target = $region24
      $region23: #{conv_block_forward.7} parent=11 // pred_region
        _
      $region24: #{conv_block_forward.7} parent=11 // pred_fallthru
        _
      // Predicated region
      $region25: #{conv_block_forward.7} parent=11 // pred_check
        %p260 = pneg %p166
      $region26: #{conv_block_forward.7} parent=11 // pred_check_branch
        %262 = sbr.rel (%p260) target = $region28
      $region27: #{conv_block_forward.7} parent=11 // pred_region
        _
      $region28: #{conv_block_forward.7} parent=11 // pred_fallthru
        _
      // Predicated region
      $region29: #{conv_block_forward.7} parent=11 // pred_check
        %p263 = pneg %p187
      $region30: #{conv_block_forward.7} parent=11 // pred_check_branch
        %265 = sbr.rel (%p263) target = $region32
      $region31: #{conv_block_forward.7} parent=11 // pred_region
        _
      $region32: #{conv_block_forward.7} parent=11 // pred_fallthru
        _
      // Predicated region
      $region33: #{conv_block_forward.7} parent=11 // pred_check
        %p266 = pneg %p208
      $region34: #{conv_block_forward.7} parent=11 // pred_check_branch
        %268 = sbr.rel (%p266) target = $region36
      $region35: #{conv_block_forward.7} parent=11 // pred_region
        _
      $region36: #{conv_block_forward.7} parent=11 // pred_fallthru
        _
    $region12: #{conv_block_forward.7} parent=5 // pred_fallthru
      _
    %p269 = scmp.lt.s32.totalorder %s14, 2
    // Predicated region
    $region37: #{conv_block_forward.7} parent=5 // pred_check
      %p270 = pneg %p269
    $region38: #{conv_block_forward.7} parent=5 // pred_check_branch
      %272 = sbr.rel (%p270) target = $region40
    $region39: #{conv_block_forward.7} parent=5 // pred_region
      // Predicated region
      $region41: #{conv_block_forward.7} parent=39 // pred_check
        %p273 = pneg %p48
      $region42: #{conv_block_forward.7} parent=39 // pred_check_branch
        %275 = sbr.rel (%p273) target = $region44
      $region43: #{conv_block_forward.7} parent=39 // pred_region
        %s276 = smul.u32 8, %s22
        %p277 = scmp.lt.s32.totalorder %s21, 1
        %s278 = scalar_select %p277, %s21, 1
        %p279 = scmp.lt.s32.totalorder %s276, 7
        %s280 = scalar_select %p279, %s276, 7
        %s281 = smul.addr %s278, 8
        %s282 = sadd.s32 %s280, %s281
        %s283 = smul.addr %s282, 4
        %s284 = scalar_lea.vmem %s0, %s283
        %s285 = smul.u32 8, %s22
      $region44: #{conv_block_forward.7} parent=39 // pred_fallthru
        _
      // Predicated region
      $region45: #{conv_block_forward.7} parent=39 // pred_check
        %p286 = pneg %p76
      $region46: #{conv_block_forward.7} parent=39 // pred_check_branch
        %288 = sbr.rel (%p286) target = $region48
      $region47: #{conv_block_forward.7} parent=39 // pred_region
        %s289 = smul.u32 8, %s22
        %p290 = scmp.lt.s32.totalorder %s21, 1
        %s291 = scalar_select %p290, %s21, 1
        %p292 = scmp.lt.s32.totalorder %s289, 7
        %s293 = scalar_select %p292, %s289, 7
        %s294 = smul.addr %s291, 8
        %s295 = sadd.s32 %s293, %s294
        %s296 = smul.addr %s295, 4
        %s297 = scalar_lea.vmem %s1, %s296
        %s298 = smul.u32 8, %s22
      $region48: #{conv_block_forward.7} parent=39 // pred_fallthru
        _
    $region40: #{conv_block_forward.7} parent=5 // pred_fallthru
      _
    %p299 = scmp.le.s32.totalorder 1, %s14
    %p300 = scmp.lt.s32.totalorder %s14, 3
    %p301 = pnand %p299, %p300
    %p302 = pneg %p301
    // Predicated region
    $region49: #{conv_block_forward.7} parent=5 // pred_check
      _
    $region50: #{conv_block_forward.7} parent=5 // pred_check_branch
      %304 = sbr.rel (%p301) target = $region52
    $region51: #{conv_block_forward.7} parent=5 // pred_region
      %s305 = ssub.s32 %s14, 1
      %s306 = smul.u32 8, %s24
      %p307 = scmp.lt.s32.totalorder %s23, 1
      %s308 = scalar_select %p307, %s23, 1
      %p309 = scmp.lt.s32.totalorder %s306, 7
      %s310 = scalar_select %p309, %s306, 7
      %s311 = smul.addr %s308, 8
      %s312 = sadd.s32 %s310, %s311
      %s313 = smul.addr %s312, 4
      %s314 = scalar_lea.vmem %s0, %s313
      %p315 = pneg %p54
      %p316 = pneg %p51
      %s317 = smul.u32 8, %s24
      %p318 = scmp.lt.s32.totalorder %s23, 1
      %s319 = scalar_select %p318, %s23, 1
      %p320 = scmp.lt.s32.totalorder %s317, 7
      %s321 = scalar_select %p320, %s317, 7
      %s322 = smul.addr %s319, 8
      %s323 = sadd.s32 %s321, %s322
      %s324 = smul.addr %s323, 4
      %s325 = scalar_lea.vmem %s1, %s324
      %p326 = pneg %p82
      %p327 = pneg %p79
      %p328 = pneg %p103
      %p329 = pneg %p100
      %p330 = pneg %p124
      %p331 = pneg %p121
      %p332 = pneg %p145
      %p333 = pneg %p142
      %p334 = pneg %p166
      %p335 = pneg %p163
      %p336 = pneg %p187
      %p337 = pneg %p184
      %p338 = pneg %p208
      %p339 = pneg %p205
      %p340 = pneg %p236
      %p341 = pneg %p233
      %s342 = smul.u32 8, %s24
      %p343 = scmp.lt.s32.totalorder %s23, 1
      %s344 = scalar_select %p343, %s23, 1
      %p345 = scmp.lt.s32.totalorder %s342, 7
      %s346 = scalar_select %p345, %s342, 7
      %s347 = smul.addr %s344, 8
      %s348 = sadd.s32 %s346, %s347
      %s349 = smul.addr %s348, 8
      %s350 = scalar_lea.vmem %s8, %s349
      %s351 = smul.u32 8, %s24
      %p352 = scmp.lt.s32.totalorder %s23, 1
      %s353 = scalar_select %p352, %s23, 1
      %p354 = scmp.lt.s32.totalorder %s351, 7
      %s355 = scalar_select %p354, %s351, 7
      %s356 = smul.addr %s353, 8
      %s357 = sadd.s32 %s355, %s356
      %s358 = smul.addr %s357, 4
      %s359 = scalar_lea.vmem %s0, %s358
      %s360 = smul.u32 8, %s24
      %s361 = smul.u32 8, %s24
      %p362 = scmp.lt.s32.totalorder %s23, 1
      %s363 = scalar_select %p362, %s23, 1
      %p364 = scmp.lt.s32.totalorder %s361, 7
      %s365 = scalar_select %p364, %s361, 7
      %s366 = smul.addr %s363, 8
      %s367 = sadd.s32 %s365, %s366
      %s368 = smul.addr %s367, 4
      %s369 = scalar_lea.vmem %s1, %s368
      %s370 = smul.u32 8, %s24
      %s371 = smul.u32 8, %s24
      %p372 = scmp.lt.s32.totalorder %s23, 1
      %s373 = scalar_select %p372, %s23, 1
      %p374 = scmp.lt.s32.totalorder %s371, 7
      %s375 = scalar_select %p374, %s371, 7
      %s376 = smul.addr %s373, 8
      %s377 = sadd.s32 %s375, %s376
      %s378 = smul.addr %s377, 8
      %s379 = scalar_lea.vmem %s8, %s378
      %s380 = smul.u32 8, %s24
      %v382 = vld [vmem:[%s359] sm:$0xf]
      %v383 = vld [vmem:[%s359 + $0x4] sm:$0xf]
      %v384 = vld [vmem:[%s359 + $0x8] sm:$0xf]
      %v385 = vld [vmem:[%s359 + $0xc] sm:$0xf]
      %v386 = vld [vmem:[%s359 + $0x10] sm:$0xf]
      %v387 = vld [vmem:[%s359 + $0x14] sm:$0xf]
      %v388 = vld [vmem:[%s359 + $0x18] sm:$0xf]
      %v389 = vld [vmem:[%s359 + $0x1c] sm:$0xf]
      %v390 = vunpack.c.l.bf16 %v382
      %v391 = vunpack.c.l.bf16 %v383
      %v392 = vunpack.c.l.bf16 %v384
      %v393 = vunpack.c.l.bf16 %v385
      %v394 = vunpack.c.l.bf16 %v386
      %v395 = vunpack.c.l.bf16 %v387
      %v396 = vunpack.c.l.bf16 %v388
      %v397 = vunpack.c.l.bf16 %v389
      %v398 = vld [vmem:[%s2] sm:$0x1]
      %v400 = vlaneseq
      %v401 = vshrl.u32 %v400, 7
      %v402 = vsub.s32 0, %v401
      %v403 = vrot.slane %v398, %v402
      %v405 = vmul.f32 %v390, %v403
      %v406 = vmul.f32 %v391, %v403
      %v407 = vmul.f32 %v392, %v403
      %v408 = vmul.f32 %v393, %v403
      %v409 = vmul.f32 %v394, %v403
      %v410 = vmul.f32 %v395, %v403
      %v411 = vmul.f32 %v396, %v403
      %v412 = vmul.f32 %v397, %v403
      %v413 = vld [vmem:[%s3] sm:$0x1]
      %v415 = vlaneseq
      %v416 = vshrl.u32 %v415, 7
      %v417 = vsub.s32 0, %v416
      %v418 = vrot.slane %v413, %v417
      %v420 = vadd.f32 %v405, %v418
      %v421 = vadd.f32 %v406, %v418
      %v422 = vadd.f32 %v407, %v418
      %v423 = vadd.f32 %v408, %v418
      %v424 = vadd.f32 %v409, %v418
      %v425 = vadd.f32 %v410, %v418
      %v426 = vadd.f32 %v411, %v418
      %v427 = vadd.f32 %v412, %v418
      %v428 = vmax.f32 %v420, 0.0
      %v429 = vmax.f32 %v421, 0.0
      %v430 = vmax.f32 %v422, 0.0
      %v431 = vmax.f32 %v423, 0.0
      %v432 = vmax.f32 %v424, 0.0
      %v433 = vmax.f32 %v425, 0.0
      %v434 = vmax.f32 %v426, 0.0
      %v435 = vmax.f32 %v427, 0.0
      %v436 = vpack.c.bf16 %v429, %v428
      %v437 = vpack.c.bf16 %v431, %v430
      %v438 = vpack.c.bf16 %v433, %v432
      %v439 = vpack.c.bf16 %v435, %v434
      %v440 = vld [vmem:[%s4] sm:$0xf]
      %v441 = vld [vmem:[%s4 + $0x4] sm:$0xf]
      %v442 = vld [vmem:[%s4 + $0x8] sm:$0xf]
      %v443 = vld [vmem:[%s4 + $0xc] sm:$0xf]
      %v444 = vld [vmem:[%s4 + $0x10] sm:$0xf]
      %v445 = vld [vmem:[%s4 + $0x14] sm:$0xf]
      %v446 = vld [vmem:[%s4 + $0x18] sm:$0xf]
      %v447 = vld [vmem:[%s4 + $0x1c] sm:$0xf]
      %v448 = vld [vmem:[%s4 + $0x20] sm:$0xf]
      %v449 = vld [vmem:[%s4 + $0x24] sm:$0xf]
      %v450 = vld [vmem:[%s4 + $0x28] sm:$0xf]
      %v451 = vld [vmem:[%s4 + $0x2c] sm:$0xf]
      %v452 = vld [vmem:[%s4 + $0x30] sm:$0xf]
      %v453 = vld [vmem:[%s4 + $0x34] sm:$0xf]
      %v454 = vld [vmem:[%s4 + $0x38] sm:$0xf]
      %v455 = vld [vmem:[%s4 + $0x3c] sm:$0xf]
      %v456 = vld [vmem:[%s5] sm:$0x1]
      %v458 = vlaneseq
      %v459 = vshrl.u32 %v458, 7
      %v460 = vsub.s32 0, %v459
      %v461 = vrot.slane %v456, %v460
      %v479 = vunpack.c.l.b16 %v440
      %v480 = vunpack.c.l.b16 %v441
      %v481 = vunpack.c.l.b16 %v442
      %v482 = vunpack.c.l.b16 %v443
      %v483 = vunpack.c.l.b16 %v444
      %v484 = vunpack.c.l.b16 %v445
      %v485 = vunpack.c.l.b16 %v446
      %v486 = vunpack.c.l.b16 %v447
      %v487 = vunpack.c.l.b16 %v448
      %v488 = vunpack.c.l.b16 %v449
      %v489 = vunpack.c.l.b16 %v450
      %v490 = vunpack.c.l.b16 %v451
      %v491 = vunpack.c.l.b16 %v452
      %v492 = vunpack.c.l.b16 %v453
      %v493 = vunpack.c.l.b16 %v454
      %v494 = vunpack.c.l.b16 %v455
      %v495 = vpack.c.b16 %v480, %v479
      %v496 = vpack.c.b16 %v482, %v481
      %v497 = vpack.c.b16 %v484, %v483
      %v498 = vpack.c.b16 %v486, %v485
      %v499 = vpack.c.b16 %v488, %v487
      %v500 = vpack.c.b16 %v490, %v489
      %v501 = vpack.c.b16 %v492, %v491
      %v502 = vpack.c.b16 %v494, %v493
      %511 = vmatprep.subr.bf16.mxu0 0
      %512 = vmatpush1.bf16.msra.mxu0 %v502
      %513 = vmatprep.subr.bf16.mxu0 0
      %514 = vmatpush1.bf16.msra.mxu0 %v501
      %515 = vmatprep.subr.bf16.mxu0 0
      %516 = vmatpush1.bf16.msra.mxu0 %v500
      %517 = vmatprep.subr.bf16.mxu0 0
      %518 = vmatpush1.bf16.msra.mxu0 %v499
      %519 = vmatprep.subr.bf16.mxu0 0
      %520 = vmatpush1.bf16.msra.mxu0 %v498
      %521 = vmatprep.subr.bf16.mxu0 0
      %522 = vmatpush1.bf16.msra.mxu0 %v497
      %523 = vmatprep.subr.bf16.mxu0 0
      %524 = vmatpush1.bf16.msra.mxu0 %v496
      %525 = vmatprep.subr.bf16.mxu0 0
      %526 = vmatpush1.bf16.msra.mxu0 %v495
      %527 = vmatprep.subr.bf16.mxu0 0
      %528 = vmatpush2.bf16.msra.mxu0 0
      %529 = vmatprep.subr.bf16.mxu0 0
      %530 = vmatpush2.bf16.msra.mxu0 0
      %531 = vmatprep.subr.bf16.mxu0 0
      %532 = vmatpush2.bf16.msra.mxu0 0
      %533 = vmatprep.subr.bf16.mxu0 0
      %534 = vmatpush2.bf16.msra.mxu0 0
      %535 = vmatprep.subr.bf16.mxu0 0
      %536 = vmatpush2.bf16.msra.mxu0 0
      %537 = vmatprep.subr.bf16.mxu0 0
      %538 = vmatpush2.bf16.msra.mxu0 0
      %539 = vmatprep.subr.bf16.mxu0 0
      %540 = vmatpush2.bf16.msra.mxu0 0
      %541 = vmatprep.subr.bf16.mxu0 0
      %542 = vmatpush2.bf16.msra.mxu0 0
      %543 = vmatprep.mubr.bf16.mxu0 0
      %544 = vmatmul.mubr.bf16.gmra.mxu0 %v436
      %v545 = vpop.f32.mrf.mxu0
      %v546 = vadd.f32 %v461, %v545
      %v547 = vpop.f32.mrf.mxu0
      %v548 = vpop.f32.mrf.mxu0
      %v549 = vadd.f32 %v461, %v548
      %v550 = vpop.f32.mrf.mxu0
      %551 = vmatprep.mubr.bf16.mxu0 0
      %552 = vmatmul.mubr.bf16.gmra.mxu0 %v437
      %v553 = vpop.f32.mrf.mxu0
      %v554 = vadd.f32 %v461, %v553
      %v555 = vpop.f32.mrf.mxu0
      %v556 = vpop.f32.mrf.mxu0
      %v557 = vadd.f32 %v461, %v556
      %v558 = vpop.f32.mrf.mxu0
      %559 = vmatprep.mubr.bf16.mxu0 0
      %560 = vmatmul.mubr.bf16.gmra.mxu0 %v438
      %v561 = vpop.f32.mrf.mxu0
      %v562 = vadd.f32 %v461, %v561
      %v563 = vpop.f32.mrf.mxu0
      %v564 = vpop.f32.mrf.mxu0
      %v565 = vadd.f32 %v461, %v564
      %v566 = vpop.f32.mrf.mxu0
      %567 = vmatprep.mubr.bf16.mxu0 0
      %568 = vmatmul.mubr.bf16.gmra.mxu0 %v439
      %v569 = vpop.f32.mrf.mxu0
      %v570 = vadd.f32 %v461, %v569
      %v571 = vpop.f32.mrf.mxu0
      %v572 = vpop.f32.mrf.mxu0
      %v573 = vadd.f32 %v461, %v572
      %v574 = vpop.f32.mrf.mxu0
      %575 = vdwg.mxu0
      %v576 = vld [vmem:[%s369] sm:$0xf]
      %v577 = vld [vmem:[%s369 + $0x4] sm:$0xf]
      %v578 = vld [vmem:[%s369 + $0x8] sm:$0xf]
      %v579 = vld [vmem:[%s369 + $0xc] sm:$0xf]
      %v580 = vld [vmem:[%s369 + $0x10] sm:$0xf]
      %v581 = vld [vmem:[%s369 + $0x14] sm:$0xf]
      %v582 = vld [vmem:[%s369 + $0x18] sm:$0xf]
      %v583 = vld [vmem:[%s369 + $0x1c] sm:$0xf]
      %v584 = vld [vmem:[%s6] sm:$0xf]
      %v585 = vld [vmem:[%s6 + $0x4] sm:$0xf]
      %v586 = vld [vmem:[%s7] sm:$0x1]
      %v588 = vlaneseq
      %v589 = vshrl.u32 %v588, 7
      %v590 = vsub.s32 0, %v589
      %v591 = vrot.slane %v586, %v590
      %v601 = vunpack.c.l.b16 %v576
      %v602 = vunpack.c.l.b16 %v577
      %v603 = vunpack.c.l.b16 %v578
      %v604 = vunpack.c.l.b16 %v579
      %v605 = vunpack.c.l.b16 %v580
      %v606 = vunpack.c.l.b16 %v581
      %v607 = vunpack.c.l.b16 %v582
      %v608 = vunpack.c.l.b16 %v583
      %v609 = vpack.c.b16 %v602, %v601
      %v610 = vpack.c.b16 %v604, %v603
      %v611 = vpack.c.b16 %v606, %v605
      %v612 = vpack.c.b16 %v608, %v607
      %v615 = vunpack.c.l.b16 %v584
      %v616 = vunpack.c.l.b16 %v585
      %v617 = vpack.c.b16 %v616, %v615
      %vm619 = vcmask 130048
      %v621 = vsel %vm619, %v609, 0
      %v624 = vsel %vm619, %v610, 0
      %v627 = vsel %vm619, %v611, 0
      %v630 = vsel %vm619, %v612, 0
      %632 = vmatprep.subr.bf16.mxu0 0
      %633 = vmatpush1.bf16.msra.mxu0 0
      %634 = vmatprep.subr.bf16.mxu0 0
      %635 = vmatpush1.bf16.msra.mxu0 0
      %636 = vmatprep.subr.bf16.mxu0 0
      %637 = vmatpush1.bf16.msra.mxu0 0
      %638 = vmatprep.subr.bf16.mxu0 0
      %639 = vmatpush1.bf16.msra.mxu0 0
      %640 = vmatprep.subr.bf16.mxu0 0
      %641 = vmatpush1.bf16.msra.mxu0 0
      %642 = vmatprep.subr.bf16.mxu0 0
      %643 = vmatpush1.bf16.msra.mxu0 0
      %644 = vmatprep.subr.bf16.mxu0 0
      %645 = vmatpush1.bf16.msra.mxu0 0
      %646 = vmatprep.subr.bf16.mxu0 0
      %647 = vmatpush1.bf16.msra.mxu0 %v617
      %648 = vmatprep.subr.bf16.mxu0 0
      %649 = vmatpush2.bf16.msra.mxu0 0
      %650 = vmatprep.subr.bf16.mxu0 0
      %651 = vmatpush2.bf16.msra.mxu0 0
      %652 = vmatprep.subr.bf16.mxu0 0
      %653 = vmatpush2.bf16.msra.mxu0 0
      %654 = vmatprep.subr.bf16.mxu0 0
      %655 = vmatpush2.bf16.msra.mxu0 0
      %656 = vmatprep.subr.bf16.mxu0 0
      %657 = vmatpush2.bf16.msra.mxu0 0
      %658 = vmatprep.subr.bf16.mxu0 0
      %659 = vmatpush2.bf16.msra.mxu0 0
      %660 = vmatprep.subr.bf16.mxu0 0
      %661 = vmatpush2.bf16.msra.mxu0 0
      %662 = vmatprep.subr.bf16.mxu0 0
      %663 = vmatpush2.bf16.msra.mxu0 0
      %664 = vmatprep.mubr.bf16.mxu0 0
      %665 = vmatmul.mubr.bf16.gmra.mxu0 %v621
      %v666 = vpop.f32.mrf.mxu0
      %v667 = vadd.f32 %v591, %v666
      %v668 = vpop.f32.mrf.mxu0
      %v669 = vpop.f32.mrf.mxu0
      %v670 = vadd.f32 %v591, %v669
      %v671 = vpop.f32.mrf.mxu0
      %672 = vmatprep.mubr.bf16.mxu0 0
      %673 = vmatmul.mubr.bf16.gmra.mxu0 %v624
      %v674 = vpop.f32.mrf.mxu0
      %v675 = vadd.f32 %v591, %v674
      %v676 = vpop.f32.mrf.mxu0
      %v677 = vpop.f32.mrf.mxu0
      %v678 = vadd.f32 %v591, %v677
      %v679 = vpop.f32.mrf.mxu0
      %680 = vmatprep.mubr.bf16.mxu0 0
      %681 = vmatmul.mubr.bf16.gmra.mxu0 %v627
      %v682 = vpop.f32.mrf.mxu0
      %v683 = vadd.f32 %v591, %v682
      %v684 = vpop.f32.mrf.mxu0
      %v685 = vpop.f32.mrf.mxu0
      %v686 = vadd.f32 %v591, %v685
      %v687 = vpop.f32.mrf.mxu0
      %688 = vmatprep.mubr.bf16.mxu0 0
      %689 = vmatmul.mubr.bf16.gmra.mxu0 %v630
      %v690 = vpop.f32.mrf.mxu0
      %v691 = vadd.f32 %v591, %v690
      %v692 = vpop.f32.mrf.mxu0
      %v693 = vpop.f32.mrf.mxu0
      %v694 = vadd.f32 %v591, %v693
      %v695 = vpop.f32.mrf.mxu0
      %696 = vdwg.mxu0
      %v697 = vadd.f32 %v546, %v667
      %v698 = vadd.f32 %v549, %v670
      %v699 = vadd.f32 %v554, %v675
      %v700 = vadd.f32 %v557, %v678
      %v701 = vadd.f32 %v562, %v683
      %v702 = vadd.f32 %v565, %v686
      %v703 = vadd.f32 %v570, %v691
      %v704 = vadd.f32 %v573, %v694
      %v705 = vmax.f32 %v697, 0.0
      %v706 = vmax.f32 %v698, 0.0
      %v707 = vmax.f32 %v699, 0.0
      %v708 = vmax.f32 %v700, 0.0
      %v709 = vmax.f32 %v701, 0.0
      %v710 = vmax.f32 %v702, 0.0
      %v711 = vmax.f32 %v703, 0.0
      %v712 = vmax.f32 %v704, 0.0
      %713 = vst [vmem:[%s379] sm:$0xff] %v705
      %714 = vst [vmem:[%s379 + $0x8] sm:$0xff] %v706
      %715 = vst [vmem:[%s379 + $0x10] sm:$0xff] %v707
      %716 = vst [vmem:[%s379 + $0x18] sm:$0xff] %v708
      %717 = vst [vmem:[%s379 + $0x20] sm:$0xff] %v709
      %718 = vst [vmem:[%s379 + $0x28] sm:$0xff] %v710
      %719 = vst [vmem:[%s379 + $0x30] sm:$0xff] %v711
      %720 = vst [vmem:[%s379 + $0x38] sm:$0xff] %v712
      %s721 = smul.u32 8, %s24
      %p722 = scmp.lt.s32.totalorder %s23, 1
      %s723 = scalar_select %p722, %s23, 1
      %p724 = scmp.lt.s32.totalorder %s721, 7
      %s725 = scalar_select %p724, %s721, 7
      %s726 = smul.addr %s723, 8
      %s727 = sadd.s32 %s725, %s726
      %s728 = smul.addr %s727, 8
      %s729 = scalar_lea.vmem %s8, %s728
      // Predicated region
      $region53: #{conv_block_forward.7} parent=51 // pred_check
        %p730 = pneg %p233
      $region54: #{conv_block_forward.7} parent=51 // pred_check_branch
        %732 = sbr.rel (%p730) target = $region56
      $region55: #{conv_block_forward.7} parent=51 // pred_region
        %s733 = smul.u32 8, %s24
      $region56: #{conv_block_forward.7} parent=51 // pred_fallthru
        _
    $region52: #{conv_block_forward.7} parent=5 // pred_fallthru
      _
    %p734 = scmp.le.s32.totalorder 2, %s14
    // Predicated region
    $region57: #{conv_block_forward.7} parent=5 // pred_check
      %p735 = pneg %p734
    $region58: #{conv_block_forward.7} parent=5 // pred_check_branch
      %737 = sbr.rel (%p735) target = $region60
    $region59: #{conv_block_forward.7} parent=5 // pred_region
      %s738 = ssub.s32 %s14, 2
      // Predicated region
      $region61: #{conv_block_forward.7} parent=59 // pred_check
        %p739 = pneg %p239
      $region62: #{conv_block_forward.7} parent=59 // pred_check_branch
        %741 = sbr.rel (%p739) target = $region64
      $region63: #{conv_block_forward.7} parent=59 // pred_region
        %s742 = smul.u32 8, %s26
        %p743 = scmp.lt.s32.totalorder %s25, 1
        %s744 = scalar_select %p743, %s25, 1
        %p745 = scmp.lt.s32.totalorder %s742, 7
        %s746 = scalar_select %p745, %s742, 7
        %s747 = smul.addr %s744, 8
        %s748 = sadd.s32 %s746, %s747
        %s749 = smul.addr %s748, 8
        %s750 = scalar_lea.vmem %s8, %s749
      $region64: #{conv_block_forward.7} parent=59 // pred_fallthru
        _
    $region60: #{conv_block_forward.7} parent=5 // pred_fallthru
      _
  $region6: #{conv_block_forward.7} parent=0 // loop_footer
    %s18 = sadd.s32 1, %s14
  $region7: #{conv_block_forward.7} parent=0 // loop_footer_branch
    %13 = sbr.rel target = $region3
  $region8: #{conv_block_forward.7} parent=0 // loop_exit
    _

// kernel: conv_block_forward.5
$region0: #{conv_block_forward.5}
  #allocation0 [shape = 'u32[]', space=smem, size = 0x4, offset = 0x4, fixed_abs, tag = 'smem constant byte address 0x4 - core index']
  #allocation1 [shape = 'u32[144,128]{1,0:T(1,128)}', space=vmem, size = 0x12000, scoped, tag = 'internal scratch']
  #allocation2 [shape = 'f32[10,10,16]{2,1,0:T(8,128)}', space=vmem, size = 0x14000, scoped, tag = 'scratch operand']
  #allocation3 [shape = 'f32[64,128]{1,0:T(8,128)}', space=vmem, size = 0x8000, scoped, tag = 'scratch operand']
  %s0 = inlined_call_operand.vmem [shape: bf16[2,8,8,16], index: 0, kind: input, shape index: {}]
  %s1 = inlined_call_operand.vmem [shape: bf16[16,16], index: 1, kind: input, shape index: {}]
  %s2 = inlined_call_operand.vmem [shape: f32[1,16], index: 2, kind: input, shape index: {}]
  %s3 = inlined_call_operand.vmem [shape: bf16[144,128], index: 3, kind: input, shape index: {}]
  %s4 = inlined_call_operand.vmem [shape: bf16[2,8,8,128], index: 4, kind: output, shape index: {0}]
  %s5 = inlined_call_operand.vmem [shape: f32[2,2,128], index: 5, kind: output, shape index: {1}]
  %6 = xla_tuple %s4, %s5
  %s7 = sld [smem:[#allocation0]]
  $region57: #{conv_block_forward.5} parent=0
    _
  %s9 = ssub.s32 1, %s7
  %s10 = scalar_select 0, %s9, %s7
  loop: start=0, step=1, limit=4
  $region2: #{conv_block_forward.5} parent=0 // loop_pre_header
    _
  $region3: #{conv_block_forward.5} parent=0 // loop_header
    %s12 = sphi 0, %s16
    %p13 = scmp.ge.s32.totalorder %s12, 4
    %s22 = sphi 0, %s24
    %s25 = sphi 0, %s22
    %s26 = sphi 0, %s25
    %s42 = sphi 0, %s26
    %s46 = sphi 0, %s46
    %s48 = sphi 0, %s46
    %s49 = sphi 0, %s48
    %s63 = sphi 0, %s49
    %s67 = sphi 0, %s67
    %s69 = sphi 0, %s67
    %s70 = sphi 0, %s69
    %s84 = sphi 0, %s70
    %s88 = sphi 0, %s88
    %s90 = sphi 0, %s88
    %s91 = sphi 0, %s90
    %s105 = sphi 0, %s91
    %s111 = sphi 0, %s113
    %s114 = sphi 0, %s111
    %s115 = sphi 0, %s114
    %s131 = sphi 0, %s115
    %s137 = sphi 0, %s139
    %s140 = sphi 0, %s137
    %s141 = sphi 0, %s140
    %s157 = sphi 0, %s141
  $region4: #{conv_block_forward.5} parent=0 // loop_header_branch
    %15 = sbr.rel (%p13) target = $region8
  $region5: #{conv_block_forward.5} parent=0 // loop_body
    %s17 = ssub.s32 %s12, 1
    %s18 = ssub.s32 %s12, 2
    %s19 = sadd.s32 %s12, 1
    %s20 = ssub.s32 %s12, %s19
    %p21 = scmp.eq.s32.totalorder %s20, 0
    %s23 = sadd.s32 %s22, 1
    %s24 = scalar_select %p21, %s22, %s23
    %p27 = pneg %p21
    %p28 = scmp.eq.s32.totalorder %s12, 1
    %p29 = por %p27, %p28
    %p30 = scmp.ne.s32.totalorder %s22, %s25
    %p31 = scmp.eq.s32.totalorder %s12, 0
    %p32 = por %p30, %p31
    %p33 = scmp.ne.s32.totalorder %s22, %s25
    %p34 = scmp.eq.s32.totalorder %s17, 1
    %p35 = por %p33, %p34
    %p36 = scmp.ne.s32.totalorder %s25, %s26
    %p37 = scmp.eq.s32.totalorder %s17, 0
    %p38 = por %p36, %p37
    %p39 = scmp.ne.s32.totalorder %s25, %s26
    %p40 = scmp.eq.s32.totalorder %s18, 1
    %p41 = por %p39, %p40
    %p43 = scmp.ne.s32.totalorder %s26, %s42
    %p44 = scmp.eq.s32.totalorder %s18, 0
    %p45 = por %p43, %p44
    %s47 = sadd.s32 %s46, 1
    %p50 = scmp.eq.s32.totalorder %s12, 1
    %p51 = scmp.ne.s32.totalorder %s46, %s48
    %p52 = scmp.eq.s32.totalorder %s12, 0
    %p53 = por %p51, %p52
    %p54 = scmp.ne.s32.totalorder %s46, %s48
    %p55 = scmp.eq.s32.totalorder %s17, 1
    %p56 = por %p54, %p55
    %p57 = scmp.ne.s32.totalorder %s48, %s49
    %p58 = scmp.eq.s32.totalorder %s17, 0
    %p59 = por %p57, %p58
    %p60 = scmp.ne.s32.totalorder %s48, %s49
    %p61 = scmp.eq.s32.totalorder %s18, 1
    %p62 = por %p60, %p61
    %p64 = scmp.ne.s32.totalorder %s49, %s63
    %p65 = scmp.eq.s32.totalorder %s18, 0
    %p66 = por %p64, %p65
    %s68 = sadd.s32 %s67, 1
    %p71 = scmp.eq.s32.totalorder %s12, 1
    %p72 = scmp.ne.s32.totalorder %s67, %s69
    %p73 = scmp.eq.s32.totalorder %s12, 0
    %p74 = por %p72, %p73
    %p75 = scmp.ne.s32.totalorder %s67, %s69
    %p76 = scmp.eq.s32.totalorder %s17, 1
    %p77 = por %p75, %p76
    %p78 = scmp.ne.s32.totalorder %s69, %s70
    %p79 = scmp.eq.s32.totalorder %s17, 0
    %p80 = por %p78, %p79
    %p81 = scmp.ne.s32.totalorder %s69, %s70
    %p82 = scmp.eq.s32.totalorder %s18, 1
    %p83 = por %p81, %p82
    %p85 = scmp.ne.s32.totalorder %s70, %s84
    %p86 = scmp.eq.s32.totalorder %s18, 0
    %p87 = por %p85, %p86
    %s89 = sadd.s32 %s88, 1
    %p92 = scmp.eq.s32.totalorder %s12, 1
    %p93 = scmp.ne.s32.totalorder %s88, %s90
    %p94 = scmp.eq.s32.totalorder %s12, 0
    %p95 = por %p93, %p94
    %p96 = scmp.ne.s32.totalorder %s88, %s90
    %p97 = scmp.eq.s32.totalorder %s17, 1
    %p98 = por %p96, %p97
    %p99 = scmp.ne.s32.totalorder %s90, %s91
    %p100 = scmp.eq.s32.totalorder %s17, 0
    %p101 = por %p99, %p100
    %p102 = scmp.ne.s32.totalorder %s90, %s91
    %p103 = scmp.eq.s32.totalorder %s18, 1
    %p104 = por %p102, %p103
    %p106 = scmp.ne.s32.totalorder %s91, %s105
    %p107 = scmp.eq.s32.totalorder %s18, 0
    %p108 = por %p106, %p107
    %s109 = ssub.s32 %s12, %s19
    %p110 = scmp.eq.s32.totalorder %s109, 0
    %s112 = sadd.s32 %s111, 1
    %s113 = scalar_select %p110, %s111, %s112
    %p116 = pneg %p110
    %p117 = scmp.eq.s32.totalorder %s12, 1
    %p118 = por %p116, %p117
    %p119 = scmp.ne.s32.totalorder %s111, %s114
    %p120 = scmp.eq.s32.totalorder %s12, 0
    %p121 = por %p119, %p120
    %p122 = scmp.ne.s32.totalorder %s111, %s114
    %p123 = scmp.eq.s32.totalorder %s17, 1
    %p124 = por %p122, %p123
    %p125 = scmp.ne.s32.totalorder %s114, %s115
    %p126 = scmp.eq.s32.totalorder %s17, 0
    %p127 = por %p125, %p126
    %p128 = scmp.ne.s32.totalorder %s114, %s115
    %p129 = scmp.eq.s32.totalorder %s18, 1
    %p130 = por %p128, %p129
    %p132 = scmp.ne.s32.totalorder %s115, %s131
    %p133 = scmp.eq.s32.totalorder %s18, 0
    %p134 = por %p132, %p133
    %s135 = ssub.s32 %s12, %s19
    %p136 = scmp.eq.s32.totalorder %s135, 0
    %s138 = sadd.s32 %s137, 1
    %s139 = scalar_select %p136, %s137, %s138
    %p142 = pneg %p136
    %p143 = scmp.eq.s32.totalorder %s12, 1
    %p144 = por %p142, %p143
    %p145 = scmp.ne.s32.totalorder %s137, %s140
    %p146 = scmp.eq.s32.totalorder %s12, 0
    %p147 = por %p145, %p146
    %p148 = scmp.ne.s32.totalorder %s137, %s140
    %p149 = scmp.eq.s32.totalorder %s17, 1
    %p150 = por %p148, %p149
    %p151 = scmp.ne.s32.totalorder %s140, %s141
    %p152 = scmp.eq.s32.totalorder %s17, 0
    %p153 = por %p151, %p152
    %p154 = scmp.ne.s32.totalorder %s140, %s141
    %p155 = scmp.eq.s32.totalorder %s18, 1
    %p156 = por %p154, %p155
    %p158 = scmp.ne.s32.totalorder %s141, %s157
    %p159 = scmp.eq.s32.totalorder %s18, 0
    %p160 = por %p158, %p159
    %p161 = scmp.le.s32.totalorder 1, %s12
    %p162 = scmp.lt.s32.totalorder %s12, 3
    %p163 = pnand %p161, %p162
    %p164 = pneg %p163
    // Predicated region
    $region9: #{conv_block_forward.5} parent=5 // pred_check
      _
    $region10: #{conv_block_forward.5} parent=5 // pred_check_branch
      %166 = sbr.rel (%p163) target = $region12
    $region11: #{conv_block_forward.5} parent=5 // pred_region
      %s167 = ssub.s32 %s12, 1
      // Predicated region
      $region13: #{conv_block_forward.5} parent=11 // pred_check
        %p168 = pneg %p59
      $region14: #{conv_block_forward.5} parent=11 // pred_check_branch
        %170 = sbr.rel (%p168) target = $region16
      $region15: #{conv_block_forward.5} parent=11 // pred_region
        _
      $region16: #{conv_block_forward.5} parent=11 // pred_fallthru
        _
      // Predicated region
      $region17: #{conv_block_forward.5} parent=11 // pred_check
        %p171 = pneg %p80
      $region18: #{conv_block_forward.5} parent=11 // pred_check_branch
        %173 = sbr.rel (%p171) target = $region20
      $region19: #{conv_block_forward.5} parent=11 // pred_region
        _
      $region20: #{conv_block_forward.5} parent=11 // pred_fallthru
        _
      // Predicated region
      $region21: #{conv_block_forward.5} parent=11 // pred_check
        %p174 = pneg %p101
      $region22: #{conv_block_forward.5} parent=11 // pred_check_branch
        %176 = sbr.rel (%p174) target = $region24
      $region23: #{conv_block_forward.5} parent=11 // pred_region
        _
      $region24: #{conv_block_forward.5} parent=11 // pred_fallthru
        _
    $region12: #{conv_block_forward.5} parent=5 // pred_fallthru
      _
    %p177 = scmp.lt.s32.totalorder %s12, 2
    // Predicated region
    $region25: #{conv_block_forward.5} parent=5 // pred_check
      %p178 = pneg %p177
    $region26: #{conv_block_forward.5} parent=5 // pred_check_branch
      %180 = sbr.rel (%p178) target = $region28
    $region27: #{conv_block_forward.5} parent=5 // pred_region
      // Predicated region
      $region29: #{conv_block_forward.5} parent=27 // pred_check
        %p181 = pneg %p32
      $region30: #{conv_block_forward.5} parent=27 // pred_check_branch
        %183 = sbr.rel (%p181) target = $region32
      $region31: #{conv_block_forward.5} parent=27 // pred_region
        %p184 = scmp.lt.s32.totalorder %s12, 1
        %s185 = scalar_select %p184, %s12, 1
        %s186 = smul.addr %s185, 8
        %s187 = smul.addr %s186, 4
        %s188 = scalar_lea.vmem %s0, %s187
      $region32: #{conv_block_forward.5} parent=27 // pred_fallthru
        _
    $region28: #{conv_block_forward.5} parent=5 // pred_fallthru
      _
    %p189 = scmp.le.s32.totalorder 1, %s12
    %p190 = scmp.lt.s32.totalorder %s12, 3
    %p191 = pnand %p189, %p190
    %p192 = pneg %p191
    // Predicated region
    $region33: #{conv_block_forward.5} parent=5 // pred_check
      _
    $region34: #{conv_block_forward.5} parent=5 // pred_check_branch
      %194 = sbr.rel (%p191) target = $region36
    $region35: #{conv_block_forward.5} parent=5 // pred_region
      %s195 = ssub.s32 %s12, 1
      %p196 = scmp.lt.s32.totalorder %s17, 1
      %s197 = scalar_select %p196, %s17, 1
      %s198 = smul.addr %s197, 8
      %s199 = smul.addr %s198, 4
      %s200 = scalar_lea.vmem %s0, %s199
      %p201 = pneg %p38
      %p202 = pneg %p35
      %p203 = pneg %p59
      %p204 = pneg %p56
      %p205 = pneg %p80
      %p206 = pneg %p77
      %p207 = pneg %p101
      %p208 = pneg %p98
      %p209 = pneg %p127
      %p210 = pneg %p124
      %p211 = scmp.lt.s32.totalorder %s17, 1
      %s212 = scalar_select %p211, %s17, 1
      %s213 = smul.addr %s212, 8
      %s214 = smul.addr %s213, 4
      %s215 = scalar_lea.vmem %s4, %s214
      %p216 = pneg %p153
      %p217 = pneg %p150
      %p218 = scmp.lt.s32.totalorder %s17, 1
      %s219 = scalar_select %p218, %s17, 1
      %s220 = smul.addr %s219, 2
      %s221 = scalar_lea.vmem %s5, %s220
      %p222 = scmp.lt.s32.totalorder %s17, 1
      %s223 = scalar_select %p222, %s17, 1
      %s224 = smul.addr %s223, 8
      %s225 = smul.addr %s224, 4
      %s226 = scalar_lea.vmem %s0, %s225
      %p227 = scmp.lt.s32.totalorder %s17, 1
      %s228 = scalar_select %p227, %s17, 1
      %s229 = smul.addr %s228, 8
      %s230 = smul.addr %s229, 4
      %s231 = scalar_lea.vmem %s4, %s230
      %p232 = scmp.lt.s32.totalorder %s17, 1
      %s233 = scalar_select %p232, %s17, 1
      %s234 = smul.addr %s233, 2
      %s235 = scalar_lea.vmem %s5, %s234
      %v237 = vld [vmem:[%s226] sm:$0xf]
      %v238 = vld [vmem:[%s226 + $0x4] sm:$0xf]
      %v239 = vld [vmem:[%s226 + $0x8] sm:$0xf]
      %v240 = vld [vmem:[%s226 + $0xc] sm:$0xf]
      %v241 = vld [vmem:[%s226 + $0x10] sm:$0xf]
      %v242 = vld [vmem:[%s226 + $0x14] sm:$0xf]
      %v243 = vld [vmem:[%s226 + $0x18] sm:$0xf]
      %v244 = vld [vmem:[%s226 + $0x1c] sm:$0xf]
      %v245 = vld [vmem:[%s1] sm:$0xf]
      %v246 = vld [vmem:[%s1 + $0x4] sm:$0xf]
      %v247 = vld [vmem:[%s2] sm:$0x1]
      %v249 = vlaneseq
      %v250 = vshrl.u32 %v249, 7
      %v251 = vsub.s32 0, %v250
      %v252 = vrot.slane %v247, %v251
      %v262 = vunpack.c.l.b16 %v237
      %v263 = vunpack.c.l.b16 %v238
      %v264 = vunpack.c.l.b16 %v239
      %v265 = vunpack.c.l.b16 %v240
      %v266 = vunpack.c.l.b16 %v241
      %v267 = vunpack.c.l.b16 %v242
      %v268 = vunpack.c.l.b16 %v243
      %v269 = vunpack.c.l.b16 %v244
      %v270 = vpack.c.b16 %v263, %v262
      %v271 = vpack.c.b16 %v265, %v264
      %v272 = vpack.c.b16 %v267, %v266
      %v273 = vpack.c.b16 %v269, %v268
      %v276 = vunpack.c.l.b16 %v245
      %v277 = vunpack.c.l.b16 %v246
      %v278 = vpack.c.b16 %v277, %v276
      %vm280 = vcmask 130048
      %v282 = vsel %vm280, %v270, 0
      %v285 = vsel %vm280, %v271, 0
      %v288 = vsel %vm280, %v272, 0
      %v291 = vsel %vm280, %v273, 0
      %293 = vmatprep.subr.bf16.mxu0 0
      %294 = vmatpush1.bf16.msra.mxu0 0
      %295 = vmatprep.subr.bf16.mxu0 0
      %296 = vmatpush1.bf16.msra.mxu0 0
      %297 = vmatprep.subr.bf16.mxu0 0
      %298 = vmatpush1.bf16.msra.mxu0 0
      %299 = vmatprep.subr.bf16.mxu0 0
      %300 = vmatpush1.bf16.msra.mxu0 0
      %301 = vmatprep.subr.bf16.mxu0 0
      %302 = vmatpush1.bf16.msra.mxu0 0
      %303 = vmatprep.subr.bf16.mxu0 0
      %304 = vmatpush1.bf16.msra.mxu0 0
      %305 = vmatprep.subr.bf16.mxu0 0
      %306 = vmatpush1.bf16.msra.mxu0 0
      %307 = vmatprep.subr.bf16.mxu0 0
      %308 = vmatpush1.bf16.msra.mxu0 %v278
      %309 = vmatprep.subr.bf16.mxu0 0
      %310 = vmatpush2.bf16.msra.mxu0 0
      %311 = vmatprep.subr.bf16.mxu0 0
      %312 = vmatpush2.bf16.msra.mxu0 0
      %313 = vmatprep.subr.bf16.mxu0 0
      %314 = vmatpush2.bf16.msra.mxu0 0
      %315 = vmatprep.subr.bf16.mxu0 0
      %316 = vmatpush2.bf16.msra.mxu0 0
      %317 = vmatprep.subr.bf16.mxu0 0
      %318 = vmatpush2.bf16.msra.mxu0 0
      %319 = vmatprep.subr.bf16.mxu0 0
      %320 = vmatpush2.bf16.msra.mxu0 0
      %321 = vmatprep.subr.bf16.mxu0 0
      %322 = vmatpush2.bf16.msra.mxu0 0
      %323 = vmatprep.subr.bf16.mxu0 0
      %324 = vmatpush2.bf16.msra.mxu0 0
      %325 = vmatprep.mubr.bf16.mxu0 0
      %326 = vmatmul.mubr.bf16.gmra.mxu0 %v282
      %v327 = vpop.f32.mrf.mxu0
      %v328 = vadd.f32 %v252, %v327
      %v329 = vpop.f32.mrf.mxu0
      %v330 = vpop.f32.mrf.mxu0
      %v331 = vadd.f32 %v252, %v330
      %v332 = vpop.f32.mrf.mxu0
      %333 = vmatprep.mubr.bf16.mxu0 0
      %334 = vmatmul.mubr.bf16.gmra.mxu0 %v285
      %v335 = vpop.f32.mrf.mxu0
      %v336 = vadd.f32 %v252, %v335
      %v337 = vpop.f32.mrf.mxu0
      %v338 = vpop.f32.mrf.mxu0
      %v339 = vadd.f32 %v252, %v338
      %v340 = vpop.f32.mrf.mxu0
      %341 = vmatprep.mubr.bf16.mxu0 0
      %342 = vmatmul.mubr.bf16.gmra.mxu0 %v288
      %v343 = vpop.f32.mrf.mxu0
      %v344 = vadd.f32 %v252, %v343
      %v345 = vpop.f32.mrf.mxu0
      %v346 = vpop.f32.mrf.mxu0
      %v347 = vadd.f32 %v252, %v346
      %v348 = vpop.f32.mrf.mxu0
      %349 = vmatprep.mubr.bf16.mxu0 0
      %350 = vmatmul.mubr.bf16.gmra.mxu0 %v291
      %v351 = vpop.f32.mrf.mxu0
      %v352 = vadd.f32 %v252, %v351
      %v353 = vpop.f32.mrf.mxu0
      %v354 = vpop.f32.mrf.mxu0
      %v355 = vadd.f32 %v252, %v354
      %v356 = vpop.f32.mrf.mxu0
      %357 = vdwg.mxu0
      %v358 = vmax.f32 %v328, 0.0
      %v359 = vmax.f32 %v331, 0.0
      %v360 = vmax.f32 %v336, 0.0
      %v361 = vmax.f32 %v339, 0.0
      %v362 = vmax.f32 %v344, 0.0
      %v363 = vmax.f32 %v347, 0.0
      %v364 = vmax.f32 %v352, 0.0
      %v365 = vmax.f32 %v355, 0.0
      %s366 = scalar_lea.vmem [#allocation2], 16
      %367 = vst.msk [vmem:[%s366 + $0x1] sm:$0xff] %vm280, %v358
      %368 = vst.msk [vmem:[%s366 + $0x11] sm:$0xff] %vm280, %v359
      %369 = vst.msk [vmem:[%s366 + $0x21] sm:$0xff] %vm280, %v360
      %370 = vst.msk [vmem:[%s366 + $0x31] sm:$0xff] %vm280, %v361
      %371 = vst.msk [vmem:[%s366 + $0x41] sm:$0xff] %vm280, %v362
      %372 = vst.msk [vmem:[%s366 + $0x51] sm:$0xff] %vm280, %v363
      %373 = vst.msk [vmem:[%s366 + $0x61] sm:$0xff] %vm280, %v364
      %374 = vst.msk [vmem:[%s366 + $0x71] sm:$0xff] %vm280, %v365
      %375 = vst.msk [vmem:[#allocation2] sm:$0xff] %vm280, 0.0
      %vm376 = vcmask 123904
      %377 = vst.msk [vmem:[#allocation2 + $0x8] sm:$0x3] %vm376, 0.0
      %s378 = scalar_lea.vmem [#allocation2], 144
      %379 = vst.msk [vmem:[%s378] sm:$0xff] %vm280, 0.0
      %380 = vst.msk [vmem:[%s378 + $0x8] sm:$0x3] %vm376, 0.0
      %vm381 = vcmask 122880
      %382 = vst.msk [vmem:[%s366] sm:$0x1] %vm381, 0.0
      %383 = vst.msk [vmem:[%s366 + $0x10] sm:$0x1] %vm381, 0.0
      %384 = vst.msk [vmem:[%s366 + $0x20] sm:$0x1] %vm381, 0.0
      %385 = vst.msk [vmem:[%s366 + $0x30] sm:$0x1] %vm381, 0.0
      %386 = vst.msk [vmem:[%s366 + $0x40] sm:$0x1] %vm381, 0.0
      %387 = vst.msk [vmem:[%s366 + $0x50] sm:$0x1] %vm381, 0.0
      %388 = vst.msk [vmem:[%s366 + $0x60] sm:$0x1] %vm381, 0.0
      %389 = vst.msk [vmem:[%s366 + $0x70] sm:$0x1] %vm381, 0.0
      %390 = vst.msk [vmem:[%s366 + $0x9] sm:$0x1] %vm381, 0.0
      %391 = vst.msk [vmem:[%s366 + $0x19] sm:$0x1] %vm381, 0.0
      %392 = vst.msk [vmem:[%s366 + $0x29] sm:$0x1] %vm381, 0.0
      %393 = vst.msk [vmem:[%s366 + $0x39] sm:$0x1] %vm381, 0.0
      %394 = vst.msk [vmem:[%s366 + $0x49] sm:$0x1] %vm381, 0.0
      %395 = vst.msk [vmem:[%s366 + $0x59] sm:$0x1] %vm381, 0.0
      %396 = vst.msk [vmem:[%s366 + $0x69] sm:$0x1] %vm381, 0.0
      %397 = vst.msk [vmem:[%s366 + $0x79] sm:$0x1] %vm381, 0.0
      %v398 = vld [vmem:[#allocation2] sm:$0xff]
      %v399 = vld [vmem:[#allocation2 + $0x8] sm:$0x3]
      %v400 = vld [vmem:[#allocation2 + $0x10] sm:$0xff]
      %v401 = vld [vmem:[#allocation2 + $0x18] sm:$0x3]
      %v402 = vld [vmem:[#allocation2 + $0x20] sm:$0xff]
      %v403 = vld [vmem:[#allocation2 + $0x28] sm:$0x3]
      %v404 = vld [vmem:[#allocation2 + $0x30] sm:$0xff]
      %v405 = vld [vmem:[#allocation2 + $0x38] sm:$0x3]
      %v406 = vld [vmem:[#allocation2 + $0x40] sm:$0xff]
      %v407 = vld [vmem:[#allocation2 + $0x48] sm:$0x3]
      %v408 = vld [vmem:[#allocation2 + $0x50] sm:$0xff]
      %v409 = vld [vmem:[#allocation2 + $0x58] sm:$0x3]
      %v410 = vld [vmem:[#allocation2 + $0x60] sm:$0xff]
      %v411 = vld [vmem:[#allocation2 + $0x68] sm:$0x3]
      %v412 = vld [vmem:[#allocation2 + $0x70] sm:$0xff]
      %v413 = vld [vmem:[#allocation2 + $0x78] sm:$0x3]
      %v414 = vpack.c.bf16 %v400, %v398
      %v415 = vpack.c.bf16 %v404, %v402
      %v416 = vpack.c.bf16 %v408, %v406
      %v417 = vpack.c.bf16 %v412, %v410
      %v418 = vld [vmem:[%s3] sm:$0xf]
      %v419 = vld [vmem:[%s3 + $0x4] sm:$0xf]
      %vm436 = vcmask 1046528
      %v437 = vrot.slane %v398, 1
      %v438 = vrot.slane %v399, 1
      %v439 = vsel %vm436, %v437, %v438
      %v440 = vrot.slane %v400, 1
      %v441 = vrot.slane %v401, 1
      %v442 = vsel %vm436, %v440, %v441
      %v443 = vrot.slane %v402, 1
      %v444 = vrot.slane %v403, 1
      %v445 = vsel %vm436, %v443, %v444
      %v446 = vrot.slane %v404, 1
      %v447 = vrot.slane %v405, 1
      %v448 = vsel %vm436, %v446, %v447
      %v449 = vrot.slane %v406, 1
      %v450 = vrot.slane %v407, 1
      %v451 = vsel %vm436, %v449, %v450
      %v452 = vrot.slane %v408, 1
      %v453 = vrot.slane %v409, 1
      %v454 = vsel %vm436, %v452, %v453
      %v455 = vrot.slane %v410, 1
      %v456 = vrot.slane %v411, 1
      %v457 = vsel %vm436, %v455, %v456
      %v458 = vrot.slane %v412, 1
      %v459 = vrot.slane %v413, 1
      %v460 = vsel %vm436, %v458, %v459
      %v469 = vpack.c.bf16 %v442, %v439
      %v470 = vpack.c.bf16 %v448, %v445
      %v471 = vpack.c.bf16 %v454, %v451
      %v472 = vpack.c.bf16 %v460, %v457
      %v473 = vld [vmem:[%s3 + $0x8] sm:$0xf]
      %v474 = vld [vmem:[%s3 + $0xc] sm:$0xf]
      %v477 = vunpack.c.l.b16 %v473
      %v478 = vunpack.c.l.b16 %v474
      %v479 = vpack.c.b16 %v478, %v477
      %v482 = vsel %vm280, %v469, 0
      %v485 = vsel %vm280, %v470, 0
      %v488 = vsel %vm280, %v471, 0
      %v491 = vsel %vm280, %v472, 0
      %493 = vmatprep.subr.bf16.mxu0 0
      %494 = vmatpush1.bf16.msra.mxu0 0
      %495 = vmatprep.subr.bf16.mxu0 0
      %496 = vmatpush1.bf16.msra.mxu0 0
      %497 = vmatprep.subr.bf16.mxu0 0
      %498 = vmatpush1.bf16.msra.mxu0 0
      %499 = vmatprep.subr.bf16.mxu0 0
      %500 = vmatpush1.bf16.msra.mxu0 0
      %501 = vmatprep.subr.bf16.mxu0 0
      %502 = vmatpush1.bf16.msra.mxu0 0
      %503 = vmatprep.subr.bf16.mxu0 0
      %504 = vmatpush1.bf16.msra.mxu0 0
      %505 = vmatprep.subr.bf16.mxu0 0
      %506 = vmatpush1.bf16.msra.mxu0 0
      %507 = vmatprep.subr.bf16.mxu0 0
      %508 = vmatpush1.bf16.msra.mxu0 %v479
      %509 = vmatprep.subr.bf16.mxu0 0
      %510 = vmatpush2.bf16.msra.mxu0 0
      %511 = vmatprep.subr.bf16.mxu0 0
      %512 = vmatpush2.bf16.msra.mxu0 0
      %513 = vmatprep.subr.bf16.mxu0 0
      %514 = vmatpush2.bf16.msra.mxu0 0
      %515 = vmatprep.subr.bf16.mxu0 0
      %516 = vmatpush2.bf16.msra.mxu0 0
      %517 = vmatprep.subr.bf16.mxu0 0
      %518 = vmatpush2.bf16.msra.mxu0 0
      %519 = vmatprep.subr.bf16.mxu0 0
      %520 = vmatpush2.bf16.msra.mxu0 0
      %521 = vmatprep.subr.bf16.mxu0 0
      %522 = vmatpush2.bf16.msra.mxu0 0
      %523 = vmatprep.subr.bf16.mxu0 0
      %524 = vmatpush2.bf16.msra.mxu0 0
      %525 = vmatprep.mubr.bf16.mxu0 0
      %526 = vmatmul.mubr.bf16.gmra.mxu0 %v482
      %v527 = vpop.f32.mrf.mxu0
      %v528 = vadd.f32 0.0, %v527
      %v529 = vpop.f32.mrf.mxu0
      %v530 = vpop.f32.mrf.mxu0
      %v531 = vadd.f32 0.0, %v530
      %v532 = vpop.f32.mrf.mxu0
      %533 = vmatprep.mubr.bf16.mxu0 0
      %534 = vmatmul.mubr.bf16.gmra.mxu0 %v485
      %v535 = vpop.f32.mrf.mxu0
      %v536 = vadd.f32 0.0, %v535
      %v537 = vpop.f32.mrf.mxu0
      %v538 = vpop.f32.mrf.mxu0
      %v539 = vadd.f32 0.0, %v538
      %v540 = vpop.f32.mrf.mxu0
      %541 = vmatprep.mubr.bf16.mxu0 0
      %542 = vmatmul.mubr.bf16.gmra.mxu0 %v488
      %v543 = vpop.f32.mrf.mxu0
      %v544 = vadd.f32 0.0, %v543
      %v545 = vpop.f32.mrf.mxu0
      %v546 = vpop.f32.mrf.mxu0
      %v547 = vadd.f32 0.0, %v546
      %v548 = vpop.f32.mrf.mxu0
      %549 = vmatprep.mubr.bf16.mxu0 0
      %550 = vmatmul.mubr.bf16.gmra.mxu0 %v491
      %v551 = vpop.f32.mrf.mxu0
      %v552 = vadd.f32 0.0, %v551
      %v553 = vpop.f32.mrf.mxu0
      %v554 = vpop.f32.mrf.mxu0
      %v555 = vadd.f32 0.0, %v554
      %v556 = vpop.f32.mrf.mxu0
      %557 = vdwg.mxu0
      %v560 = vunpack.c.l.b16 %v418
      %v561 = vunpack.c.l.b16 %v419
      %v562 = vpack.c.b16 %v561, %v560
      %v565 = vsel %vm280, %v414, 0
      %v568 = vsel %vm280, %v415, 0
      %v571 = vsel %vm280, %v416, 0
      %v574 = vsel %vm280, %v417, 0
      %576 = vmatprep.subr.bf16.mxu0 0
      %577 = vmatpush1.bf16.msra.mxu0 0
      %578 = vmatprep.subr.bf16.mxu0 0
      %579 = vmatpush1.bf16.msra.mxu0 0
      %580 = vmatprep.subr.bf16.mxu0 0
      %581 = vmatpush1.bf16.msra.mxu0 0
      %582 = vmatprep.subr.bf16.mxu0 0
      %583 = vmatpush1.bf16.msra.mxu0 0
      %584 = vmatprep.subr.bf16.mxu0 0
      %585 = vmatpush1.bf16.msra.mxu0 0
      %586 = vmatprep.subr.bf16.mxu0 0
      %587 = vmatpush1.bf16.msra.mxu0 0
      %588 = vmatprep.subr.bf16.mxu0 0
      %589 = vmatpush1.bf16.msra.mxu0 0
      %590 = vmatprep.subr.bf16.mxu0 0
      %591 = vmatpush1.bf16.msra.mxu0 %v562
      %592 = vmatprep.subr.bf16.mxu0 0
      %593 = vmatpush2.bf16.msra.mxu0 0
      %594 = vmatprep.subr.bf16.mxu0 0
      %595 = vmatpush2.bf16.msra.mxu0 0
      %596 = vmatprep.subr.bf16.mxu0 0
      %597 = vmatpush2.bf16.msra.mxu0 0
      %598 = vmatprep.subr.bf16.mxu0 0
      %599 = vmatpush2.bf16.msra.mxu0 0
      %600 = vmatprep.subr.bf16.mxu0 0
      %601 = vmatpush2.bf16.msra.mxu0 0
      %602 = vmatprep.subr.bf16.mxu0 0
      %603 = vmatpush2.bf16.msra.mxu0 0
      %604 = vmatprep.subr.bf16.mxu0 0
      %605 = vmatpush2.bf16.msra.mxu0 0
      %606 = vmatprep.subr.bf16.mxu0 0
      %607 = vmatpush2.bf16.msra.mxu0 0
      %608 = vmatprep.mubr.bf16.mxu0 0
      %609 = vmatmul.mubr.bf16.gmra.mxu0 %v565
      %v610 = vpop.f32.mrf.mxu0
      %v611 = vadd.f32 %v528, %v610
      %v612 = vpop.f32.mrf.mxu0
      %v613 = vpop.f32.mrf.mxu0
      %v614 = vadd.f32 %v531, %v613
      %v615 = vpop.f32.mrf.mxu0
      %616 = vmatprep.mubr.bf16.mxu0 0
      %617 = vmatmul.mubr.bf16.gmra.mxu0 %v568
      %v618 = vpop.f32.mrf.mxu0
      %v619 = vadd.f32 %v536, %v618
      %v620 = vpop.f32.mrf.mxu0
      %v621 = vpop.f32.mrf.mxu0
      %v622 = vadd.f32 %v539, %v621
      %v623 = vpop.f32.mrf.mxu0
      %624 = vmatprep.mubr.bf16.mxu0 0
      %625 = vmatmul.mubr.bf16.gmra.mxu0 %v571
      %v626 = vpop.f32.mrf.mxu0
      %v627 = vadd.f32 %v544, %v626
      %v628 = vpop.f32.mrf.mxu0
      %v629 = vpop.f32.mrf.mxu0
      %v630 = vadd.f32 %v547, %v629
      %v631 = vpop.f32.mrf.mxu0
      %632 = vmatprep.mubr.bf16.mxu0 0
      %633 = vmatmul.mubr.bf16.gmra.mxu0 %v574
      %v634 = vpop.f32.mrf.mxu0
      %v635 = vadd.f32 %v552, %v634
      %v636 = vpop.f32.mrf.mxu0
      %v637 = vpop.f32.mrf.mxu0
      %v638 = vadd.f32 %v555, %v637
      %v639 = vpop.f32.mrf.mxu0
      %640 = vdwg.mxu0
      %vm641 = vcmask 1045504
      %v642 = vrot.slane %v398, 2
      %v643 = vrot.slane %v399, 2
      %v644 = vsel %vm641, %v642, %v643
      %v645 = vrot.slane %v400, 2
      %v646 = vrot.slane %v401, 2
      %v647 = vsel %vm641, %v645, %v646
      %v648 = vrot.slane %v402, 2
      %v649 = vrot.slane %v403, 2
      %v650 = vsel %vm641, %v648, %v649
      %v651 = vrot.slane %v404, 2
      %v652 = vrot.slane %v405, 2
      %v653 = vsel %vm641, %v651, %v652
      %v654 = vrot.slane %v406, 2
      %v655 = vrot.slane %v407, 2
      %v656 = vsel %vm641, %v654, %v655
      %v657 = vrot.slane %v408, 2
      %v658 = vrot.slane %v409, 2
      %v659 = vsel %vm641, %v657, %v658
      %v660 = vrot.slane %v410, 2
      %v661 = vrot.slane %v411, 2
      %v662 = vsel %vm641, %v660, %v661
      %v663 = vrot.slane %v412, 2
      %v664 = vrot.slane %v413, 2
      %v665 = vsel %vm641, %v663, %v664
      %v674 = vpack.c.bf16 %v647, %v644
      %v675 = vpack.c.bf16 %v653, %v650
      %v676 = vpack.c.bf16 %v659, %v656
      %v677 = vpack.c.bf16 %v665, %v662
      %v678 = vld [vmem:[%s3 + $0x10] sm:$0xf]
      %v679 = vld [vmem:[%s3 + $0x14] sm:$0xf]
      %v682 = vunpack.c.l.b16 %v678
      %v683 = vunpack.c.l.b16 %v679
      %v684 = vpack.c.b16 %v683, %v682
      %v687 = vsel %vm280, %v674, 0
      %v690 = vsel %vm280, %v675, 0
      %v693 = vsel %vm280, %v676, 0
      %v696 = vsel %vm280, %v677, 0
      %698 = vmatprep.subr.bf16.mxu0 0
      %699 = vmatpush1.bf16.msra.mxu0 0
      %700 = vmatprep.subr.bf16.mxu0 0
      %701 = vmatpush1.bf16.msra.mxu0 0
      %702 = vmatprep.subr.bf16.mxu0 0
      %703 = vmatpush1.bf16.msra.mxu0 0
      %704 = vmatprep.subr.bf16.mxu0 0
      %705 = vmatpush1.bf16.msra.mxu0 0
      %706 = vmatprep.subr.bf16.mxu0 0
      %707 = vmatpush1.bf16.msra.mxu0 0
      %708 = vmatprep.subr.bf16.mxu0 0
      %709 = vmatpush1.bf16.msra.mxu0 0
      %710 = vmatprep.subr.bf16.mxu0 0
      %711 = vmatpush1.bf16.msra.mxu0 0
      %712 = vmatprep.subr.bf16.mxu0 0
      %713 = vmatpush1.bf16.msra.mxu0 %v684
      %714 = vmatprep.subr.bf16.mxu0 0
      %715 = vmatpush2.bf16.msra.mxu0 0
      %716 = vmatprep.subr.bf16.mxu0 0
      %717 = vmatpush2.bf16.msra.mxu0 0
      %718 = vmatprep.subr.bf16.mxu0 0
      %719 = vmatpush2.bf16.msra.mxu0 0
      %720 = vmatprep.subr.bf16.mxu0 0
      %721 = vmatpush2.bf16.msra.mxu0 0
      %722 = vmatprep.subr.bf16.mxu0 0
      %723 = vmatpush2.bf16.msra.mxu0 0
      %724 = vmatprep.subr.bf16.mxu0 0
      %725 = vmatpush2.bf16.msra.mxu0 0
      %726 = vmatprep.subr.bf16.mxu0 0
      %727 = vmatpush2.bf16.msra.mxu0 0
      %728 = vmatprep.subr.bf16.mxu0 0
      %729 = vmatpush2.bf16.msra.mxu0 0
      %730 = vmatprep.mubr.bf16.mxu0 0
      %731 = vmatmul.mubr.bf16.gmra.mxu0 %v687
      %v732 = vpop.f32.mrf.mxu0
      %v733 = vadd.f32 0.0, %v732
      %v734 = vpop.f32.mrf.mxu0
      %v735 = vpop.f32.mrf.mxu0
      %v736 = vadd.f32 0.0, %v735
      %v737 = vpop.f32.mrf.mxu0
      %738 = vmatprep.mubr.bf16.mxu0 0
      %739 = vmatmul.mubr.bf16.gmra.mxu0 %v690
      %v740 = vpop.f32.mrf.mxu0
      %v741 = vadd.f32 0.0, %v740
      %v742 = vpop.f32.mrf.mxu0
      %v743 = vpop.f32.mrf.mxu0
      %v744 = vadd.f32 0.0, %v743
      %v745 = vpop.f32.mrf.mxu0
      %746 = vmatprep.mubr.bf16.mxu0 0
      %747 = vmatmul.mubr.bf16.gmra.mxu0 %v693
      %v748 = vpop.f32.mrf.mxu0
      %v749 = vadd.f32 0.0, %v748
      %v750 = vpop.f32.mrf.mxu0
      %v751 = vpop.f32.mrf.mxu0
      %v752 = vadd.f32 0.0, %v751
      %v753 = vpop.f32.mrf.mxu0
      %754 = vmatprep.mubr.bf16.mxu0 0
      %755 = vmatmul.mubr.bf16.gmra.mxu0 %v696
      %v756 = vpop.f32.mrf.mxu0
      %v757 = vadd.f32 0.0, %v756
      %v758 = vpop.f32.mrf.mxu0
      %v759 = vpop.f32.mrf.mxu0
      %v760 = vadd.f32 0.0, %v759
      %v761 = vpop.f32.mrf.mxu0
      %762 = vdwg.mxu0
      %v763 = vadd.f32 %v611, %v733
      %v764 = vadd.f32 %v614, %v736
      %v765 = vadd.f32 %v619, %v741
      %v766 = vadd.f32 %v622, %v744
      %v767 = vadd.f32 %v627, %v749
      %v768 = vadd.f32 %v630, %v752
      %v769 = vadd.f32 %v635, %v757
      %v770 = vadd.f32 %v638, %v760
      %771 = vst [vmem:[#allocation3] sm:$0xff] %v763
      %772 = vst [vmem:[#allocation3 + $0x8] sm:$0xff] %v764
      %773 = vst [vmem:[#allocation3 + $0x10] sm:$0xff] %v765
      %774 = vst [vmem:[#allocation3 + $0x18] sm:$0xff] %v766
      %775 = vst [vmem:[#allocation3 + $0x20] sm:$0xff] %v767
      %776 = vst [vmem:[#allocation3 + $0x28] sm:$0xff] %v768
      %777 = vst [vmem:[#allocation3 + $0x30] sm:$0xff] %v769
      %778 = vst [vmem:[#allocation3 + $0x38] sm:$0xff] %v770
      %v779 = vld [vmem:[%s366] sm:$0xff]
      %v780 = vld [vmem:[%s366 + $0x8] sm:$0x3]
      %v781 = vld [vmem:[%s366 + $0x10] sm:$0xff]
      %v782 = vld [vmem:[%s366 + $0x18] sm:$0x3]
      %v783 = vld [vmem:[%s366 + $0x20] sm:$0xff]
      %v784 = vld [vmem:[%s366 + $0x28] sm:$0x3]
      %v785 = vld [vmem:[%s366 + $0x30] sm:$0xff]
      %v786 = vld [vmem:[%s366 + $0x38] sm:$0x3]
      %v787 = vld [vmem:[%s366 + $0x40] sm:$0xff]
      %v788 = vld [vmem:[%s366 + $0x48] sm:$0x3]
      %v789 = vld [vmem:[%s366 + $0x50] sm:$0xff]
      %v790 = vld [vmem:[%s366 + $0x58] sm:$0x3]
      %v791 = vld [vmem:[%s366 + $0x60] sm:$0xff]
      %v792 = vld [vmem:[%s366 + $0x68] sm:$0x3]
      %v793 = vld [vmem:[%s366 + $0x70] sm:$0xff]
      %v794 = vld [vmem:[%s366 + $0x78] sm:$0x3]
      %v795 = vpack.c.bf16 %v781, %v779
      %v796 = vpack.c.bf16 %v785, %v783
      %v797 = vpack.c.bf16 %v789, %v787
      %v798 = vpack.c.bf16 %v793, %v791
      %v799 = vld [vmem:[%s3 + $0x18] sm:$0xf]
      %v800 = vld [vmem:[%s3 + $0x1c] sm:$0xf]
      %v817 = vrot.slane %v779, 1
      %v818 = vrot.slane %v780, 1
      %v819 = vsel %vm436, %v817, %v818
      %v820 = vrot.slane %v781, 1
      %v821 = vrot.slane %v782, 1
      %v822 = vsel %vm436, %v820, %v821
      %v823 = vrot.slane %v783, 1
      %v824 = vrot.slane %v784, 1
      %v825 = vsel %vm436, %v823, %v824
      %v826 = vrot.slane %v785, 1
      %v827 = vrot.slane %v786, 1
      %v828 = vsel %vm436, %v826, %v827
      %v829 = vrot.slane %v787, 1
      %v830 = vrot.slane %v788, 1
      %v831 = vsel %vm436, %v829, %v830
      %v832 = vrot.slane %v789, 1
      %v833 = vrot.slane %v790, 1
      %v834 = vsel %vm436, %v832, %v833
      %v835 = vrot.slane %v791, 1
      %v836 = vrot.slane %v792, 1
      %v837 = vsel %vm436, %v835, %v836
      %v838 = vrot.slane %v793, 1
      %v839 = vrot.slane %v794, 1
      %v840 = vsel %vm436, %v838, %v839
      %v849 = vpack.c.bf16 %v822, %v819
      %v850 = vpack.c.bf16 %v828, %v825
      %v851 = vpack.c.bf16 %v834, %v831
      %v852 = vpack.c.bf16 %v840, %v837
      %v853 = vld [vmem:[%s3 + $0x20] sm:$0xf]
      %v854 = vld [vmem:[%s3 + $0x24] sm:$0xf]
      %v857 = vunpack.c.l.b16 %v853
      %v858 = vunpack.c.l.b16 %v854
      %v859 = vpack.c.b16 %v858, %v857
      %v862 = vsel %vm280, %v849, 0
      %v865 = vsel %vm280, %v850, 0
      %v868 = vsel %vm280, %v851, 0
      %v871 = vsel %vm280, %v852, 0
      %873 = vmatprep.subr.bf16.mxu0 0
      %874 = vmatpush1.bf16.msra.mxu0 0
      %875 = vmatprep.subr.bf16.mxu0 0
      %876 = vmatpush1.bf16.msra.mxu0 0
      %877 = vmatprep.subr.bf16.mxu0 0
      %878 = vmatpush1.bf16.msra.mxu0 0
      %879 = vmatprep.subr.bf16.mxu0 0
      %880 = vmatpush1.bf16.msra.mxu0 0
      %881 = vmatprep.subr.bf16.mxu0 0
      %882 = vmatpush1.bf16.msra.mxu0 0
      %883 = vmatprep.subr.bf16.mxu0 0
      %884 = vmatpush1.bf16.msra.mxu0 0
      %885 = vmatprep.subr.bf16.mxu0 0
      %886 = vmatpush1.bf16.msra.mxu0 0
      %887 = vmatprep.subr.bf16.mxu0 0
      %888 = vmatpush1.bf16.msra.mxu0 %v859
      %889 = vmatprep.subr.bf16.mxu0 0
      %890 = vmatpush2.bf16.msra.mxu0 0
      %891 = vmatprep.subr.bf16.mxu0 0
      %892 = vmatpush2.bf16.msra.mxu0 0
      %893 = vmatprep.subr.bf16.mxu0 0
      %894 = vmatpush2.bf16.msra.mxu0 0
      %895 = vmatprep.subr.bf16.mxu0 0
      %896 = vmatpush2.bf16.msra.mxu0 0
      %897 = vmatprep.subr.bf16.mxu0 0
      %898 = vmatpush2.bf16.msra.mxu0 0
      %899 = vmatprep.subr.bf16.mxu0 0
      %900 = vmatpush2.bf16.msra.mxu0 0
      %901 = vmatprep.subr.bf16.mxu0 0
      %902 = vmatpush2.bf16.msra.mxu0 0
      %903 = vmatprep.subr.bf16.mxu0 0
      %904 = vmatpush2.bf16.msra.mxu0 0
      %905 = vmatprep.mubr.bf16.mxu0 0
      %906 = vmatmul.mubr.bf16.gmra.mxu0 %v862
      %v907 = vpop.f32.mrf.mxu0
      %v908 = vadd.f32 0.0, %v907
      %v909 = vpop.f32.mrf.mxu0
      %v910 = vpop.f32.mrf.mxu0
      %v911 = vadd.f32 0.0, %v910
      %v912 = vpop.f32.mrf.mxu0
      %913 = vmatprep.mubr.bf16.mxu0 0
      %914 = vmatmul.mubr.bf16.gmra.mxu0 %v865
      %v915 = vpop.f32.mrf.mxu0
      %v916 = vadd.f32 0.0, %v915
      %v917 = vpop.f32.mrf.mxu0
      %v918 = vpop.f32.mrf.mxu0
      %v919 = vadd.f32 0.0, %v918
      %v920 = vpop.f32.mrf.mxu0
      %921 = vmatprep.mubr.bf16.mxu0 0
      %922 = vmatmul.mubr.bf16.gmra.mxu0 %v868
      %v923 = vpop.f32.mrf.mxu0
      %v924 = vadd.f32 0.0, %v923
      %v925 = vpop.f32.mrf.mxu0
      %v926 = vpop.f32.mrf.mxu0
      %v927 = vadd.f32 0.0, %v926
      %v928 = vpop.f32.mrf.mxu0
      %929 = vmatprep.mubr.bf16.mxu0 0
      %930 = vmatmul.mubr.bf16.gmra.mxu0 %v871
      %v931 = vpop.f32.mrf.mxu0
      %v932 = vadd.f32 0.0, %v931
      %v933 = vpop.f32.mrf.mxu0
      %v934 = vpop.f32.mrf.mxu0
      %v935 = vadd.f32 0.0, %v934
      %v936 = vpop.f32.mrf.mxu0
      %937 = vdwg.mxu0
      %v940 = vunpack.c.l.b16 %v799
      %v941 = vunpack.c.l.b16 %v800
      %v942 = vpack.c.b16 %v941, %v940
      %v945 = vsel %vm280, %v795, 0
      %v948 = vsel %vm280, %v796, 0
      %v951 = vsel %vm280, %v797, 0
      %v954 = vsel %vm280, %v798, 0
      %956 = vmatprep.subr.bf16.mxu0 0
      %957 = vmatpush1.bf16.msra.mxu0 0
      %958 = vmatprep.subr.bf16.mxu0 0
      %959 = vmatpush1.bf16.msra.mxu0 0
      %960 = vmatprep.subr.bf16.mxu0 0
      %961 = vmatpush1.bf16.msra.mxu0 0
      %962 = vmatprep.subr.bf16.mxu0 0
      %963 = vmatpush1.bf16.msra.mxu0 0
      %964 = vmatprep.subr.bf16.mxu0 0
      %965 = vmatpush1.bf16.msra.mxu0 0
      %966 = vmatprep.subr.bf16.mxu0 0
      %967 = vmatpush1.bf16.msra.mxu0 0
      %968 = vmatprep.subr.bf16.mxu0 0
      %969 = vmatpush1.bf16.msra.mxu0 0
      %970 = vmatprep.subr.bf16.mxu0 0
      %971 = vmatpush1.bf16.msra.mxu0 %v942
      %972 = vmatprep.subr.bf16.mxu0 0
      %973 = vmatpush2.bf16.msra.mxu0 0
      %974 = vmatprep.subr.bf16.mxu0 0
      %975 = vmatpush2.bf16.msra.mxu0 0
      %976 = vmatprep.subr.bf16.mxu0 0
      %977 = vmatpush2.bf16.msra.mxu0 0
      %978 = vmatprep.subr.bf16.mxu0 0
      %979 = vmatpush2.bf16.msra.mxu0 0
      %980 = vmatprep.subr.bf16.mxu0 0
      %981 = vmatpush2.bf16.msra.mxu0 0
      %982 = vmatprep.subr.bf16.mxu0 0
      %983 = vmatpush2.bf16.msra.mxu0 0
      %984 = vmatprep.subr.bf16.mxu0 0
      %985 = vmatpush2.bf16.msra.mxu0 0
      %986 = vmatprep.subr.bf16.mxu0 0
      %987 = vmatpush2.bf16.msra.mxu0 0
      %988 = vmatprep.mubr.bf16.mxu0 0
      %989 = vmatmul.mubr.bf16.gmra.mxu0 %v945
      %v990 = vpop.f32.mrf.mxu0
      %v991 = vadd.f32 %v908, %v990
      %v992 = vpop.f32.mrf.mxu0
      %v993 = vpop.f32.mrf.mxu0
      %v994 = vadd.f32 %v911, %v993
      %v995 = vpop.f32.mrf.mxu0
      %996 = vmatprep.mubr.bf16.mxu0 0
      %997 = vmatmul.mubr.bf16.gmra.mxu0 %v948
      %v998 = vpop.f32.mrf.mxu0
      %v999 = vadd.f32 %v916, %v998
      %v1000 = vpop.f32.mrf.mxu0
      %v1001 = vpop.f32.mrf.mxu0
      %v1002 = vadd.f32 %v919, %v1001
      %v1003 = vpop.f32.mrf.mxu0
      %1004 = vmatprep.mubr.bf16.mxu0 0
      %1005 = vmatmul.mubr.bf16.gmra.mxu0 %v951
      %v1006 = vpop.f32.mrf.mxu0
      %v1007 = vadd.f32 %v924, %v1006
      %v1008 = vpop.f32.mrf.mxu0
      %v1009 = vpop.f32.mrf.mxu0
      %v1010 = vadd.f32 %v927, %v1009
      %v1011 = vpop.f32.mrf.mxu0
      %1012 = vmatprep.mubr.bf16.mxu0 0
      %1013 = vmatmul.mubr.bf16.gmra.mxu0 %v954
      %v1014 = vpop.f32.mrf.mxu0
      %v1015 = vadd.f32 %v932, %v1014
      %v1016 = vpop.f32.mrf.mxu0
      %v1017 = vpop.f32.mrf.mxu0
      %v1018 = vadd.f32 %v935, %v1017
      %v1019 = vpop.f32.mrf.mxu0
      %1020 = vdwg.mxu0
      %v1021 = vrot.slane %v779, 2
      %v1022 = vrot.slane %v780, 2
      %v1023 = vsel %vm641, %v1021, %v1022
      %v1024 = vrot.slane %v781, 2
      %v1025 = vrot.slane %v782, 2
      %v1026 = vsel %vm641, %v1024, %v1025
      %v1027 = vrot.slane %v783, 2
      %v1028 = vrot.slane %v784, 2
      %v1029 = vsel %vm641, %v1027, %v1028
      %v1030 = vrot.slane %v785, 2
      %v1031 = vrot.slane %v786, 2
      %v1032 = vsel %vm641, %v1030, %v1031
      %v1033 = vrot.slane %v787, 2
      %v1034 = vrot.slane %v788, 2
      %v1035 = vsel %vm641, %v1033, %v1034
      %v1036 = vrot.slane %v789, 2
      %v1037 = vrot.slane %v790, 2
      %v1038 = vsel %vm641, %v1036, %v1037
      %v1039 = vrot.slane %v791, 2
      %v1040 = vrot.slane %v792, 2
      %v1041 = vsel %vm641, %v1039, %v1040
      %v1042 = vrot.slane %v793, 2
      %v1043 = vrot.slane %v794, 2
      %v1044 = vsel %vm641, %v1042, %v1043
      %v1053 = vpack.c.bf16 %v1026, %v1023
      %v1054 = vpack.c.bf16 %v1032, %v1029
      %v1055 = vpack.c.bf16 %v1038, %v1035
      %v1056 = vpack.c.bf16 %v1044, %v1041
      %v1057 = vld [vmem:[%s3 + $0x28] sm:$0xf]
      %v1058 = vld [vmem:[%s3 + $0x2c] sm:$0xf]
      %v1061 = vunpack.c.l.b16 %v1057
      %v1062 = vunpack.c.l.b16 %v1058
      %v1063 = vpack.c.b16 %v1062, %v1061
      %v1066 = vsel %vm280, %v1053, 0
      %v1069 = vsel %vm280, %v1054, 0
      %v1072 = vsel %vm280, %v1055, 0
      %v1075 = vsel %vm280, %v1056, 0
      %1077 = vmatprep.subr.bf16.mxu0 0
      %1078 = vmatpush1.bf16.msra.mxu0 0
      %1079 = vmatprep.subr.bf16.mxu0 0
      %1080 = vmatpush1.bf16.msra.mxu0 0
      %1081 = vmatprep.subr.bf16.mxu0 0
      %1082 = vmatpush1.bf16.msra.mxu0 0
      %1083 = vmatprep.subr.bf16.mxu0 0
      %1084 = vmatpush1.bf16.msra.mxu0 0
      %1085 = vmatprep.subr.bf16.mxu0 0
      %1086 = vmatpush1.bf16.msra.mxu0 0
      %1087 = vmatprep.subr.bf16.mxu0 0
      %1088 = vmatpush1.bf16.msra.mxu0 0
      %1089 = vmatprep.subr.bf16.mxu0 0
      %1090 = vmatpush1.bf16.msra.mxu0 0
      %1091 = vmatprep.subr.bf16.mxu0 0
      %1092 = vmatpush1.bf16.msra.mxu0 %v1063
      %1093 = vmatprep.subr.bf16.mxu0 0
      %1094 = vmatpush2.bf16.msra.mxu0 0
      %1095 = vmatprep.subr.bf16.mxu0 0
      %1096 = vmatpush2.bf16.msra.mxu0 0
      %1097 = vmatprep.subr.bf16.mxu0 0
      %1098 = vmatpush2.bf16.msra.mxu0 0
      %1099 = vmatprep.subr.bf16.mxu0 0
      %1100 = vmatpush2.bf16.msra.mxu0 0
      %1101 = vmatprep.subr.bf16.mxu0 0
      %1102 = vmatpush2.bf16.msra.mxu0 0
      %1103 = vmatprep.subr.bf16.mxu0 0
      %1104 = vmatpush2.bf16.msra.mxu0 0
      %1105 = vmatprep.subr.bf16.mxu0 0
      %1106 = vmatpush2.bf16.msra.mxu0 0
      %1107 = vmatprep.subr.bf16.mxu0 0
      %1108 = vmatpush2.bf16.msra.mxu0 0
      %1109 = vmatprep.mubr.bf16.mxu0 0
      %1110 = vmatmul.mubr.bf16.gmra.mxu0 %v1066
      %v1111 = vpop.f32.mrf.mxu0
      %v1112 = vadd.f32 0.0, %v1111
      %v1113 = vpop.f32.mrf.mxu0
      %v1114 = vpop.f32.mrf.mxu0
      %v1115 = vadd.f32 0.0, %v1114
      %v1116 = vpop.f32.mrf.mxu0
      %1117 = vmatprep.mubr.bf16.mxu0 0
      %1118 = vmatmul.mubr.bf16.gmra.mxu0 %v1069
      %v1119 = vpop.f32.mrf.mxu0
      %v1120 = vadd.f32 0.0, %v1119
      %v1121 = vpop.f32.mrf.mxu0
      %v1122 = vpop.f32.mrf.mxu0
      %v1123 = vadd.f32 0.0, %v1122
      %v1124 = vpop.f32.mrf.mxu0
      %1125 = vmatprep.mubr.bf16.mxu0 0
      %1126 = vmatmul.mubr.bf16.gmra.mxu0 %v1072
      %v1127 = vpop.f32.mrf.mxu0
      %v1128 = vadd.f32 0.0, %v1127
      %v1129 = vpop.f32.mrf.mxu0
      %v1130 = vpop.f32.mrf.mxu0
      %v1131 = vadd.f32 0.0, %v1130
      %v1132 = vpop.f32.mrf.mxu0
      %1133 = vmatprep.mubr.bf16.mxu0 0
      %1134 = vmatmul.mubr.bf16.gmra.mxu0 %v1075
      %v1135 = vpop.f32.mrf.mxu0
      %v1136 = vadd.f32 0.0, %v1135
      %v1137 = vpop.f32.mrf.mxu0
      %v1138 = vpop.f32.mrf.mxu0
      %v1139 = vadd.f32 0.0, %v1138
      %v1140 = vpop.f32.mrf.mxu0
      %1141 = vdwg.mxu0
      %v1142 = vadd.f32 %v991, %v1112
      %v1143 = vadd.f32 %v994, %v1115
      %v1144 = vadd.f32 %v999, %v1120
      %v1145 = vadd.f32 %v1002, %v1123
      %v1146 = vadd.f32 %v1007, %v1128
      %v1147 = vadd.f32 %v1010, %v1131
      %v1148 = vadd.f32 %v1015, %v1136
      %v1149 = vadd.f32 %v1018, %v1139
      %v1150 = vld [vmem:[#allocation3] sm:$0xff]
      %v1151 = vld [vmem:[#allocation3 + $0x8] sm:$0xff]
      %v1152 = vld [vmem:[#allocation3 + $0x10] sm:$0xff]
      %v1153 = vld [vmem:[#allocation3 + $0x18] sm:$0xff]
      %v1154 = vld [vmem:[#allocation3 + $0x20] sm:$0xff]
      %v1155 = vld [vmem:[#allocation3 + $0x28] sm:$0xff]
      %v1156 = vld [vmem:[#allocation3 + $0x30] sm:$0xff]
      %v1157 = vld [vmem:[#allocation3 + $0x38] sm:$0xff]
      %v1158 = vadd.f32 %v1150, %v1142
      %v1159 = vadd.f32 %v1151, %v1143
      %v1160 = vadd.f32 %v1152, %v1144
      %v1161 = vadd.f32 %v1153, %v1145
      %v1162 = vadd.f32 %v1154, %v1146
      %v1163 = vadd.f32 %v1155, %v1147
      %v1164 = vadd.f32 %v1156, %v1148
      %v1165 = vadd.f32 %v1157, %v1149
      %1166 = vst [vmem:[#allocation3] sm:$0xff] %v1158
      %1167 = vst [vmem:[#allocation3 + $0x8] sm:$0xff] %v1159
      %1168 = vst [vmem:[#allocation3 + $0x10] sm:$0xff] %v1160
      %1169 = vst [vmem:[#allocation3 + $0x18] sm:$0xff] %v1161
      %1170 = vst [vmem:[#allocation3 + $0x20] sm:$0xff] %v1162
      %1171 = vst [vmem:[#allocation3 + $0x28] sm:$0xff] %v1163
      %1172 = vst [vmem:[#allocation3 + $0x30] sm:$0xff] %v1164
      %1173 = vst [vmem:[#allocation3 + $0x38] sm:$0xff] %v1165
      %s1174 = scalar_lea.vmem [#allocation2], 32
      %v1175 = vld [vmem:[%s1174] sm:$0xff]
      %v1176 = vld [vmem:[%s1174 + $0x8] sm:$0x3]
      %v1177 = vld [vmem:[%s1174 + $0x10] sm:$0xff]
      %v1178 = vld [vmem:[%s1174 + $0x18] sm:$0x3]
      %v1179 = vld [vmem:[%s1174 + $0x20] sm:$0xff]
      %v1180 = vld [vmem:[%s1174 + $0x28] sm:$0x3]
      %v1181 = vld [vmem:[%s1174 + $0x30] sm:$0xff]
      %v1182 = vld [vmem:[%s1174 + $0x38] sm:$0x3]
      %v1183 = vld [vmem:[%s1174 + $0x40] sm:$0xff]
      %v1184 = vld [vmem:[%s1174 + $0x48] sm:$0x3]
      %v1185 = vld [vmem:[%s1174 + $0x50] sm:$0xff]
      %v1186 = vld [vmem:[%s1174 + $0x58] sm:$0x3]
      %v1187 = vld [vmem:[%s1174 + $0x60] sm:$0xff]
      %v1188 = vld [vmem:[%s1174 + $0x68] sm:$0x3]
      %v1189 = vld [vmem:[%s1174 + $0x70] sm:$0xff]
      %v1190 = vld [vmem:[%s1174 + $0x78] sm:$0x3]
      %v1191 = vpack.c.bf16 %v1177, %v1175
      %v1192 = vpack.c.bf16 %v1181, %v1179
      %v1193 = vpack.c.bf16 %v1185, %v1183
      %v1194 = vpack.c.bf16 %v1189, %v1187
      %v1195 = vld [vmem:[%s3 + $0x30] sm:$0xf]
      %v1196 = vld [vmem:[%s3 + $0x34] sm:$0xf]
      %v1213 = vrot.slane %v1175, 1
      %v1214 = vrot.slane %v1176, 1
      %v1215 = vsel %vm436, %v1213, %v1214
      %v1216 = vrot.slane %v1177, 1
      %v1217 = vrot.slane %v1178, 1
      %v1218 = vsel %vm436, %v1216, %v1217
      %v1219 = vrot.slane %v1179, 1
      %v1220 = vrot.slane %v1180, 1
      %v1221 = vsel %vm436, %v1219, %v1220
      %v1222 = vrot.slane %v1181, 1
      %v1223 = vrot.slane %v1182, 1
      %v1224 = vsel %vm436, %v1222, %v1223
      %v1225 = vrot.slane %v1183, 1
      %v1226 = vrot.slane %v1184, 1
      %v1227 = vsel %vm436, %v1225, %v1226
      %v1228 = vrot.slane %v1185, 1
      %v1229 = vrot.slane %v1186, 1
      %v1230 = vsel %vm436, %v1228, %v1229
      %v1231 = vrot.slane %v1187, 1
      %v1232 = vrot.slane %v1188, 1
      %v1233 = vsel %vm436, %v1231, %v1232
      %v1234 = vrot.slane %v1189, 1
      %v1235 = vrot.slane %v1190, 1
      %v1236 = vsel %vm436, %v1234, %v1235
      %v1245 = vpack.c.bf16 %v1218, %v1215
      %v1246 = vpack.c.bf16 %v1224, %v1221
      %v1247 = vpack.c.bf16 %v1230, %v1227
      %v1248 = vpack.c.bf16 %v1236, %v1233
      %v1249 = vld [vmem:[%s3 + $0x38] sm:$0xf]
      %v1250 = vld [vmem:[%s3 + $0x3c] sm:$0xf]
      %v1253 = vunpack.c.l.b16 %v1249
      %v1254 = vunpack.c.l.b16 %v1250
      %v1255 = vpack.c.b16 %v1254, %v1253
      %v1258 = vsel %vm280, %v1245, 0
      %v1261 = vsel %vm280, %v1246, 0
      %v1264 = vsel %vm280, %v1247, 0
      %v1267 = vsel %vm280, %v1248, 0
      %1269 = vmatprep.subr.bf16.mxu0 0
      %1270 = vmatpush1.bf16.msra.mxu0 0
      %1271 = vmatprep.subr.bf16.mxu0 0
      %1272 = vmatpush1.bf16.msra.mxu0 0
      %1273 = vmatprep.subr.bf16.mxu0 0
      %1274 = vmatpush1.bf16.msra.mxu0 0
      %1275 = vmatprep.subr.bf16.mxu0 0
      %1276 = vmatpush1.bf16.msra.mxu0 0
      %1277 = vmatprep.subr.bf16.mxu0 0
      %1278 = vmatpush1.bf16.msra.mxu0 0
      %1279 = vmatprep.subr.bf16.mxu0 0
      %1280 = vmatpush1.bf16.msra.mxu0 0
      %1281 = vmatprep.subr.bf16.mxu0 0
      %1282 = vmatpush1.bf16.msra.mxu0 0
      %1283 = vmatprep.subr.bf16.mxu0 0
      %1284 = vmatpush1.bf16.msra.mxu0 %v1255
      %1285 = vmatprep.subr.bf16.mxu0 0
      %1286 = vmatpush2.bf16.msra.mxu0 0
      %1287 = vmatprep.subr.bf16.mxu0 0
      %1288 = vmatpush2.bf16.msra.mxu0 0
      %1289 = vmatprep.subr.bf16.mxu0 0
      %1290 = vmatpush2.bf16.msra.mxu0 0
      %1291 = vmatprep.subr.bf16.mxu0 0
      %1292 = vmatpush2.bf16.msra.mxu0 0
      %1293 = vmatprep.subr.bf16.mxu0 0
      %1294 = vmatpush2.bf16.msra.mxu0 0
      %1295 = vmatprep.subr.bf16.mxu0 0
      %1296 = vmatpush2.bf16.msra.mxu0 0
      %1297 = vmatprep.subr.bf16.mxu0 0
      %1298 = vmatpush2.bf16.msra.mxu0 0
      %1299 = vmatprep.subr.bf16.mxu0 0
      %1300 = vmatpush2.bf16.msra.mxu0 0
      %1301 = vmatprep.mubr.bf16.mxu0 0
      %1302 = vmatmul.mubr.bf16.gmra.mxu0 %v1258
      %v1303 = vpop.f32.mrf.mxu0
      %v1304 = vadd.f32 0.0, %v1303
      %v1305 = vpop.f32.mrf.mxu0
      %v1306 = vpop.f32.mrf.mxu0
      %v1307 = vadd.f32 0.0, %v1306
      %v1308 = vpop.f32.mrf.mxu0
      %1309 = vmatprep.mubr.bf16.mxu0 0
      %1310 = vmatmul.mubr.bf16.gmra.mxu0 %v1261
      %v1311 = vpop.f32.mrf.mxu0
      %v1312 = vadd.f32 0.0, %v1311
      %v1313 = vpop.f32.mrf.mxu0
      %v1314 = vpop.f32.mrf.mxu0
      %v1315 = vadd.f32 0.0, %v1314
      %v1316 = vpop.f32.mrf.mxu0
      %1317 = vmatprep.mubr.bf16.mxu0 0
      %1318 = vmatmul.mubr.bf16.gmra.mxu0 %v1264
      %v1319 = vpop.f32.mrf.mxu0
      %v1320 = vadd.f32 0.0, %v1319
      %v1321 = vpop.f32.mrf.mxu0
      %v1322 = vpop.f32.mrf.mxu0
      %v1323 = vadd.f32 0.0, %v1322
      %v1324 = vpop.f32.mrf.mxu0
      %1325 = vmatprep.mubr.bf16.mxu0 0
      %1326 = vmatmul.mubr.bf16.gmra.mxu0 %v1267
      %v1327 = vpop.f32.mrf.mxu0
      %v1328 = vadd.f32 0.0, %v1327
      %v1329 = vpop.f32.mrf.mxu0
      %v1330 = vpop.f32.mrf.mxu0
      %v1331 = vadd.f32 0.0, %v1330
      %v1332 = vpop.f32.mrf.mxu0
      %1333 = vdwg.mxu0
      %v1336 = vunpack.c.l.b16 %v1195
      %v1337 = vunpack.c.l.b16 %v1196
      %v1338 = vpack.c.b16 %v1337, %v1336
      %v1341 = vsel %vm280, %v1191, 0
      %v1344 = vsel %vm280, %v1192, 0
      %v1347 = vsel %vm280, %v1193, 0
      %v1350 = vsel %vm280, %v1194, 0
      %1352 = vmatprep.subr.bf16.mxu0 0
      %1353 = vmatpush1.bf16.msra.mxu0 0
      %1354 = vmatprep.subr.bf16.mxu0 0
      %1355 = vmatpush1.bf16.msra.mxu0 0
      %1356 = vmatprep.subr.bf16.mxu0 0
      %1357 = vmatpush1.bf16.msra.mxu0 0
      %1358 = vmatprep.subr.bf16.mxu0 0
      %1359 = vmatpush1.bf16.msra.mxu0 0
      %1360 = vmatprep.subr.bf16.mxu0 0
      %1361 = vmatpush1.bf16.msra.mxu0 0
      %1362 = vmatprep.subr.bf16.mxu0 0
      %1363 = vmatpush1.bf16.msra.mxu0 0
      %1364 = vmatprep.subr.bf16.mxu0 0
      %1365 = vmatpush1.bf16.msra.mxu0 0
      %1366 = vmatprep.subr.bf16.mxu0 0
      %1367 = vmatpush1.bf16.msra.mxu0 %v1338
      %1368 = vmatprep.subr.bf16.mxu0 0
      %1369 = vmatpush2.bf16.msra.mxu0 0
      %1370 = vmatprep.subr.bf16.mxu0 0
      %1371 = vmatpush2.bf16.msra.mxu0 0
      %1372 = vmatprep.subr.bf16.mxu0 0
      %1373 = vmatpush2.bf16.msra.mxu0 0
      %1374 = vmatprep.subr.bf16.mxu0 0
      %1375 = vmatpush2.bf16.msra.mxu0 0
      %1376 = vmatprep.subr.bf16.mxu0 0
      %1377 = vmatpush2.bf16.msra.mxu0 0
      %1378 = vmatprep.subr.bf16.mxu0 0
      %1379 = vmatpush2.bf16.msra.mxu0 0
      %1380 = vmatprep.subr.bf16.mxu0 0
      %1381 = vmatpush2.bf16.msra.mxu0 0
      %1382 = vmatprep.subr.bf16.mxu0 0
      %1383 = vmatpush2.bf16.msra.mxu0 0
      %1384 = vmatprep.mubr.bf16.mxu0 0
      %1385 = vmatmul.mubr.bf16.gmra.mxu0 %v1341
      %v1386 = vpop.f32.mrf.mxu0
      %v1387 = vadd.f32 %v1304, %v1386
      %v1388 = vpop.f32.mrf.mxu0
      %v1389 = vpop.f32.mrf.mxu0
      %v1390 = vadd.f32 %v1307, %v1389
      %v1391 = vpop.f32.mrf.mxu0
      %1392 = vmatprep.mubr.bf16.mxu0 0
      %1393 = vmatmul.mubr.bf16.gmra.mxu0 %v1344
      %v1394 = vpop.f32.mrf.mxu0
      %v1395 = vadd.f32 %v1312, %v1394
      %v1396 = vpop.f32.mrf.mxu0
      %v1397 = vpop.f32.mrf.mxu0
      %v1398 = vadd.f32 %v1315, %v1397
      %v1399 = vpop.f32.mrf.mxu0
      %1400 = vmatprep.mubr.bf16.mxu0 0
      %1401 = vmatmul.mubr.bf16.gmra.mxu0 %v1347
      %v1402 = vpop.f32.mrf.mxu0
      %v1403 = vadd.f32 %v1320, %v1402
      %v1404 = vpop.f32.mrf.mxu0
      %v1405 = vpop.f32.mrf.mxu0
      %v1406 = vadd.f32 %v1323, %v1405
      %v1407 = vpop.f32.mrf.mxu0
      %1408 = vmatprep.mubr.bf16.mxu0 0
      %1409 = vmatmul.mubr.bf16.gmra.mxu0 %v1350
      %v1410 = vpop.f32.mrf.mxu0
      %v1411 = vadd.f32 %v1328, %v1410
      %v1412 = vpop.f32.mrf.mxu0
      %v1413 = vpop.f32.mrf.mxu0
      %v1414 = vadd.f32 %v1331, %v1413
      %v1415 = vpop.f32.mrf.mxu0
      %1416 = vdwg.mxu0
      %v1417 = vrot.slane %v1175, 2
      %v1418 = vrot.slane %v1176, 2
      %v1419 = vsel %vm641, %v1417, %v1418
      %v1420 = vrot.slane %v1177, 2
      %v1421 = vrot.slane %v1178, 2
      %v1422 = vsel %vm641, %v1420, %v1421
      %v1423 = vrot.slane %v1179, 2
      %v1424 = vrot.slane %v1180, 2
      %v1425 = vsel %vm641, %v1423, %v1424
      %v1426 = vrot.slane %v1181, 2
      %v1427 = vrot.slane %v1182, 2
      %v1428 = vsel %vm641, %v1426, %v1427
      %v1429 = vrot.slane %v1183, 2
      %v1430 = vrot.slane %v1184, 2
      %v1431 = vsel %vm641, %v1429, %v1430
      %v1432 = vrot.slane %v1185, 2
      %v1433 = vrot.slane %v1186, 2
      %v1434 = vsel %vm641, %v1432, %v1433
      %v1435 = vrot.slane %v1187, 2
      %v1436 = vrot.slane %v1188, 2
      %v1437 = vsel %vm641, %v1435, %v1436
      %v1438 = vrot.slane %v1189, 2
      %v1439 = vrot.slane %v1190, 2
      %v1440 = vsel %vm641, %v1438, %v1439
      %v1449 = vpack.c.bf16 %v1422, %v1419
      %v1450 = vpack.c.bf16 %v1428, %v1425
      %v1451 = vpack.c.bf16 %v1434, %v1431
      %v1452 = vpack.c.bf16 %v1440, %v1437
      %v1453 = vld [vmem:[%s3 + $0x40] sm:$0xf]
      %v1454 = vld [vmem:[%s3 + $0x44] sm:$0xf]
      %v1457 = vunpack.c.l.b16 %v1453
      %v1458 = vunpack.c.l.b16 %v1454
      %v1459 = vpack.c.b16 %v1458, %v1457
      %v1462 = vsel %vm280, %v1449, 0
      %v1465 = vsel %vm280, %v1450, 0
      %v1468 = vsel %vm280, %v1451, 0
      %v1471 = vsel %vm280, %v1452, 0
      %1473 = vmatprep.subr.bf16.mxu0 0
      %1474 = vmatpush1.bf16.msra.mxu0 0
      %1475 = vmatprep.subr.bf16.mxu0 0
      %1476 = vmatpush1.bf16.msra.mxu0 0
      %1477 = vmatprep.subr.bf16.mxu0 0
      %1478 = vmatpush1.bf16.msra.mxu0 0
      %1479 = vmatprep.subr.bf16.mxu0 0
      %1480 = vmatpush1.bf16.msra.mxu0 0
      %1481 = vmatprep.subr.bf16.mxu0 0
      %1482 = vmatpush1.bf16.msra.mxu0 0
      %1483 = vmatprep.subr.bf16.mxu0 0
      %1484 = vmatpush1.bf16.msra.mxu0 0
      %1485 = vmatprep.subr.bf16.mxu0 0
      %1486 = vmatpush1.bf16.msra.mxu0 0
      %1487 = vmatprep.subr.bf16.mxu0 0
      %1488 = vmatpush1.bf16.msra.mxu0 %v1459
      %1489 = vmatprep.subr.bf16.mxu0 0
      %1490 = vmatpush2.bf16.msra.mxu0 0
      %1491 = vmatprep.subr.bf16.mxu0 0
      %1492 = vmatpush2.bf16.msra.mxu0 0
      %1493 = vmatprep.subr.bf16.mxu0 0
      %1494 = vmatpush2.bf16.msra.mxu0 0
      %1495 = vmatprep.subr.bf16.mxu0 0
      %1496 = vmatpush2.bf16.msra.mxu0 0
      %1497 = vmatprep.subr.bf16.mxu0 0
      %1498 = vmatpush2.bf16.msra.mxu0 0
      %1499 = vmatprep.subr.bf16.mxu0 0
      %1500 = vmatpush2.bf16.msra.mxu0 0
      %1501 = vmatprep.subr.bf16.mxu0 0
      %1502 = vmatpush2.bf16.msra.mxu0 0
      %1503 = vmatprep.subr.bf16.mxu0 0
      %1504 = vmatpush2.bf16.msra.mxu0 0
      %1505 = vmatprep.mubr.bf16.mxu0 0
      %1506 = vmatmul.mubr.bf16.gmra.mxu0 %v1462
      %v1507 = vpop.f32.mrf.mxu0
      %v1508 = vadd.f32 0.0, %v1507
      %v1509 = vpop.f32.mrf.mxu0
      %v1510 = vpop.f32.mrf.mxu0
      %v1511 = vadd.f32 0.0, %v1510
      %v1512 = vpop.f32.mrf.mxu0
      %1513 = vmatprep.mubr.bf16.mxu0 0
      %1514 = vmatmul.mubr.bf16.gmra.mxu0 %v1465
      %v1515 = vpop.f32.mrf.mxu0
      %v1516 = vadd.f32 0.0, %v1515
      %v1517 = vpop.f32.mrf.mxu0
      %v1518 = vpop.f32.mrf.mxu0
      %v1519 = vadd.f32 0.0, %v1518
      %v1520 = vpop.f32.mrf.mxu0
      %1521 = vmatprep.mubr.bf16.mxu0 0
      %1522 = vmatmul.mubr.bf16.gmra.mxu0 %v1468
      %v1523 = vpop.f32.mrf.mxu0
      %v1524 = vadd.f32 0.0, %v1523
      %v1525 = vpop.f32.mrf.mxu0
      %v1526 = vpop.f32.mrf.mxu0
      %v1527 = vadd.f32 0.0, %v1526
      %v1528 = vpop.f32.mrf.mxu0
      %1529 = vmatprep.mubr.bf16.mxu0 0
      %1530 = vmatmul.mubr.bf16.gmra.mxu0 %v1471
      %v1531 = vpop.f32.mrf.mxu0
      %v1532 = vadd.f32 0.0, %v1531
      %v1533 = vpop.f32.mrf.mxu0
      %v1534 = vpop.f32.mrf.mxu0
      %v1535 = vadd.f32 0.0, %v1534
      %v1536 = vpop.f32.mrf.mxu0
      %1537 = vdwg.mxu0
      %v1538 = vadd.f32 %v1387, %v1508
      %v1539 = vadd.f32 %v1390, %v1511
      %v1540 = vadd.f32 %v1395, %v1516
      %v1541 = vadd.f32 %v1398, %v1519
      %v1542 = vadd.f32 %v1403, %v1524
      %v1543 = vadd.f32 %v1406, %v1527
      %v1544 = vadd.f32 %v1411, %v1532
      %v1545 = vadd.f32 %v1414, %v1535
      %v1546 = vld [vmem:[#allocation3] sm:$0xff]
      %v1547 = vld [vmem:[#allocation3 + $0x8] sm:$0xff]
      %v1548 = vld [vmem:[#allocation3 + $0x10] sm:$0xff]
      %v1549 = vld [vmem:[#allocation3 + $0x18] sm:$0xff]
      %v1550 = vld [vmem:[#allocation3 + $0x20] sm:$0xff]
      %v1551 = vld [vmem:[#allocation3 + $0x28] sm:$0xff]
      %v1552 = vld [vmem:[#allocation3 + $0x30] sm:$0xff]
      %v1553 = vld [vmem:[#allocation3 + $0x38] sm:$0xff]
      %v1554 = vadd.f32 %v1546, %v1538
      %v1555 = vadd.f32 %v1547, %v1539
      %v1556 = vadd.f32 %v1548, %v1540
      %v1557 = vadd.f32 %v1549, %v1541
      %v1558 = vadd.f32 %v1550, %v1542
      %v1559 = vadd.f32 %v1551, %v1543
      %v1560 = vadd.f32 %v1552, %v1544
      %v1561 = vadd.f32 %v1553, %v1545
      %1562 = vst [vmem:[#allocation3] sm:$0xff] %v1554
      %1563 = vst [vmem:[#allocation3 + $0x8] sm:$0xff] %v1555
      %1564 = vst [vmem:[#allocation3 + $0x10] sm:$0xff] %v1556
      %1565 = vst [vmem:[#allocation3 + $0x18] sm:$0xff] %v1557
      %1566 = vst [vmem:[#allocation3 + $0x20] sm:$0xff] %v1558
      %1567 = vst [vmem:[#allocation3 + $0x28] sm:$0xff] %v1559
      %1568 = vst [vmem:[#allocation3 + $0x30] sm:$0xff] %v1560
      %1569 = vst [vmem:[#allocation3 + $0x38] sm:$0xff] %v1561
      %v1570 = vld [vmem:[#allocation3] sm:$0xff]
      %v1571 = vld [vmem:[#allocation3 + $0x8] sm:$0xff]
      %v1572 = vld [vmem:[#allocation3 + $0x10] sm:$0xff]
      %v1573 = vld [vmem:[#allocation3 + $0x18] sm:$0xff]
      %v1574 = vld [vmem:[#allocation3 + $0x20] sm:$0xff]
      %v1575 = vld [vmem:[#allocation3 + $0x28] sm:$0xff]
      %v1576 = vld [vmem:[#allocation3 + $0x30] sm:$0xff]
      %v1577 = vld [vmem:[#allocation3 + $0x38] sm:$0xff]
      %v1578 = vadd.f32 %v1570, %v1571
      %v1579 = vadd.f32 %v1578, %v1572
      %v1580 = vadd.f32 %v1579, %v1573
      %v1581 = vadd.f32 %v1580, %v1574
      %v1582 = vadd.f32 %v1581, %v1575
      %v1583 = vadd.f32 %v1582, %v1576
      %v1584 = vadd.f32 %v1583, %v1577
      %v1585 = vrot.slane %v1584, 4
      %v1586 = vadd.f32 %v1584, %v1585
      %v1587 = vrot.slane %v1586, 2
      %v1588 = vadd.f32 %v1586, %v1587
      %v1589 = vrot.slane %v1588, 1
      %v1590 = vadd.f32 %v1588, %v1589
      %v1591 = vmul.f32 %v1570, %v1570
      %v1592 = vmul.f32 %v1571, %v1571
      %v1593 = vmul.f32 %v1572, %v1572
      %v1594 = vmul.f32 %v1573, %v1573
      %v1595 = vmul.f32 %v1574, %v1574
      %v1596 = vmul.f32 %v1575, %v1575
      %v1597 = vmul.f32 %v1576, %v1576
      %v1598 = vmul.f32 %v1577, %v1577
      %v1599 = vadd.f32 %v1591, %v1592
      %v1600 = vadd.f32 %v1599, %v1593
      %v1601 = vadd.f32 %v1600, %v1594
      %v1602 = vadd.f32 %v1601, %v1595
      %v1603 = vadd.f32 %v1602, %v1596
      %v1604 = vadd.f32 %v1603, %v1597
      %v1605 = vadd.f32 %v1604, %v1598
      %v1606 = vrot.slane %v1605, 4
      %v1607 = vadd.f32 %v1605, %v1606
      %v1608 = vrot.slane %v1607, 2
      %v1609 = vadd.f32 %v1607, %v1608
      %v1610 = vrot.slane %v1609, 1
      %v1611 = vadd.f32 %v1609, %v1610
      %vm1612 = vcmask 1040384
      %v1613 = vsel %vm1612, %v1590, %v1611
      %1614 = vst [vmem:[%s235] sm:$0x3] %v1613
      %v1615 = vpack.c.bf16 %v1570, %v1570
      %v1616 = vpack.c.bf16 %v1571, %v1571
      %v1617 = vpack.c.bf16 %v1572, %v1572
      %v1618 = vpack.c.bf16 %v1573, %v1573
      %v1619 = vpack.c.bf16 %v1574, %v1574
      %v1620 = vpack.c.bf16 %v1575, %v1575
      %v1621 = vpack.c.bf16 %v1576, %v1576
      %v1622 = vpack.c.bf16 %v1577, %v1577
      %1623 = vst [vmem:[%s231] sm:$0xf] %v1615
      %1624 = vst [vmem:[%s231 + $0x4] sm:$0xf] %v1616
      %1625 = vst [vmem:[%s231 + $0x8] sm:$0xf] %v1617
      %1626 = vst [vmem:[%s231 + $0xc] sm:$0xf] %v1618
      %1627 = vst [vmem:[%s231 + $0x10] sm:$0xf] %v1619
      %1628 = vst [vmem:[%s231 + $0x14] sm:$0xf] %v1620
      %1629 = vst [vmem:[%s231 + $0x18] sm:$0xf] %v1621
      %1630 = vst [vmem:[%s231 + $0x1c] sm:$0xf] %v1622
      %p1631 = scmp.lt.s32.totalorder %s17, 1
      %s1632 = scalar_select %p1631, %s17, 1
      %s1633 = smul.addr %s1632, 8
      %s1634 = smul.addr %s1633, 4
      %s1635 = scalar_lea.vmem %s4, %s1634
      %p1636 = scmp.lt.s32.totalorder %s17, 1
      %s1637 = scalar_select %p1636, %s17, 1
      %s1638 = smul.addr %s1637, 2
      %s1639 = scalar_lea.vmem %s5, %s1638
      // Predicated region
      $region37: #{conv_block_forward.5} parent=35 // pred_check
        %p1640 = pneg %p124
      $region38: #{conv_block_forward.5} parent=35 // pred_check_branch
        %1642 = sbr.rel (%p1640) target = $region40
      $region39: #{conv_block_forward.5} parent=35 // pred_region
        _
      $region40: #{conv_block_forward.5} parent=35 // pred_fallthru
        _
      // Predicated region
      $region41: #{conv_block_forward.5} parent=35 // pred_check
        %p1643 = pneg %p150
      $region42: #{conv_block_forward.5} parent=35 // pred_check_branch
        %1645 = sbr.rel (%p1643) target = $region44
      $region43: #{conv_block_forward.5} parent=35 // pred_region
        _
      $region44: #{conv_block_forward.5} parent=35 // pred_fallthru
        _
    $region36: #{conv_block_forward.5} parent=5 // pred_fallthru
      _
    %p1646 = scmp.le.s32.totalorder 2, %s12
    // Predicated region
    $region45: #{conv_block_forward.5} parent=5 // pred_check
      %p1647 = pneg %p1646
    $region46: #{conv_block_forward.5} parent=5 // pred_check_branch
      %1649 = sbr.rel (%p1647) target = $region48
    $region47: #{conv_block_forward.5} parent=5 // pred_region
      %s1650 = ssub.s32 %s12, 2
      // Predicated region
      $region49: #{conv_block_forward.5} parent=47 // pred_check
        %p1651 = pneg %p130
      $region50: #{conv_block_forward.5} parent=47 // pred_check_branch
        %1653 = sbr.rel (%p1651) target = $region52
      $region51: #{conv_block_forward.5} parent=47 // pred_region
        %p1654 = scmp.lt.s32.totalorder %s18, 1
        %s1655 = scalar_select %p1654, %s18, 1
        %s1656 = smul.addr %s1655, 8
        %s1657 = smul.addr %s1656, 4
        %s1658 = scalar_lea.vmem %s4, %s1657
      $region52: #{conv_block_forward.5} parent=47 // pred_fallthru
        _
      // Predicated region
      $region53: #{conv_block_forward.5} parent=47 // pred_check
        %p1659 = pneg %p156
      $region54: #{conv_block_forward.5} parent=47 // pred_check_branch
        %1661 = sbr.rel (%p1659) target = $region56
      $region55: #{conv_block_forward.5} parent=47 // pred_region
        %p1662 = scmp.lt.s32.totalorder %s18, 1
        %s1663 = scalar_select %p1662, %s18, 1
        %s1664 = smul.addr %s1663, 2
        %s1665 = scalar_lea.vmem %s5, %s1664
      $region56: #{conv_block_forward.5} parent=47 // pred_fallthru
        _
    $region48: #{conv_block_forward.5} parent=5 // pred_fallthru
      _
  $region6: #{conv_block_forward.5} parent=0 // loop_footer
    %s16 = sadd.s32 1, %s12
  $region7: #{conv_block_forward.5} parent=0 // loop_footer_branch
    %11 = sbr.rel target = $region3
  $region8: #{conv_block_forward.5} parent=0 // loop_exit
    _

</llo_original>
